<compile_context>
chip_gen: v7x
topology: tpu7x:2x2x1
jax: 0.10.0
libtpu: 0.0.40
codegen_flags: <defaults>
</compile_context>

<pallas_src>
import jax
import jax.numpy as jnp
from jax.experimental import pallas as pl
from jax.experimental.pallas import tpu as pltpu

# Logical (PyTorch) dims
D_IN, H1, H2, D_OUT = 13, 1000, 500, 1
# Lane-aligned padded dims.  The LAST column of each padded hidden dim is a
# reserved constant-1 channel used to fold the next layer's bias into the
# matmul; x gains a ones column at index D_IN (=13) for the fc1 bias.
D_INP = 128    # 13 features + 1 ones column + zero padding
H1P = 1024     # 1000 real + zero pad + column 1023 = constant-1 channel
H2P = 512      # 500 real  + zero pad + column 511  = constant-1 channel


def mlp_kernel(x_ref, w1_ref, w2_ref, w3_ref, o_ref):
    # fc1 (+ bias folded in via the ones column): f32 accumulation on the MXU.
    x = x_ref[...].astype(jnp.bfloat16)                      # (TILE_B, 128)
    h1 = jnp.dot(x, w1_ref[...], preferred_element_type=jnp.float32)
    # ReLU in bf16 (commutes with the downcast): halves the spilled
    # intermediate and the VALU / vst passes on v6e/v7x.
    h1 = jnp.maximum(h1.astype(jnp.bfloat16), 0)             # (TILE_B, 1024)

    # fc2 (+ bias folded via h1's constant-1 channel).
    h2 = jnp.dot(h1, w2_ref[...], preferred_element_type=jnp.float32)
    h2 = jnp.maximum(h2.astype(jnp.bfloat16), 0)             # (TILE_B, 512)

    # fc3 (+ bias folded via h2's constant-1 channel): an N=1 matmul wastes
    # the MXU, so broadcast-multiply by the f32 weight row and reduce over
    # the lane axis (VPU multiply + XLU reduction).
    z = jnp.sum(h2.astype(jnp.float32) * w3_ref[...], axis=1, keepdims=True)

    # Lane-dense store: the tile is written as a (1, 1, TILE_B) row.
    o_ref[...] = jnp.transpose(jax.nn.sigmoid(z)).reshape(o_ref.shape)


def _select_tile(batch):
    """Largest multiple-of-128 tile (<=1024) that still yields >= 2 grid steps,
    so the 'parallel' batch axis shards across both v7x TensorCores.  Tiny
    batches fall back to a single 128-row tile."""
    for t in (1024, 512, 256, 128):
        if batch >= 2 * t:
            return t
    return 128


@jax.jit
def net_forward(x, params):
    """x: (B, 13) float32.  Returns (B, 1) float32 =
    sigmoid(fc3(relu(fc2(relu(fc1(x))))))."""
    w1, w2, w3 = params
    B = x.shape[0]
    tile_b = _select_tile(B)
    n_tiles = pl.cdiv(B, tile_b)
    b_pad = n_tiles * tile_b

    # Append the bias ones column, then zero-pad features to 128 and batch to
    # a tile multiple.  Padded batch rows get a zero ones column; their
    # (garbage) outputs are sliced off below.
    ones = jnp.ones((B, 1), x.dtype)
    x_aug = jnp.concatenate([x, ones], axis=1)                   # (B, 14)
    x_p = jnp.pad(x_aug, ((0, b_pad - B), (0, D_INP - (D_IN + 1))))

    full2d = lambda a: pl.BlockSpec(a.shape, lambda i: (0, 0))

    flops = 2 * b_pad * (D_INP * H1P + H1P * H2P + H2P)
    bytes_accessed = (x_p.size * 4
                      + (w1.size + w2.size) * 2 + w3.size * 4
                      + b_pad * 4)

    out = pl.pallas_call(
        mlp_kernel,
        out_shape=jax.ShapeDtypeStruct((n_tiles, 1, tile_b), jnp.float32),
        grid_spec=pltpu.PrefetchScalarGridSpec(
            num_scalar_prefetch=0,
            grid=(n_tiles,),
            in_specs=[
                pl.BlockSpec((tile_b, D_INP), lambda i: (i, 0)),  # x tile
                full2d(w1),                                       # fc1 weight (bias folded)
                full2d(w2),                                       # fc2 weight (bias folded)
                full2d(w3),                                       # fc3 row    (bias folded)
            ],
            out_specs=pl.BlockSpec((1, 1, tile_b), lambda i: (i, 0, 0)),
        ),
        compiler_params=pltpu.CompilerParams(
            # Batch grid is embarrassingly parallel -> shards across the two
            # TensorCores on v7x; weights simply duplicate per core.
            dimension_semantics=("parallel",),
        ),
        cost_estimate=pl.CostEstimate(
            flops=flops, transcendentals=b_pad, bytes_accessed=bytes_accessed),
    )(x_p, w1, w2, w3)

    # (n_tiles, 1, tile_b) row-major == batch order; drop batch padding.
    return out.reshape(b_pad, D_OUT)[:B]


def init_params(key):
    """nn.Linear-style uniform(-1/sqrt(fan_in), 1/sqrt(fan_in)) init (PyTorch)."""
    def linear(k, fan_in, fan_out):
        kw, kb = jax.random.split(k)
        bound = 1.0 / jnp.sqrt(fan_in)
        w = jax.random.uniform(kw, (fan_in, fan_out), jnp.float32, -bound, bound)
        b = jax.random.uniform(kb, (fan_out,), jnp.float32, -bound, bound)
        return w, b

    k1, k2, k3 = jax.random.split(key, 3)
    w1, b1 = linear(k1, D_IN, H1)      # (13, 1000), (1000,)
    w2, b2 = linear(k2, H1, H2)        # (1000, 500), (500,)
    w3, b3 = linear(k3, H2, D_OUT)     # (500, 1),   (1,)
    return (w1, b1, w2, b2, w3, b3)


def pack_params(raw):
    """Pad to lane-aligned dims, fold the biases into the matmuls via
    constant-1 channels, and cast MXU operands to bf16.

    Reserved channels (must never be reused as plain zero padding):
      * x column D_IN (=13) is a ones column (added in net_forward) -> carries b1.
      * h1 column H1P-1 (=1023) is a constant-1 channel             -> carries b2.
      * h2 column H2P-1 (=511)  is a constant-1 channel             -> carries b3.
    """
    w1, b1, w2, b2, w3, b3 = raw

    w1p = jnp.zeros((D_INP, H1P), jnp.float32)
    w1p = w1p.at[:D_IN, :H1].set(w1)
    w1p = w1p.at[D_IN, :H1].set(b1)            # ones column -> fc1 bias
    w1p = w1p.at[D_IN, H1P - 1].set(1.0)       # ones column -> h1 constant-1 channel
    w1p = w1p.astype(jnp.bfloat16)

    w2p = jnp.zeros((H1P, H2P), jnp.float32)
    w2p = w2p.at[:H1, :H2].set(w2)
    w2p = w2p.at[H1P - 1, :H2].set(b2)         # constant-1 channel -> fc2 bias
    w2p = w2p.at[H1P - 1, H2P - 1].set(1.0)    # propagate constant-1 to h2
    w2p = w2p.astype(jnp.bfloat16)

    # fc3 weight row stays f32 (tiny; used on the VPU) -> folded b3 is exact.
    w3p = jnp.zeros((1, H2P), jnp.float32)
    w3p = w3p.at[0, :H2].set(w3[:, 0])
    w3p = w3p.at[0, H2P - 1].set(b3[0])
    return (w1p, w2p, w3p)


def reference_f32(x, raw):
    """Pure-f32 reference (matches the original PyTorch math)."""
    w1, b1, w2, b2, w3, b3 = raw
    h1 = jnp.maximum(x @ w1 + b1, 0.0)
    h2 = jnp.maximum(h1 @ w2 + b2, 0.0)
    return jax.nn.sigmoid(h2 @ w3 + b3)


def reference_bf16(x, packed):
    """Reference that mirrors the kernel's folded-bias bf16/f32 math exactly."""
    w1p, w2p, w3p = packed
    B = x.shape[0]
    xa = jnp.concatenate([x, jnp.ones((B, 1), x.dtype)], axis=1)
    xa = jnp.pad(xa, ((0, 0), (0, D_INP - (D_IN + 1)))).astype(jnp.bfloat16)
    h1 = jnp.dot(xa, w1p, preferred_element_type=jnp.float32)
    h1 = jnp.maximum(h1.astype(jnp.bfloat16), 0)
    h2 = jnp.dot(h1, w2p, preferred_element_type=jnp.float32)
    h2 = jnp.maximum(h2.astype(jnp.bfloat16), 0)
    z = jnp.sum(h2.astype(jnp.float32) * w3p, axis=1, keepdims=True)
    return jax.nn.sigmoid(z)


if __name__ == "__main__":
    key = jax.random.PRNGKey(0)
    kx, kp = jax.random.split(key)

    raw = init_params(kp)
    params = pack_params(raw)

    # Case 1: tiny batch (not a multiple of 128) -> single 128-row tile.
    # Case 2: B=300 -> 128-row tiles, 3 grid steps (exercises the multi-tile path).
    for B in (37, 300):
        x = jax.random.normal(kx, (B, D_IN), dtype=jnp.float32)

        out = net_forward(x, params)
        out = jax.block_until_ready(out)
        assert out.shape == (B, D_OUT)

        # Tight check vs. the kernel-matched bf16 reference; loose check vs.
        # the pure-f32 reference (bf16 operand rounding).
        ref16 = reference_bf16(x, params)
        ref32 = reference_f32(x, raw)
        assert jnp.allclose(out, ref16, atol=5e-4, rtol=0.0), \
            float(jnp.max(jnp.abs(out - ref16)))
        assert jnp.allclose(out, ref32, atol=2e-2, rtol=0.0), \
            float(jnp.max(jnp.abs(out - ref32)))

    print("KERNEL_OK")
</pallas_src>

<mosaic_0001>
module attributes {stable_mosaic.version = 11 : i64} {
  func.func @mlp_kernel(%arg0: i32, %arg1: memref<128x128xf32, #tpu.memory_space<vmem>>, %arg2: memref<128x1024xbf16, #tpu.memory_space<vmem>>, %arg3: memref<1024x512xbf16, #tpu.memory_space<vmem>>, %arg4: memref<1x512xf32, #tpu.memory_space<vmem>>, %arg5: memref<1x1x128xf32, #tpu.memory_space<vmem>>) attributes {dimension_semantics = [#tpu.dimension_semantics<parallel>], iteration_bounds = array<i64: 1>, scalar_prefetch = 0 : i64, scratch_operands = 0 : i64, tpu.core_type = #tpu.core_type<tc>, window_params = [{transform_indices = @transform_0, window_bounds = array<i64: 128, 128>}, {pipeline_mode = #tpu.pipeline_mode<synchronous>, transform_indices = @transform_1, window_bounds = array<i64: 128, 1024>}, {pipeline_mode = #tpu.pipeline_mode<synchronous>, transform_indices = @transform_2, window_bounds = array<i64: 1024, 512>}, {pipeline_mode = #tpu.pipeline_mode<synchronous>, transform_indices = @transform_3, window_bounds = array<i64: 1, 512>}, {transform_indices = @transform_4, window_bounds = array<i64: 1, 1, 128>}]} {
    %c0 = arith.constant 0 : index
    %c0_0 = arith.constant 0 : index
    %0 = vector.load %arg1[%c0, %c0_0] : memref<128x128xf32, #tpu.memory_space<vmem>>, vector<128x128xf32>
    %1 = arith.truncf %0 : vector<128x128xf32> to vector<128x128xbf16>
    %c0_1 = arith.constant 0 : index
    %c0_2 = arith.constant 0 : index
    %2 = vector.load %arg2[%c0_1, %c0_2] : memref<128x1024xbf16, #tpu.memory_space<vmem>>, vector<128x1024xbf16>
    %cst = arith.constant dense<0.000000e+00> : vector<128x1024xf32>
    %3 = tpu.matmul %1, %2, %cst {dimension_numbers = #tpu.dot_dimension_numbers<[1], [0], [0], [1], [0, 0, 1, 1], [], []>} : vector<128x128xbf16>, vector<128x1024xbf16>, vector<128x1024xf32> -> vector<128x1024xf32>
    %4 = arith.truncf %3 : vector<128x1024xf32> to vector<128x1024xbf16>
    %cst_3 = arith.constant 0.000000e+00 : bf16
    %5 = vector.broadcast %cst_3 : bf16 to vector<128x1024xbf16>
    %6 = arith.maximumf %4, %5 : vector<128x1024xbf16>
    %c0_4 = arith.constant 0 : index
    %c0_5 = arith.constant 0 : index
    %7 = vector.load %arg3[%c0_4, %c0_5] : memref<1024x512xbf16, #tpu.memory_space<vmem>>, vector<1024x512xbf16>
    %cst_6 = arith.constant dense<0.000000e+00> : vector<128x512xf32>
    %8 = tpu.matmul %6, %7, %cst_6 {dimension_numbers = #tpu.dot_dimension_numbers<[1], [0], [0], [1], [0, 0, 1, 1], [], []>} : vector<128x1024xbf16>, vector<1024x512xbf16>, vector<128x512xf32> -> vector<128x512xf32>
    %9 = arith.truncf %8 : vector<128x512xf32> to vector<128x512xbf16>
    %cst_7 = arith.constant 0.000000e+00 : bf16
    %10 = vector.broadcast %cst_7 : bf16 to vector<128x512xbf16>
    %11 = arith.maximumf %9, %10 : vector<128x512xbf16>
    %12 = arith.extf %11 : vector<128x512xbf16> to vector<128x512xf32>
    %c0_8 = arith.constant 0 : index
    %c0_9 = arith.constant 0 : index
    %13 = vector.load %arg4[%c0_8, %c0_9] : memref<1x512xf32, #tpu.memory_space<vmem>>, vector<1x512xf32>
    %14 = vector.broadcast %13 : vector<1x512xf32> to vector<128x512xf32>
    %15 = arith.mulf %12, %14 : vector<128x512xf32>
    %cst_10 = arith.constant dense<0.000000e+00> : vector<128xf32>
    %16 = vector.multi_reduction <add>, %15, %cst_10 [1] : vector<128x512xf32> to vector<128xf32>
    %17 = vector.shape_cast %16 : vector<128xf32> to vector<128x1xf32>
    %18 = arith.negf %17 : vector<128x1xf32>
    %19 = math.exp %18 : vector<128x1xf32>
    %cst_11 = arith.constant 1.000000e+00 : f32
    %20 = vector.broadcast %cst_11 : f32 to vector<128x1xf32>
    %21 = arith.addf %20, %19 : vector<128x1xf32>
    %22 = arith.divf %20, %21 : vector<128x1xf32>
    %23 = tpu.transpose %22, [1, 0] : vector<128x1xf32> -> vector<1x128xf32>
    %24 = vector.shape_cast %23 : vector<1x128xf32> to vector<1x1x128xf32>
    %c0_12 = arith.constant 0 : index
    %c0_13 = arith.constant 0 : index
    %c0_14 = arith.constant 0 : index
    %25 = vector.load %arg5[%c0_12, %c0_13, %c0_14] : memref<1x1x128xf32, #tpu.memory_space<vmem>>, vector<1x1x128xf32>
    tpu.vector_store %arg5[%c0_12, %c0_13, %c0_14], %24 {strides = array<i32>} : memref<1x1x128xf32, #tpu.memory_space<vmem>>, vector<1x1x128xf32>,
    return
  }
  func.func @transform_0(%arg0: i32) -> (i32, i32) {
    %c0_i32 = arith.constant 0 : i32
    %c0_i32_0 = arith.constant 0 : i32
    return %arg0, %c0_i32 : i32, i32
  }
  func.func @transform_1(%arg0: i32) -> (i32, i32) {
    %c0_i32 = arith.constant 0 : i32
    %c0_i32_0 = arith.constant 0 : i32
    %c0_i32_1 = arith.constant 0 : i32
    return %c0_i32, %c0_i32_0 : i32, i32
  }
  func.func @transform_2(%arg0: i32) -> (i32, i32) {
    %c0_i32 = arith.constant 0 : i32
    %c0_i32_0 = arith.constant 0 : i32
    %c0_i32_1 = arith.constant 0 : i32
    return %c0_i32, %c0_i32_0 : i32, i32
  }
  func.func @transform_3(%arg0: i32) -> (i32, i32) {
    %c0_i32 = arith.constant 0 : i32
    %c0_i32_0 = arith.constant 0 : i32
    %c0_i32_1 = arith.constant 0 : i32
    return %c0_i32, %c0_i32_0 : i32, i32
  }
  func.func @transform_4(%arg0: i32) -> (i32, i32, i32) {
    %c0_i32 = arith.constant 0 : i32
    %c0_i32_0 = arith.constant 0 : i32
    %c0_i32_1 = arith.constant 0 : i32
    return %arg0, %c0_i32, %c0_i32_0 : i32, i32, i32
  }
}

</mosaic_0001>

<llo_original>
// kernel: net_forward.1
$region0: #{net_forward.1}
  #allocation0 [shape = 'u32[]', space=smem, size = 0x4, offset = 0x4, fixed_abs, tag = 'smem constant byte address 0x4 - core index']
  #allocation1 [shape = 'u32[144,128]{1,0:T(1,128)}', space=vmem, size = 0x12000, scoped, tag = 'internal scratch']
  %s0 = inlined_call_operand.vmem [shape: f32[128,128], index: 0, kind: input, shape index: {}]
  %s1 = inlined_call_operand.hbm [shape: bf16[128,1024], index: 1, kind: input, shape index: {}]
  %s2 = inlined_call_operand.hbm [shape: bf16[1024,512], index: 2, kind: input, shape index: {}]
  %s3 = inlined_call_operand.vmem [shape: f32[1,512], index: 3, kind: input, shape index: {}]
  %s4 = inlined_call_operand.vmem [shape: f32[1,1,128], index: 4, kind: output, shape index: {}]
  %s5 = sld [smem:[#allocation0]]
  $region34: #{net_forward.1} parent=0
    _
  %s7 = ssub.s32 1, %s5
  %s8 = scalar_select 0, %s7, %s5
  $region1: #{net_forward.1} parent=0
    #allocation2 [shape = 'u8[262144]{0}', space=vmem, size = 0x40000, scoped, tag = 'input window, operand 1, single buffered']
    #allocation3 [shape = 's32[1]{0}', space=sflag, size = 0x4, scoped, tag = 'scoped memory for net_forward.1']
    #allocation4 [shape = 'u8[1048576]{0}', space=vmem, size = 0x100000, scoped, tag = 'input window, operand 2, single buffered']
    #allocation5 [shape = 's32[1]{0}', space=sflag, size = 0x4, scoped, tag = 'scoped memory for net_forward.1']
    %9 = vsyncpa [#allocation3], 0
    %10 = vsyncpa [#allocation5], 0
    // Predicated region
    $region2: #{net_forward.1} parent=1 // pred_check
      _
    $region3: #{net_forward.1} parent=1 // pred_check_branch
      %12 = sbr.rel (0) target = $region5
    $region4: #{net_forward.1} parent=1 // pred_region
      _
    $region5: #{net_forward.1} parent=1 // pred_fallthru
      _
    // Predicated region
    $region6: #{net_forward.1} parent=1 // pred_check
      _
    $region7: #{net_forward.1} parent=1 // pred_check_branch
      %14 = sbr.rel (0) target = $region9
    $region8: #{net_forward.1} parent=1 // pred_region
      %s16 = ssub.s32 8192, 8192
      %17 = vsyncadd [#allocation3], %s16
      %s18 = sshll.u32 [#allocation2], 4
      %s19 = int_to_ptr.vmem [resolvable:$true] %s18
      %24 = dma.hbm_to_vmem [thread:$0]  %s1, 8192, %s19, [#allocation3], 512, 512, 32
    $region9: #{net_forward.1} parent=1 // pred_fallthru
      _
    // Predicated region
    $region10: #{net_forward.1} parent=1 // pred_check
      _
    $region11: #{net_forward.1} parent=1 // pred_check_branch
      %26 = sbr.rel (0) target = $region13
    $region12: #{net_forward.1} parent=1 // pred_region
      %s28 = ssub.s32 32768, 32768
      %29 = vsyncadd [#allocation5], %s28
      %s30 = sshll.u32 [#allocation4], 4
      %s31 = int_to_ptr.vmem [resolvable:$true] %s30
      %36 = dma.hbm_to_vmem [thread:$0]  %s2, 32768, %s31, [#allocation5], 256, 256, 16
    $region13: #{net_forward.1} parent=1 // pred_fallthru
      _
    // Predicated region
    $region14: #{net_forward.1} parent=1 // pred_check
      _
    $region15: #{net_forward.1} parent=1 // pred_check_branch
      %38 = sbr.rel (0) target = $region17
    $region16: #{net_forward.1} parent=1 // pred_region
      _
    $region17: #{net_forward.1} parent=1 // pred_fallthru
      _
    // Predicated region
    $region18: #{net_forward.1} parent=1 // pred_check
      _
    $region19: #{net_forward.1} parent=1 // pred_check_branch
      %40 = sbr.rel (0) target = $region21
    $region20: #{net_forward.1} parent=1 // pred_region
      %41 = dma.done [#allocation3], 8192
    $region21: #{net_forward.1} parent=1 // pred_fallthru
      _
    // Predicated region
    $region22: #{net_forward.1} parent=1 // pred_check
      _
    $region23: #{net_forward.1} parent=1 // pred_check_branch
      %43 = sbr.rel (0) target = $region25
    $region24: #{net_forward.1} parent=1 // pred_region
      %44 = dma.done [#allocation5], 32768
    $region25: #{net_forward.1} parent=1 // pred_fallthru
      _
    %v46 = vld [vmem:[%s0] sm:$0xff]
    %v47 = vld [vmem:[%s0 + $0x8] sm:$0xff]
    %v48 = vld [vmem:[%s0 + $0x10] sm:$0xff]
    %v49 = vld [vmem:[%s0 + $0x18] sm:$0xff]
    %v50 = vld [vmem:[%s0 + $0x20] sm:$0xff]
    %v51 = vld [vmem:[%s0 + $0x28] sm:$0xff]
    %v52 = vld [vmem:[%s0 + $0x30] sm:$0xff]
    %v53 = vld [vmem:[%s0 + $0x38] sm:$0xff]
    %v54 = vld [vmem:[%s0 + $0x40] sm:$0xff]
    %v55 = vld [vmem:[%s0 + $0x48] sm:$0xff]
    %v56 = vld [vmem:[%s0 + $0x50] sm:$0xff]
    %v57 = vld [vmem:[%s0 + $0x58] sm:$0xff]
    %v58 = vld [vmem:[%s0 + $0x60] sm:$0xff]
    %v59 = vld [vmem:[%s0 + $0x68] sm:$0xff]
    %v60 = vld [vmem:[%s0 + $0x70] sm:$0xff]
    %v61 = vld [vmem:[%s0 + $0x78] sm:$0xff]
    %v62 = vpack.c.bf16 %v47, %v46
    %v63 = vpack.c.bf16 %v49, %v48
    %v64 = vpack.c.bf16 %v51, %v50
    %v65 = vpack.c.bf16 %v53, %v52
    %v66 = vpack.c.bf16 %v55, %v54
    %v67 = vpack.c.bf16 %v57, %v56
    %v68 = vpack.c.bf16 %v59, %v58
    %v69 = vpack.c.bf16 %v61, %v60
    %v70 = vld [vmem:[#allocation2] sm:$0xff]
    %v71 = vld [vmem:[#allocation2 + $0x8] sm:$0xff]
    %v72 = vld [vmem:[#allocation2 + $0x10] sm:$0xff]
    %v73 = vld [vmem:[#allocation2 + $0x18] sm:$0xff]
    %v74 = vld [vmem:[#allocation2 + $0x20] sm:$0xff]
    %v75 = vld [vmem:[#allocation2 + $0x28] sm:$0xff]
    %v76 = vld [vmem:[#allocation2 + $0x30] sm:$0xff]
    %v77 = vld [vmem:[#allocation2 + $0x38] sm:$0xff]
    %v78 = vld [vmem:[#allocation2 + $0x40] sm:$0xff]
    %v79 = vld [vmem:[#allocation2 + $0x48] sm:$0xff]
    %v80 = vld [vmem:[#allocation2 + $0x50] sm:$0xff]
    %v81 = vld [vmem:[#allocation2 + $0x58] sm:$0xff]
    %v82 = vld [vmem:[#allocation2 + $0x60] sm:$0xff]
    %v83 = vld [vmem:[#allocation2 + $0x68] sm:$0xff]
    %v84 = vld [vmem:[#allocation2 + $0x70] sm:$0xff]
    %v85 = vld [vmem:[#allocation2 + $0x78] sm:$0xff]
    %v86 = vld [vmem:[#allocation2 + $0x80] sm:$0xff]
    %v87 = vld [vmem:[#allocation2 + $0x88] sm:$0xff]
    %v88 = vld [vmem:[#allocation2 + $0x90] sm:$0xff]
    %v89 = vld [vmem:[#allocation2 + $0x98] sm:$0xff]
    %v90 = vld [vmem:[#allocation2 + $0xa0] sm:$0xff]
    %v91 = vld [vmem:[#allocation2 + $0xa8] sm:$0xff]
    %v92 = vld [vmem:[#allocation2 + $0xb0] sm:$0xff]
    %v93 = vld [vmem:[#allocation2 + $0xb8] sm:$0xff]
    %v94 = vld [vmem:[#allocation2 + $0xc0] sm:$0xff]
    %v95 = vld [vmem:[#allocation2 + $0xc8] sm:$0xff]
    %v96 = vld [vmem:[#allocation2 + $0xd0] sm:$0xff]
    %v97 = vld [vmem:[#allocation2 + $0xd8] sm:$0xff]
    %v98 = vld [vmem:[#allocation2 + $0xe0] sm:$0xff]
    %v99 = vld [vmem:[#allocation2 + $0xe8] sm:$0xff]
    %v100 = vld [vmem:[#allocation2 + $0xf0] sm:$0xff]
    %v101 = vld [vmem:[#allocation2 + $0xf8] sm:$0xff]
    %v102 = vld [vmem:[#allocation2 + $0x100] sm:$0xff]
    %v103 = vld [vmem:[#allocation2 + $0x108] sm:$0xff]
    %v104 = vld [vmem:[#allocation2 + $0x110] sm:$0xff]
    %v105 = vld [vmem:[#allocation2 + $0x118] sm:$0xff]
    %v106 = vld [vmem:[#allocation2 + $0x120] sm:$0xff]
    %v107 = vld [vmem:[#allocation2 + $0x128] sm:$0xff]
    %v108 = vld [vmem:[#allocation2 + $0x130] sm:$0xff]
    %v109 = vld [vmem:[#allocation2 + $0x138] sm:$0xff]
    %v110 = vld [vmem:[#allocation2 + $0x140] sm:$0xff]
    %v111 = vld [vmem:[#allocation2 + $0x148] sm:$0xff]
    %v112 = vld [vmem:[#allocation2 + $0x150] sm:$0xff]
    %v113 = vld [vmem:[#allocation2 + $0x158] sm:$0xff]
    %v114 = vld [vmem:[#allocation2 + $0x160] sm:$0xff]
    %v115 = vld [vmem:[#allocation2 + $0x168] sm:$0xff]
    %v116 = vld [vmem:[#allocation2 + $0x170] sm:$0xff]
    %v117 = vld [vmem:[#allocation2 + $0x178] sm:$0xff]
    %v118 = vld [vmem:[#allocation2 + $0x180] sm:$0xff]
    %v119 = vld [vmem:[#allocation2 + $0x188] sm:$0xff]
    %v120 = vld [vmem:[#allocation2 + $0x190] sm:$0xff]
    %v121 = vld [vmem:[#allocation2 + $0x198] sm:$0xff]
    %v122 = vld [vmem:[#allocation2 + $0x1a0] sm:$0xff]
    %v123 = vld [vmem:[#allocation2 + $0x1a8] sm:$0xff]
    %v124 = vld [vmem:[#allocation2 + $0x1b0] sm:$0xff]
    %v125 = vld [vmem:[#allocation2 + $0x1b8] sm:$0xff]
    %v126 = vld [vmem:[#allocation2 + $0x1c0] sm:$0xff]
    %v127 = vld [vmem:[#allocation2 + $0x1c8] sm:$0xff]
    %v128 = vld [vmem:[#allocation2 + $0x1d0] sm:$0xff]
    %v129 = vld [vmem:[#allocation2 + $0x1d8] sm:$0xff]
    %v130 = vld [vmem:[#allocation2 + $0x1e0] sm:$0xff]
    %v131 = vld [vmem:[#allocation2 + $0x1e8] sm:$0xff]
    %v132 = vld [vmem:[#allocation2 + $0x1f0] sm:$0xff]
    %v133 = vld [vmem:[#allocation2 + $0x1f8] sm:$0xff]
    %v198 = vunpack.c.l.b16 %v70
    %v199 = vunpack.c.h.b16 %v70
    %v200 = vunpack.c.l.b16 %v71
    %v201 = vunpack.c.h.b16 %v71
    %v202 = vunpack.c.l.b16 %v72
    %v203 = vunpack.c.h.b16 %v72
    %v204 = vunpack.c.l.b16 %v73
    %v205 = vunpack.c.h.b16 %v73
    %v206 = vunpack.c.l.b16 %v74
    %v207 = vunpack.c.h.b16 %v74
    %v208 = vunpack.c.l.b16 %v75
    %v209 = vunpack.c.h.b16 %v75
    %v210 = vunpack.c.l.b16 %v76
    %v211 = vunpack.c.h.b16 %v76
    %v212 = vunpack.c.l.b16 %v77
    %v213 = vunpack.c.h.b16 %v77
    %v214 = vunpack.c.l.b16 %v78
    %v215 = vunpack.c.h.b16 %v78
    %v216 = vunpack.c.l.b16 %v79
    %v217 = vunpack.c.h.b16 %v79
    %v218 = vunpack.c.l.b16 %v80
    %v219 = vunpack.c.h.b16 %v80
    %v220 = vunpack.c.l.b16 %v81
    %v221 = vunpack.c.h.b16 %v81
    %v222 = vunpack.c.l.b16 %v82
    %v223 = vunpack.c.h.b16 %v82
    %v224 = vunpack.c.l.b16 %v83
    %v225 = vunpack.c.h.b16 %v83
    %v226 = vunpack.c.l.b16 %v84
    %v227 = vunpack.c.h.b16 %v84
    %v228 = vunpack.c.l.b16 %v85
    %v229 = vunpack.c.h.b16 %v85
    %v230 = vunpack.c.l.b16 %v86
    %v231 = vunpack.c.h.b16 %v86
    %v232 = vunpack.c.l.b16 %v87
    %v233 = vunpack.c.h.b16 %v87
    %v234 = vunpack.c.l.b16 %v88
    %v235 = vunpack.c.h.b16 %v88
    %v236 = vunpack.c.l.b16 %v89
    %v237 = vunpack.c.h.b16 %v89
    %v238 = vunpack.c.l.b16 %v90
    %v239 = vunpack.c.h.b16 %v90
    %v240 = vunpack.c.l.b16 %v91
    %v241 = vunpack.c.h.b16 %v91
    %v242 = vunpack.c.l.b16 %v92
    %v243 = vunpack.c.h.b16 %v92
    %v244 = vunpack.c.l.b16 %v93
    %v245 = vunpack.c.h.b16 %v93
    %v246 = vunpack.c.l.b16 %v94
    %v247 = vunpack.c.h.b16 %v94
    %v248 = vunpack.c.l.b16 %v95
    %v249 = vunpack.c.h.b16 %v95
    %v250 = vunpack.c.l.b16 %v96
    %v251 = vunpack.c.h.b16 %v96
    %v252 = vunpack.c.l.b16 %v97
    %v253 = vunpack.c.h.b16 %v97
    %v254 = vunpack.c.l.b16 %v98
    %v255 = vunpack.c.h.b16 %v98
    %v256 = vunpack.c.l.b16 %v99
    %v257 = vunpack.c.h.b16 %v99
    %v258 = vunpack.c.l.b16 %v100
    %v259 = vunpack.c.h.b16 %v100
    %v260 = vunpack.c.l.b16 %v101
    %v261 = vunpack.c.h.b16 %v101
    %v262 = vunpack.c.l.b16 %v102
    %v263 = vunpack.c.h.b16 %v102
    %v264 = vunpack.c.l.b16 %v103
    %v265 = vunpack.c.h.b16 %v103
    %v266 = vunpack.c.l.b16 %v104
    %v267 = vunpack.c.h.b16 %v104
    %v268 = vunpack.c.l.b16 %v105
    %v269 = vunpack.c.h.b16 %v105
    %v270 = vunpack.c.l.b16 %v106
    %v271 = vunpack.c.h.b16 %v106
    %v272 = vunpack.c.l.b16 %v107
    %v273 = vunpack.c.h.b16 %v107
    %v274 = vunpack.c.l.b16 %v108
    %v275 = vunpack.c.h.b16 %v108
    %v276 = vunpack.c.l.b16 %v109
    %v277 = vunpack.c.h.b16 %v109
    %v278 = vunpack.c.l.b16 %v110
    %v279 = vunpack.c.h.b16 %v110
    %v280 = vunpack.c.l.b16 %v111
    %v281 = vunpack.c.h.b16 %v111
    %v282 = vunpack.c.l.b16 %v112
    %v283 = vunpack.c.h.b16 %v112
    %v284 = vunpack.c.l.b16 %v113
    %v285 = vunpack.c.h.b16 %v113
    %v286 = vunpack.c.l.b16 %v114
    %v287 = vunpack.c.h.b16 %v114
    %v288 = vunpack.c.l.b16 %v115
    %v289 = vunpack.c.h.b16 %v115
    %v290 = vunpack.c.l.b16 %v116
    %v291 = vunpack.c.h.b16 %v116
    %v292 = vunpack.c.l.b16 %v117
    %v293 = vunpack.c.h.b16 %v117
    %v294 = vunpack.c.l.b16 %v118
    %v295 = vunpack.c.h.b16 %v118
    %v296 = vunpack.c.l.b16 %v119
    %v297 = vunpack.c.h.b16 %v119
    %v298 = vunpack.c.l.b16 %v120
    %v299 = vunpack.c.h.b16 %v120
    %v300 = vunpack.c.l.b16 %v121
    %v301 = vunpack.c.h.b16 %v121
    %v302 = vunpack.c.l.b16 %v122
    %v303 = vunpack.c.h.b16 %v122
    %v304 = vunpack.c.l.b16 %v123
    %v305 = vunpack.c.h.b16 %v123
    %v306 = vunpack.c.l.b16 %v124
    %v307 = vunpack.c.h.b16 %v124
    %v308 = vunpack.c.l.b16 %v125
    %v309 = vunpack.c.h.b16 %v125
    %v310 = vunpack.c.l.b16 %v126
    %v311 = vunpack.c.h.b16 %v126
    %v312 = vunpack.c.l.b16 %v127
    %v313 = vunpack.c.h.b16 %v127
    %v314 = vunpack.c.l.b16 %v128
    %v315 = vunpack.c.h.b16 %v128
    %v316 = vunpack.c.l.b16 %v129
    %v317 = vunpack.c.h.b16 %v129
    %v318 = vunpack.c.l.b16 %v130
    %v319 = vunpack.c.h.b16 %v130
    %v320 = vunpack.c.l.b16 %v131
    %v321 = vunpack.c.h.b16 %v131
    %v322 = vunpack.c.l.b16 %v132
    %v323 = vunpack.c.h.b16 %v132
    %v324 = vunpack.c.l.b16 %v133
    %v325 = vunpack.c.h.b16 %v133
    %v326 = vpack.c.b16 %v206, %v198
    %v327 = vpack.c.b16 %v207, %v199
    %v328 = vpack.c.b16 %v208, %v200
    %v329 = vpack.c.b16 %v209, %v201
    %v330 = vpack.c.b16 %v210, %v202
    %v331 = vpack.c.b16 %v211, %v203
    %v332 = vpack.c.b16 %v212, %v204
    %v333 = vpack.c.b16 %v213, %v205
    %v334 = vpack.c.b16 %v222, %v214
    %v335 = vpack.c.b16 %v223, %v215
    %v336 = vpack.c.b16 %v224, %v216
    %v337 = vpack.c.b16 %v225, %v217
    %v338 = vpack.c.b16 %v226, %v218
    %v339 = vpack.c.b16 %v227, %v219
    %v340 = vpack.c.b16 %v228, %v220
    %v341 = vpack.c.b16 %v229, %v221
    %v342 = vpack.c.b16 %v238, %v230
    %v343 = vpack.c.b16 %v239, %v231
    %v344 = vpack.c.b16 %v240, %v232
    %v345 = vpack.c.b16 %v241, %v233
    %v346 = vpack.c.b16 %v242, %v234
    %v347 = vpack.c.b16 %v243, %v235
    %v348 = vpack.c.b16 %v244, %v236
    %v349 = vpack.c.b16 %v245, %v237
    %v350 = vpack.c.b16 %v254, %v246
    %v351 = vpack.c.b16 %v255, %v247
    %v352 = vpack.c.b16 %v256, %v248
    %v353 = vpack.c.b16 %v257, %v249
    %v354 = vpack.c.b16 %v258, %v250
    %v355 = vpack.c.b16 %v259, %v251
    %v356 = vpack.c.b16 %v260, %v252
    %v357 = vpack.c.b16 %v261, %v253
    %v358 = vpack.c.b16 %v270, %v262
    %v359 = vpack.c.b16 %v271, %v263
    %v360 = vpack.c.b16 %v272, %v264
    %v361 = vpack.c.b16 %v273, %v265
    %v362 = vpack.c.b16 %v274, %v266
    %v363 = vpack.c.b16 %v275, %v267
    %v364 = vpack.c.b16 %v276, %v268
    %v365 = vpack.c.b16 %v277, %v269
    %v366 = vpack.c.b16 %v286, %v278
    %v367 = vpack.c.b16 %v287, %v279
    %v368 = vpack.c.b16 %v288, %v280
    %v369 = vpack.c.b16 %v289, %v281
    %v370 = vpack.c.b16 %v290, %v282
    %v371 = vpack.c.b16 %v291, %v283
    %v372 = vpack.c.b16 %v292, %v284
    %v373 = vpack.c.b16 %v293, %v285
    %v374 = vpack.c.b16 %v302, %v294
    %v375 = vpack.c.b16 %v303, %v295
    %v376 = vpack.c.b16 %v304, %v296
    %v377 = vpack.c.b16 %v305, %v297
    %v378 = vpack.c.b16 %v306, %v298
    %v379 = vpack.c.b16 %v307, %v299
    %v380 = vpack.c.b16 %v308, %v300
    %v381 = vpack.c.b16 %v309, %v301
    %v382 = vpack.c.b16 %v318, %v310
    %v383 = vpack.c.b16 %v319, %v311
    %v384 = vpack.c.b16 %v320, %v312
    %v385 = vpack.c.b16 %v321, %v313
    %v386 = vpack.c.b16 %v322, %v314
    %v387 = vpack.c.b16 %v323, %v315
    %v388 = vpack.c.b16 %v324, %v316
    %v389 = vpack.c.b16 %v325, %v317
    %454 = vmatprep.subr.bf16.mxu0 %v327
    %455 = vmatpush1.bf16.msra.mxu0 %v326
    %456 = vmatprep.subr.bf16.mxu0 %v335
    %457 = vmatpush1.bf16.msra.mxu0 %v334
    %458 = vmatprep.subr.bf16.mxu0 %v343
    %459 = vmatpush1.bf16.msra.mxu0 %v342
    %460 = vmatprep.subr.bf16.mxu0 %v351
    %461 = vmatpush1.bf16.msra.mxu0 %v350
    %462 = vmatprep.subr.bf16.mxu0 %v359
    %463 = vmatpush1.bf16.msra.mxu0 %v358
    %464 = vmatprep.subr.bf16.mxu0 %v367
    %465 = vmatpush1.bf16.msra.mxu0 %v366
    %466 = vmatprep.subr.bf16.mxu0 %v375
    %467 = vmatpush1.bf16.msra.mxu0 %v374
    %468 = vmatprep.subr.bf16.mxu0 %v383
    %469 = vmatpush1.bf16.msra.mxu0 %v382
    %470 = vmatprep.subr.bf16.mxu0 0
    %471 = vmatpush1.bf16.msra.mxu0 0
    %472 = vmatprep.subr.bf16.mxu0 0
    %473 = vmatpush1.bf16.msra.mxu0 0
    %474 = vmatprep.subr.bf16.mxu0 0
    %475 = vmatpush1.bf16.msra.mxu0 0
    %476 = vmatprep.subr.bf16.mxu0 0
    %477 = vmatpush1.bf16.msra.mxu0 0
    %478 = vmatprep.subr.bf16.mxu0 0
    %479 = vmatpush1.bf16.msra.mxu0 0
    %480 = vmatprep.subr.bf16.mxu0 0
    %481 = vmatpush1.bf16.msra.mxu0 0
    %482 = vmatprep.subr.bf16.mxu0 0
    %483 = vmatpush1.bf16.msra.mxu0 0
    %484 = vmatprep.subr.bf16.mxu0 0
    %485 = vmatpush1.bf16.msra.mxu0 0
    %486 = vmatprep.mubr.bf16.mxu0 0
    %487 = vmatmul.mubr.bf16.gmra.mrb[0].mxu0 %v62
    %v488 = vpop.f32.mrb[0].mxu0
    %v489 = vadd.f32 0.0, %v488
    %v490 = vpop.f32.mrb[0].mxu0
    %v491 = vadd.f32 0.0, %v490
    %v492 = vpop.f32.mrb[0].mxu0
    %v493 = vadd.f32 0.0, %v492
    %v494 = vpop.f32.mrb[0].mxu0
    %v495 = vadd.f32 0.0, %v494
    %496 = vmatprep.mubr.bf16.mxu0 0
    %497 = vmatmul.mubr.bf16.gmra.mrb[0].mxu0 %v63
    %v498 = vpop.f32.mrb[0].mxu0
    %v499 = vadd.f32 0.0, %v498
    %v500 = vpop.f32.mrb[0].mxu0
    %v501 = vadd.f32 0.0, %v500
    %v502 = vpop.f32.mrb[0].mxu0
    %v503 = vadd.f32 0.0, %v502
    %v504 = vpop.f32.mrb[0].mxu0
    %v505 = vadd.f32 0.0, %v504
    %506 = vmatprep.mubr.bf16.mxu0 0
    %507 = vmatmul.mubr.bf16.gmra.mrb[0].mxu0 %v64
    %v508 = vpop.f32.mrb[0].mxu0
    %v509 = vadd.f32 0.0, %v508
    %v510 = vpop.f32.mrb[0].mxu0
    %v511 = vadd.f32 0.0, %v510
    %v512 = vpop.f32.mrb[0].mxu0
    %v513 = vadd.f32 0.0, %v512
    %v514 = vpop.f32.mrb[0].mxu0
    %v515 = vadd.f32 0.0, %v514
    %516 = vmatprep.mubr.bf16.mxu0 0
    %517 = vmatmul.mubr.bf16.gmra.mrb[0].mxu0 %v65
    %v518 = vpop.f32.mrb[0].mxu0
    %v519 = vadd.f32 0.0, %v518
    %v520 = vpop.f32.mrb[0].mxu0
    %v521 = vadd.f32 0.0, %v520
    %v522 = vpop.f32.mrb[0].mxu0
    %v523 = vadd.f32 0.0, %v522
    %v524 = vpop.f32.mrb[0].mxu0
    %v525 = vadd.f32 0.0, %v524
    %526 = vmatprep.mubr.bf16.mxu0 0
    %527 = vmatmul.mubr.bf16.gmra.mrb[0].mxu0 %v66
    %v528 = vpop.f32.mrb[0].mxu0
    %v529 = vadd.f32 0.0, %v528
    %v530 = vpop.f32.mrb[0].mxu0
    %v531 = vadd.f32 0.0, %v530
    %v532 = vpop.f32.mrb[0].mxu0
    %v533 = vadd.f32 0.0, %v532
    %v534 = vpop.f32.mrb[0].mxu0
    %v535 = vadd.f32 0.0, %v534
    %536 = vmatprep.mubr.bf16.mxu0 0
    %537 = vmatmul.mubr.bf16.gmra.mrb[0].mxu0 %v67
    %v538 = vpop.f32.mrb[0].mxu0
    %v539 = vadd.f32 0.0, %v538
    %v540 = vpop.f32.mrb[0].mxu0
    %v541 = vadd.f32 0.0, %v540
    %v542 = vpop.f32.mrb[0].mxu0
    %v543 = vadd.f32 0.0, %v542
    %v544 = vpop.f32.mrb[0].mxu0
    %v545 = vadd.f32 0.0, %v544
    %546 = vmatprep.mubr.bf16.mxu0 0
    %547 = vmatmul.mubr.bf16.gmra.mrb[0].mxu0 %v68
    %v548 = vpop.f32.mrb[0].mxu0
    %v549 = vadd.f32 0.0, %v548
    %v550 = vpop.f32.mrb[0].mxu0
    %v551 = vadd.f32 0.0, %v550
    %v552 = vpop.f32.mrb[0].mxu0
    %v553 = vadd.f32 0.0, %v552
    %v554 = vpop.f32.mrb[0].mxu0
    %v555 = vadd.f32 0.0, %v554
    %556 = vmatprep.mubr.bf16.mxu0 0
    %557 = vmatmul.mubr.bf16.gmra.mrb[0].mxu0 %v69
    %v558 = vpop.f32.mrb[0].mxu0
    %v559 = vadd.f32 0.0, %v558
    %v560 = vpop.f32.mrb[0].mxu0
    %v561 = vadd.f32 0.0, %v560
    %v562 = vpop.f32.mrb[0].mxu0
    %v563 = vadd.f32 0.0, %v562
    %v564 = vpop.f32.mrb[0].mxu0
    %v565 = vadd.f32 0.0, %v564
    %566 = vdwg.mxu0
    %567 = vmatprep.subr.bf16.mxu0 %v329
    %568 = vmatpush1.bf16.msra.mxu0 %v328
    %569 = vmatprep.subr.bf16.mxu0 %v337
    %570 = vmatpush1.bf16.msra.mxu0 %v336
    %571 = vmatprep.subr.bf16.mxu0 %v345
    %572 = vmatpush1.bf16.msra.mxu0 %v344
    %573 = vmatprep.subr.bf16.mxu0 %v353
    %574 = vmatpush1.bf16.msra.mxu0 %v352
    %575 = vmatprep.subr.bf16.mxu0 %v361
    %576 = vmatpush1.bf16.msra.mxu0 %v360
    %577 = vmatprep.subr.bf16.mxu0 %v369
    %578 = vmatpush1.bf16.msra.mxu0 %v368
    %579 = vmatprep.subr.bf16.mxu0 %v377
    %580 = vmatpush1.bf16.msra.mxu0 %v376
    %581 = vmatprep.subr.bf16.mxu0 %v385
    %582 = vmatpush1.bf16.msra.mxu0 %v384
    %583 = vmatprep.subr.bf16.mxu0 0
    %584 = vmatpush1.bf16.msra.mxu0 0
    %585 = vmatprep.subr.bf16.mxu0 0
    %586 = vmatpush1.bf16.msra.mxu0 0
    %587 = vmatprep.subr.bf16.mxu0 0
    %588 = vmatpush1.bf16.msra.mxu0 0
    %589 = vmatprep.subr.bf16.mxu0 0
    %590 = vmatpush1.bf16.msra.mxu0 0
    %591 = vmatprep.subr.bf16.mxu0 0
    %592 = vmatpush1.bf16.msra.mxu0 0
    %593 = vmatprep.subr.bf16.mxu0 0
    %594 = vmatpush1.bf16.msra.mxu0 0
    %595 = vmatprep.subr.bf16.mxu0 0
    %596 = vmatpush1.bf16.msra.mxu0 0
    %597 = vmatprep.subr.bf16.mxu0 0
    %598 = vmatpush1.bf16.msra.mxu0 0
    %599 = vmatprep.mubr.bf16.mxu0 0
    %600 = vmatmul.mubr.bf16.gmra.mrb[0].mxu0 %v62
    %v601 = vpop.f32.mrb[0].mxu0
    %v602 = vadd.f32 0.0, %v601
    %v603 = vpop.f32.mrb[0].mxu0
    %v604 = vadd.f32 0.0, %v603
    %v605 = vpop.f32.mrb[0].mxu0
    %v606 = vadd.f32 0.0, %v605
    %v607 = vpop.f32.mrb[0].mxu0
    %v608 = vadd.f32 0.0, %v607
    %609 = vmatprep.mubr.bf16.mxu0 0
    %610 = vmatmul.mubr.bf16.gmra.mrb[0].mxu0 %v63
    %v611 = vpop.f32.mrb[0].mxu0
    %v612 = vadd.f32 0.0, %v611
    %v613 = vpop.f32.mrb[0].mxu0
    %v614 = vadd.f32 0.0, %v613
    %v615 = vpop.f32.mrb[0].mxu0
    %v616 = vadd.f32 0.0, %v615
    %v617 = vpop.f32.mrb[0].mxu0
    %v618 = vadd.f32 0.0, %v617
    %619 = vmatprep.mubr.bf16.mxu0 0
    %620 = vmatmul.mubr.bf16.gmra.mrb[0].mxu0 %v64
    %v621 = vpop.f32.mrb[0].mxu0
    %v622 = vadd.f32 0.0, %v621
    %v623 = vpop.f32.mrb[0].mxu0
    %v624 = vadd.f32 0.0, %v623
    %v625 = vpop.f32.mrb[0].mxu0
    %v626 = vadd.f32 0.0, %v625
    %v627 = vpop.f32.mrb[0].mxu0
    %v628 = vadd.f32 0.0, %v627
    %629 = vmatprep.mubr.bf16.mxu0 0
    %630 = vmatmul.mubr.bf16.gmra.mrb[0].mxu0 %v65
    %v631 = vpop.f32.mrb[0].mxu0
    %v632 = vadd.f32 0.0, %v631
    %v633 = vpop.f32.mrb[0].mxu0
    %v634 = vadd.f32 0.0, %v633
    %v635 = vpop.f32.mrb[0].mxu0
    %v636 = vadd.f32 0.0, %v635
    %v637 = vpop.f32.mrb[0].mxu0
    %v638 = vadd.f32 0.0, %v637
    %639 = vmatprep.mubr.bf16.mxu0 0
    %640 = vmatmul.mubr.bf16.gmra.mrb[0].mxu0 %v66
    %v641 = vpop.f32.mrb[0].mxu0
    %v642 = vadd.f32 0.0, %v641
    %v643 = vpop.f32.mrb[0].mxu0
    %v644 = vadd.f32 0.0, %v643
    %v645 = vpop.f32.mrb[0].mxu0
    %v646 = vadd.f32 0.0, %v645
    %v647 = vpop.f32.mrb[0].mxu0
    %v648 = vadd.f32 0.0, %v647
    %649 = vmatprep.mubr.bf16.mxu0 0
    %650 = vmatmul.mubr.bf16.gmra.mrb[0].mxu0 %v67
    %v651 = vpop.f32.mrb[0].mxu0
    %v652 = vadd.f32 0.0, %v651
    %v653 = vpop.f32.mrb[0].mxu0
    %v654 = vadd.f32 0.0, %v653
    %v655 = vpop.f32.mrb[0].mxu0
    %v656 = vadd.f32 0.0, %v655
    %v657 = vpop.f32.mrb[0].mxu0
    %v658 = vadd.f32 0.0, %v657
    %659 = vmatprep.mubr.bf16.mxu0 0
    %660 = vmatmul.mubr.bf16.gmra.mrb[0].mxu0 %v68
    %v661 = vpop.f32.mrb[0].mxu0
    %v662 = vadd.f32 0.0, %v661
    %v663 = vpop.f32.mrb[0].mxu0
    %v664 = vadd.f32 0.0, %v663
    %v665 = vpop.f32.mrb[0].mxu0
    %v666 = vadd.f32 0.0, %v665
    %v667 = vpop.f32.mrb[0].mxu0
    %v668 = vadd.f32 0.0, %v667
    %669 = vmatprep.mubr.bf16.mxu0 0
    %670 = vmatmul.mubr.bf16.gmra.mrb[0].mxu0 %v69
    %v671 = vpop.f32.mrb[0].mxu0
    %v672 = vadd.f32 0.0, %v671
    %v673 = vpop.f32.mrb[0].mxu0
    %v674 = vadd.f32 0.0, %v673
    %v675 = vpop.f32.mrb[0].mxu0
    %v676 = vadd.f32 0.0, %v675
    %v677 = vpop.f32.mrb[0].mxu0
    %v678 = vadd.f32 0.0, %v677
    %679 = vdwg.mxu0
    %680 = vmatprep.subr.bf16.mxu0 %v331
    %681 = vmatpush1.bf16.msra.mxu0 %v330
    %682 = vmatprep.subr.bf16.mxu0 %v339
    %683 = vmatpush1.bf16.msra.mxu0 %v338
    %684 = vmatprep.subr.bf16.mxu0 %v347
    %685 = vmatpush1.bf16.msra.mxu0 %v346
    %686 = vmatprep.subr.bf16.mxu0 %v355
    %687 = vmatpush1.bf16.msra.mxu0 %v354
    %688 = vmatprep.subr.bf16.mxu0 %v363
    %689 = vmatpush1.bf16.msra.mxu0 %v362
    %690 = vmatprep.subr.bf16.mxu0 %v371
    %691 = vmatpush1.bf16.msra.mxu0 %v370
    %692 = vmatprep.subr.bf16.mxu0 %v379
    %693 = vmatpush1.bf16.msra.mxu0 %v378
    %694 = vmatprep.subr.bf16.mxu0 %v387
    %695 = vmatpush1.bf16.msra.mxu0 %v386
    %696 = vmatprep.subr.bf16.mxu0 0
    %697 = vmatpush1.bf16.msra.mxu0 0
    %698 = vmatprep.subr.bf16.mxu0 0
    %699 = vmatpush1.bf16.msra.mxu0 0
    %700 = vmatprep.subr.bf16.mxu0 0
    %701 = vmatpush1.bf16.msra.mxu0 0
    %702 = vmatprep.subr.bf16.mxu0 0
    %703 = vmatpush1.bf16.msra.mxu0 0
    %704 = vmatprep.subr.bf16.mxu0 0
    %705 = vmatpush1.bf16.msra.mxu0 0
    %706 = vmatprep.subr.bf16.mxu0 0
    %707 = vmatpush1.bf16.msra.mxu0 0
    %708 = vmatprep.subr.bf16.mxu0 0
    %709 = vmatpush1.bf16.msra.mxu0 0
    %710 = vmatprep.subr.bf16.mxu0 0
    %711 = vmatpush1.bf16.msra.mxu0 0
    %712 = vmatprep.mubr.bf16.mxu0 0
    %713 = vmatmul.mubr.bf16.gmra.mrb[0].mxu0 %v62
    %v714 = vpop.f32.mrb[0].mxu0
    %v715 = vadd.f32 0.0, %v714
    %v716 = vpop.f32.mrb[0].mxu0
    %v717 = vadd.f32 0.0, %v716
    %v718 = vpop.f32.mrb[0].mxu0
    %v719 = vadd.f32 0.0, %v718
    %v720 = vpop.f32.mrb[0].mxu0
    %v721 = vadd.f32 0.0, %v720
    %722 = vmatprep.mubr.bf16.mxu0 0
    %723 = vmatmul.mubr.bf16.gmra.mrb[0].mxu0 %v63
    %v724 = vpop.f32.mrb[0].mxu0
    %v725 = vadd.f32 0.0, %v724
    %v726 = vpop.f32.mrb[0].mxu0
    %v727 = vadd.f32 0.0, %v726
    %v728 = vpop.f32.mrb[0].mxu0
    %v729 = vadd.f32 0.0, %v728
    %v730 = vpop.f32.mrb[0].mxu0
    %v731 = vadd.f32 0.0, %v730
    %732 = vmatprep.mubr.bf16.mxu0 0
    %733 = vmatmul.mubr.bf16.gmra.mrb[0].mxu0 %v64
    %v734 = vpop.f32.mrb[0].mxu0
    %v735 = vadd.f32 0.0, %v734
    %v736 = vpop.f32.mrb[0].mxu0
    %v737 = vadd.f32 0.0, %v736
    %v738 = vpop.f32.mrb[0].mxu0
    %v739 = vadd.f32 0.0, %v738
    %v740 = vpop.f32.mrb[0].mxu0
    %v741 = vadd.f32 0.0, %v740
    %742 = vmatprep.mubr.bf16.mxu0 0
    %743 = vmatmul.mubr.bf16.gmra.mrb[0].mxu0 %v65
    %v744 = vpop.f32.mrb[0].mxu0
    %v745 = vadd.f32 0.0, %v744
    %v746 = vpop.f32.mrb[0].mxu0
    %v747 = vadd.f32 0.0, %v746
    %v748 = vpop.f32.mrb[0].mxu0
    %v749 = vadd.f32 0.0, %v748
    %v750 = vpop.f32.mrb[0].mxu0
    %v751 = vadd.f32 0.0, %v750
    %752 = vmatprep.mubr.bf16.mxu0 0
    %753 = vmatmul.mubr.bf16.gmra.mrb[0].mxu0 %v66
    %v754 = vpop.f32.mrb[0].mxu0
    %v755 = vadd.f32 0.0, %v754
    %v756 = vpop.f32.mrb[0].mxu0
    %v757 = vadd.f32 0.0, %v756
    %v758 = vpop.f32.mrb[0].mxu0
    %v759 = vadd.f32 0.0, %v758
    %v760 = vpop.f32.mrb[0].mxu0
    %v761 = vadd.f32 0.0, %v760
    %762 = vmatprep.mubr.bf16.mxu0 0
    %763 = vmatmul.mubr.bf16.gmra.mrb[0].mxu0 %v67
    %v764 = vpop.f32.mrb[0].mxu0
    %v765 = vadd.f32 0.0, %v764
    %v766 = vpop.f32.mrb[0].mxu0
    %v767 = vadd.f32 0.0, %v766
    %v768 = vpop.f32.mrb[0].mxu0
    %v769 = vadd.f32 0.0, %v768
    %v770 = vpop.f32.mrb[0].mxu0
    %v771 = vadd.f32 0.0, %v770
    %772 = vmatprep.mubr.bf16.mxu0 0
    %773 = vmatmul.mubr.bf16.gmra.mrb[0].mxu0 %v68
    %v774 = vpop.f32.mrb[0].mxu0
    %v775 = vadd.f32 0.0, %v774
    %v776 = vpop.f32.mrb[0].mxu0
    %v777 = vadd.f32 0.0, %v776
    %v778 = vpop.f32.mrb[0].mxu0
    %v779 = vadd.f32 0.0, %v778
    %v780 = vpop.f32.mrb[0].mxu0
    %v781 = vadd.f32 0.0, %v780
    %782 = vmatprep.mubr.bf16.mxu0 0
    %783 = vmatmul.mubr.bf16.gmra.mrb[0].mxu0 %v69
    %v784 = vpop.f32.mrb[0].mxu0
    %v785 = vadd.f32 0.0, %v784
    %v786 = vpop.f32.mrb[0].mxu0
    %v787 = vadd.f32 0.0, %v786
    %v788 = vpop.f32.mrb[0].mxu0
    %v789 = vadd.f32 0.0, %v788
    %v790 = vpop.f32.mrb[0].mxu0
    %v791 = vadd.f32 0.0, %v790
    %792 = vdwg.mxu0
    %793 = vmatprep.subr.bf16.mxu0 %v333
    %794 = vmatpush1.bf16.msra.mxu0 %v332
    %795 = vmatprep.subr.bf16.mxu0 %v341
    %796 = vmatpush1.bf16.msra.mxu0 %v340
    %797 = vmatprep.subr.bf16.mxu0 %v349
    %798 = vmatpush1.bf16.msra.mxu0 %v348
    %799 = vmatprep.subr.bf16.mxu0 %v357
    %800 = vmatpush1.bf16.msra.mxu0 %v356
    %801 = vmatprep.subr.bf16.mxu0 %v365
    %802 = vmatpush1.bf16.msra.mxu0 %v364
    %803 = vmatprep.subr.bf16.mxu0 %v373
    %804 = vmatpush1.bf16.msra.mxu0 %v372
    %805 = vmatprep.subr.bf16.mxu0 %v381
    %806 = vmatpush1.bf16.msra.mxu0 %v380
    %807 = vmatprep.subr.bf16.mxu0 %v389
    %808 = vmatpush1.bf16.msra.mxu0 %v388
    %809 = vmatprep.subr.bf16.mxu0 0
    %810 = vmatpush1.bf16.msra.mxu0 0
    %811 = vmatprep.subr.bf16.mxu0 0
    %812 = vmatpush1.bf16.msra.mxu0 0
    %813 = vmatprep.subr.bf16.mxu0 0
    %814 = vmatpush1.bf16.msra.mxu0 0
    %815 = vmatprep.subr.bf16.mxu0 0
    %816 = vmatpush1.bf16.msra.mxu0 0
    %817 = vmatprep.subr.bf16.mxu0 0
    %818 = vmatpush1.bf16.msra.mxu0 0
    %819 = vmatprep.subr.bf16.mxu0 0
    %820 = vmatpush1.bf16.msra.mxu0 0
    %821 = vmatprep.subr.bf16.mxu0 0
    %822 = vmatpush1.bf16.msra.mxu0 0
    %823 = vmatprep.subr.bf16.mxu0 0
    %824 = vmatpush1.bf16.msra.mxu0 0
    %825 = vmatprep.mubr.bf16.mxu0 0
    %826 = vmatmul.mubr.bf16.gmra.mrb[0].mxu0 %v62
    %v827 = vpop.f32.mrb[0].mxu0
    %v828 = vadd.f32 0.0, %v827
    %v829 = vpop.f32.mrb[0].mxu0
    %v830 = vadd.f32 0.0, %v829
    %v831 = vpop.f32.mrb[0].mxu0
    %v832 = vadd.f32 0.0, %v831
    %v833 = vpop.f32.mrb[0].mxu0
    %v834 = vadd.f32 0.0, %v833
    %835 = vmatprep.mubr.bf16.mxu0 0
    %836 = vmatmul.mubr.bf16.gmra.mrb[0].mxu0 %v63
    %v837 = vpop.f32.mrb[0].mxu0
    %v838 = vadd.f32 0.0, %v837
    %v839 = vpop.f32.mrb[0].mxu0
    %v840 = vadd.f32 0.0, %v839
    %v841 = vpop.f32.mrb[0].mxu0
    %v842 = vadd.f32 0.0, %v841
    %v843 = vpop.f32.mrb[0].mxu0
    %v844 = vadd.f32 0.0, %v843
    %845 = vmatprep.mubr.bf16.mxu0 0
    %846 = vmatmul.mubr.bf16.gmra.mrb[0].mxu0 %v64
    %v847 = vpop.f32.mrb[0].mxu0
    %v848 = vadd.f32 0.0, %v847
    %v849 = vpop.f32.mrb[0].mxu0
    %v850 = vadd.f32 0.0, %v849
    %v851 = vpop.f32.mrb[0].mxu0
    %v852 = vadd.f32 0.0, %v851
    %v853 = vpop.f32.mrb[0].mxu0
    %v854 = vadd.f32 0.0, %v853
    %855 = vmatprep.mubr.bf16.mxu0 0
    %856 = vmatmul.mubr.bf16.gmra.mrb[0].mxu0 %v65
    %v857 = vpop.f32.mrb[0].mxu0
    %v858 = vadd.f32 0.0, %v857
    %v859 = vpop.f32.mrb[0].mxu0
    %v860 = vadd.f32 0.0, %v859
    %v861 = vpop.f32.mrb[0].mxu0
    %v862 = vadd.f32 0.0, %v861
    %v863 = vpop.f32.mrb[0].mxu0
    %v864 = vadd.f32 0.0, %v863
    %865 = vmatprep.mubr.bf16.mxu0 0
    %866 = vmatmul.mubr.bf16.gmra.mrb[0].mxu0 %v66
    %v867 = vpop.f32.mrb[0].mxu0
    %v868 = vadd.f32 0.0, %v867
    %v869 = vpop.f32.mrb[0].mxu0
    %v870 = vadd.f32 0.0, %v869
    %v871 = vpop.f32.mrb[0].mxu0
    %v872 = vadd.f32 0.0, %v871
    %v873 = vpop.f32.mrb[0].mxu0
    %v874 = vadd.f32 0.0, %v873
    %875 = vmatprep.mubr.bf16.mxu0 0
    %876 = vmatmul.mubr.bf16.gmra.mrb[0].mxu0 %v67
    %v877 = vpop.f32.mrb[0].mxu0
    %v878 = vadd.f32 0.0, %v877
    %v879 = vpop.f32.mrb[0].mxu0
    %v880 = vadd.f32 0.0, %v879
    %v881 = vpop.f32.mrb[0].mxu0
    %v882 = vadd.f32 0.0, %v881
    %v883 = vpop.f32.mrb[0].mxu0
    %v884 = vadd.f32 0.0, %v883
    %885 = vmatprep.mubr.bf16.mxu0 0
    %886 = vmatmul.mubr.bf16.gmra.mrb[0].mxu0 %v68
    %v887 = vpop.f32.mrb[0].mxu0
    %v888 = vadd.f32 0.0, %v887
    %v889 = vpop.f32.mrb[0].mxu0
    %v890 = vadd.f32 0.0, %v889
    %v891 = vpop.f32.mrb[0].mxu0
    %v892 = vadd.f32 0.0, %v891
    %v893 = vpop.f32.mrb[0].mxu0
    %v894 = vadd.f32 0.0, %v893
    %895 = vmatprep.mubr.bf16.mxu0 0
    %896 = vmatmul.mubr.bf16.gmra.mrb[0].mxu0 %v69
    %v897 = vpop.f32.mrb[0].mxu0
    %v898 = vadd.f32 0.0, %v897
    %v899 = vpop.f32.mrb[0].mxu0
    %v900 = vadd.f32 0.0, %v899
    %v901 = vpop.f32.mrb[0].mxu0
    %v902 = vadd.f32 0.0, %v901
    %v903 = vpop.f32.mrb[0].mxu0
    %v904 = vadd.f32 0.0, %v903
    %905 = vdwg.mxu0
    %v906 = vpack.c.bf16 %v493, %v489
    %v907 = vpack.c.bf16 %v495, %v491
    %v908 = vpack.c.bf16 %v606, %v602
    %v909 = vpack.c.bf16 %v608, %v604
    %v910 = vpack.c.bf16 %v719, %v715
    %v911 = vpack.c.bf16 %v721, %v717
    %v912 = vpack.c.bf16 %v832, %v828
    %v913 = vpack.c.bf16 %v834, %v830
    %v914 = vpack.c.bf16 %v503, %v499
    %v915 = vpack.c.bf16 %v505, %v501
    %v916 = vpack.c.bf16 %v616, %v612
    %v917 = vpack.c.bf16 %v618, %v614
    %v918 = vpack.c.bf16 %v729, %v725
    %v919 = vpack.c.bf16 %v731, %v727
    %v920 = vpack.c.bf16 %v842, %v838
    %v921 = vpack.c.bf16 %v844, %v840
    %v922 = vpack.c.bf16 %v513, %v509
    %v923 = vpack.c.bf16 %v515, %v511
    %v924 = vpack.c.bf16 %v626, %v622
    %v925 = vpack.c.bf16 %v628, %v624
    %v926 = vpack.c.bf16 %v739, %v735
    %v927 = vpack.c.bf16 %v741, %v737
    %v928 = vpack.c.bf16 %v852, %v848
    %v929 = vpack.c.bf16 %v854, %v850
    %v930 = vpack.c.bf16 %v523, %v519
    %v931 = vpack.c.bf16 %v525, %v521
    %v932 = vpack.c.bf16 %v636, %v632
    %v933 = vpack.c.bf16 %v638, %v634
    %v934 = vpack.c.bf16 %v749, %v745
    %v935 = vpack.c.bf16 %v751, %v747
    %v936 = vpack.c.bf16 %v862, %v858
    %v937 = vpack.c.bf16 %v864, %v860
    %v938 = vpack.c.bf16 %v533, %v529
    %v939 = vpack.c.bf16 %v535, %v531
    %v940 = vpack.c.bf16 %v646, %v642
    %v941 = vpack.c.bf16 %v648, %v644
    %v942 = vpack.c.bf16 %v759, %v755
    %v943 = vpack.c.bf16 %v761, %v757
    %v944 = vpack.c.bf16 %v872, %v868
    %v945 = vpack.c.bf16 %v874, %v870
    %v946 = vpack.c.bf16 %v543, %v539
    %v947 = vpack.c.bf16 %v545, %v541
    %v948 = vpack.c.bf16 %v656, %v652
    %v949 = vpack.c.bf16 %v658, %v654
    %v950 = vpack.c.bf16 %v769, %v765
    %v951 = vpack.c.bf16 %v771, %v767
    %v952 = vpack.c.bf16 %v882, %v878
    %v953 = vpack.c.bf16 %v884, %v880
    %v954 = vpack.c.bf16 %v553, %v549
    %v955 = vpack.c.bf16 %v555, %v551
    %v956 = vpack.c.bf16 %v666, %v662
    %v957 = vpack.c.bf16 %v668, %v664
    %v958 = vpack.c.bf16 %v779, %v775
    %v959 = vpack.c.bf16 %v781, %v777
    %v960 = vpack.c.bf16 %v892, %v888
    %v961 = vpack.c.bf16 %v894, %v890
    %v962 = vpack.c.bf16 %v563, %v559
    %v963 = vpack.c.bf16 %v565, %v561
    %v964 = vpack.c.bf16 %v676, %v672
    %v965 = vpack.c.bf16 %v678, %v674
    %v966 = vpack.c.bf16 %v789, %v785
    %v967 = vpack.c.bf16 %v791, %v787
    %v968 = vpack.c.bf16 %v902, %v898
    %v969 = vpack.c.bf16 %v904, %v900
    %v970 = vmax.bf16 %v906, 0
    %v971 = vmax.bf16 %v907, 0
    %v972 = vmax.bf16 %v908, 0
    %v973 = vmax.bf16 %v909, 0
    %v974 = vmax.bf16 %v910, 0
    %v975 = vmax.bf16 %v911, 0
    %v976 = vmax.bf16 %v912, 0
    %v977 = vmax.bf16 %v913, 0
    %v978 = vmax.bf16 %v914, 0
    %v979 = vmax.bf16 %v915, 0
    %v980 = vmax.bf16 %v916, 0
    %v981 = vmax.bf16 %v917, 0
    %v982 = vmax.bf16 %v918, 0
    %v983 = vmax.bf16 %v919, 0
    %v984 = vmax.bf16 %v920, 0
    %v985 = vmax.bf16 %v921, 0
    %v986 = vmax.bf16 %v922, 0
    %v987 = vmax.bf16 %v923, 0
    %v988 = vmax.bf16 %v924, 0
    %v989 = vmax.bf16 %v925, 0
    %v990 = vmax.bf16 %v926, 0
    %v991 = vmax.bf16 %v927, 0
    %v992 = vmax.bf16 %v928, 0
    %v993 = vmax.bf16 %v929, 0
    %v994 = vmax.bf16 %v930, 0
    %v995 = vmax.bf16 %v931, 0
    %v996 = vmax.bf16 %v932, 0
    %v997 = vmax.bf16 %v933, 0
    %v998 = vmax.bf16 %v934, 0
    %v999 = vmax.bf16 %v935, 0
    %v1000 = vmax.bf16 %v936, 0
    %v1001 = vmax.bf16 %v937, 0
    %v1002 = vmax.bf16 %v938, 0
    %v1003 = vmax.bf16 %v939, 0
    %v1004 = vmax.bf16 %v940, 0
    %v1005 = vmax.bf16 %v941, 0
    %v1006 = vmax.bf16 %v942, 0
    %v1007 = vmax.bf16 %v943, 0
    %v1008 = vmax.bf16 %v944, 0
    %v1009 = vmax.bf16 %v945, 0
    %v1010 = vmax.bf16 %v946, 0
    %v1011 = vmax.bf16 %v947, 0
    %v1012 = vmax.bf16 %v948, 0
    %v1013 = vmax.bf16 %v949, 0
    %v1014 = vmax.bf16 %v950, 0
    %v1015 = vmax.bf16 %v951, 0
    %v1016 = vmax.bf16 %v952, 0
    %v1017 = vmax.bf16 %v953, 0
    %v1018 = vmax.bf16 %v954, 0
    %v1019 = vmax.bf16 %v955, 0
    %v1020 = vmax.bf16 %v956, 0
    %v1021 = vmax.bf16 %v957, 0
    %v1022 = vmax.bf16 %v958, 0
    %v1023 = vmax.bf16 %v959, 0
    %v1024 = vmax.bf16 %v960, 0
    %v1025 = vmax.bf16 %v961, 0
    %v1026 = vmax.bf16 %v962, 0
    %v1027 = vmax.bf16 %v963, 0
    %v1028 = vmax.bf16 %v964, 0
    %v1029 = vmax.bf16 %v965, 0
    %v1030 = vmax.bf16 %v966, 0
    %v1031 = vmax.bf16 %v967, 0
    %v1032 = vmax.bf16 %v968, 0
    %v1033 = vmax.bf16 %v969, 0
    %v1034 = vld [vmem:[#allocation4] sm:$0xff]
    %v1035 = vld [vmem:[#allocation4 + $0x8] sm:$0xff]
    %v1036 = vld [vmem:[#allocation4 + $0x10] sm:$0xff]
    %v1037 = vld [vmem:[#allocation4 + $0x18] sm:$0xff]
    %v1038 = vld [vmem:[#allocation4 + $0x20] sm:$0xff]
    %v1039 = vld [vmem:[#allocation4 + $0x28] sm:$0xff]
    %v1040 = vld [vmem:[#allocation4 + $0x30] sm:$0xff]
    %v1041 = vld [vmem:[#allocation4 + $0x38] sm:$0xff]
    %v1042 = vld [vmem:[#allocation4 + $0x40] sm:$0xff]
    %v1043 = vld [vmem:[#allocation4 + $0x48] sm:$0xff]
    %v1044 = vld [vmem:[#allocation4 + $0x50] sm:$0xff]
    %v1045 = vld [vmem:[#allocation4 + $0x58] sm:$0xff]
    %v1046 = vld [vmem:[#allocation4 + $0x60] sm:$0xff]
    %v1047 = vld [vmem:[#allocation4 + $0x68] sm:$0xff]
    %v1048 = vld [vmem:[#allocation4 + $0x70] sm:$0xff]
    %v1049 = vld [vmem:[#allocation4 + $0x78] sm:$0xff]
    %v1050 = vld [vmem:[#allocation4 + $0x80] sm:$0xff]
    %v1051 = vld [vmem:[#allocation4 + $0x88] sm:$0xff]
    %v1052 = vld [vmem:[#allocation4 + $0x90] sm:$0xff]
    %v1053 = vld [vmem:[#allocation4 + $0x98] sm:$0xff]
    %v1054 = vld [vmem:[#allocation4 + $0xa0] sm:$0xff]
    %v1055 = vld [vmem:[#allocation4 + $0xa8] sm:$0xff]
    %v1056 = vld [vmem:[#allocation4 + $0xb0] sm:$0xff]
    %v1057 = vld [vmem:[#allocation4 + $0xb8] sm:$0xff]
    %v1058 = vld [vmem:[#allocation4 + $0xc0] sm:$0xff]
    %v1059 = vld [vmem:[#allocation4 + $0xc8] sm:$0xff]
    %v1060 = vld [vmem:[#allocation4 + $0xd0] sm:$0xff]
    %v1061 = vld [vmem:[#allocation4 + $0xd8] sm:$0xff]
    %v1062 = vld [vmem:[#allocation4 + $0xe0] sm:$0xff]
    %v1063 = vld [vmem:[#allocation4 + $0xe8] sm:$0xff]
    %v1064 = vld [vmem:[#allocation4 + $0xf0] sm:$0xff]
    %v1065 = vld [vmem:[#allocation4 + $0xf8] sm:$0xff]
    %v1066 = vld [vmem:[#allocation4 + $0x100] sm:$0xff]
    %v1067 = vld [vmem:[#allocation4 + $0x108] sm:$0xff]
    %v1068 = vld [vmem:[#allocation4 + $0x110] sm:$0xff]
    %v1069 = vld [vmem:[#allocation4 + $0x118] sm:$0xff]
    %v1070 = vld [vmem:[#allocation4 + $0x120] sm:$0xff]
    %v1071 = vld [vmem:[#allocation4 + $0x128] sm:$0xff]
    %v1072 = vld [vmem:[#allocation4 + $0x130] sm:$0xff]
    %v1073 = vld [vmem:[#allocation4 + $0x138] sm:$0xff]
    %v1074 = vld [vmem:[#allocation4 + $0x140] sm:$0xff]
    %v1075 = vld [vmem:[#allocation4 + $0x148] sm:$0xff]
    %v1076 = vld [vmem:[#allocation4 + $0x150] sm:$0xff]
    %v1077 = vld [vmem:[#allocation4 + $0x158] sm:$0xff]
    %v1078 = vld [vmem:[#allocation4 + $0x160] sm:$0xff]
    %v1079 = vld [vmem:[#allocation4 + $0x168] sm:$0xff]
    %v1080 = vld [vmem:[#allocation4 + $0x170] sm:$0xff]
    %v1081 = vld [vmem:[#allocation4 + $0x178] sm:$0xff]
    %v1082 = vld [vmem:[#allocation4 + $0x180] sm:$0xff]
    %v1083 = vld [vmem:[#allocation4 + $0x188] sm:$0xff]
    %v1084 = vld [vmem:[#allocation4 + $0x190] sm:$0xff]
    %v1085 = vld [vmem:[#allocation4 + $0x198] sm:$0xff]
    %v1086 = vld [vmem:[#allocation4 + $0x1a0] sm:$0xff]
    %v1087 = vld [vmem:[#allocation4 + $0x1a8] sm:$0xff]
    %v1088 = vld [vmem:[#allocation4 + $0x1b0] sm:$0xff]
    %v1089 = vld [vmem:[#allocation4 + $0x1b8] sm:$0xff]
    %v1090 = vld [vmem:[#allocation4 + $0x1c0] sm:$0xff]
    %v1091 = vld [vmem:[#allocation4 + $0x1c8] sm:$0xff]
    %v1092 = vld [vmem:[#allocation4 + $0x1d0] sm:$0xff]
    %v1093 = vld [vmem:[#allocation4 + $0x1d8] sm:$0xff]
    %v1094 = vld [vmem:[#allocation4 + $0x1e0] sm:$0xff]
    %v1095 = vld [vmem:[#allocation4 + $0x1e8] sm:$0xff]
    %v1096 = vld [vmem:[#allocation4 + $0x1f0] sm:$0xff]
    %v1097 = vld [vmem:[#allocation4 + $0x1f8] sm:$0xff]
    %v1098 = vld [vmem:[#allocation4 + $0x200] sm:$0xff]
    %v1099 = vld [vmem:[#allocation4 + $0x208] sm:$0xff]
    %v1100 = vld [vmem:[#allocation4 + $0x210] sm:$0xff]
    %v1101 = vld [vmem:[#allocation4 + $0x218] sm:$0xff]
    %v1102 = vld [vmem:[#allocation4 + $0x220] sm:$0xff]
    %v1103 = vld [vmem:[#allocation4 + $0x228] sm:$0xff]
    %v1104 = vld [vmem:[#allocation4 + $0x230] sm:$0xff]
    %v1105 = vld [vmem:[#allocation4 + $0x238] sm:$0xff]
    %v1106 = vld [vmem:[#allocation4 + $0x240] sm:$0xff]
    %v1107 = vld [vmem:[#allocation4 + $0x248] sm:$0xff]
    %v1108 = vld [vmem:[#allocation4 + $0x250] sm:$0xff]
    %v1109 = vld [vmem:[#allocation4 + $0x258] sm:$0xff]
    %v1110 = vld [vmem:[#allocation4 + $0x260] sm:$0xff]
    %v1111 = vld [vmem:[#allocation4 + $0x268] sm:$0xff]
    %v1112 = vld [vmem:[#allocation4 + $0x270] sm:$0xff]
    %v1113 = vld [vmem:[#allocation4 + $0x278] sm:$0xff]
    %v1114 = vld [vmem:[#allocation4 + $0x280] sm:$0xff]
    %v1115 = vld [vmem:[#allocation4 + $0x288] sm:$0xff]
    %v1116 = vld [vmem:[#allocation4 + $0x290] sm:$0xff]
    %v1117 = vld [vmem:[#allocation4 + $0x298] sm:$0xff]
    %v1118 = vld [vmem:[#allocation4 + $0x2a0] sm:$0xff]
    %v1119 = vld [vmem:[#allocation4 + $0x2a8] sm:$0xff]
    %v1120 = vld [vmem:[#allocation4 + $0x2b0] sm:$0xff]
    %v1121 = vld [vmem:[#allocation4 + $0x2b8] sm:$0xff]
    %v1122 = vld [vmem:[#allocation4 + $0x2c0] sm:$0xff]
    %v1123 = vld [vmem:[#allocation4 + $0x2c8] sm:$0xff]
    %v1124 = vld [vmem:[#allocation4 + $0x2d0] sm:$0xff]
    %v1125 = vld [vmem:[#allocation4 + $0x2d8] sm:$0xff]
    %v1126 = vld [vmem:[#allocation4 + $0x2e0] sm:$0xff]
    %v1127 = vld [vmem:[#allocation4 + $0x2e8] sm:$0xff]
    %v1128 = vld [vmem:[#allocation4 + $0x2f0] sm:$0xff]
    %v1129 = vld [vmem:[#allocation4 + $0x2f8] sm:$0xff]
    %v1130 = vld [vmem:[#allocation4 + $0x300] sm:$0xff]
    %v1131 = vld [vmem:[#allocation4 + $0x308] sm:$0xff]
    %v1132 = vld [vmem:[#allocation4 + $0x310] sm:$0xff]
    %v1133 = vld [vmem:[#allocation4 + $0x318] sm:$0xff]
    %v1134 = vld [vmem:[#allocation4 + $0x320] sm:$0xff]
    %v1135 = vld [vmem:[#allocation4 + $0x328] sm:$0xff]
    %v1136 = vld [vmem:[#allocation4 + $0x330] sm:$0xff]
    %v1137 = vld [vmem:[#allocation4 + $0x338] sm:$0xff]
    %v1138 = vld [vmem:[#allocation4 + $0x340] sm:$0xff]
    %v1139 = vld [vmem:[#allocation4 + $0x348] sm:$0xff]
    %v1140 = vld [vmem:[#allocation4 + $0x350] sm:$0xff]
    %v1141 = vld [vmem:[#allocation4 + $0x358] sm:$0xff]
    %v1142 = vld [vmem:[#allocation4 + $0x360] sm:$0xff]
    %v1143 = vld [vmem:[#allocation4 + $0x368] sm:$0xff]
    %v1144 = vld [vmem:[#allocation4 + $0x370] sm:$0xff]
    %v1145 = vld [vmem:[#allocation4 + $0x378] sm:$0xff]
    %v1146 = vld [vmem:[#allocation4 + $0x380] sm:$0xff]
    %v1147 = vld [vmem:[#allocation4 + $0x388] sm:$0xff]
    %v1148 = vld [vmem:[#allocation4 + $0x390] sm:$0xff]
    %v1149 = vld [vmem:[#allocation4 + $0x398] sm:$0xff]
    %v1150 = vld [vmem:[#allocation4 + $0x3a0] sm:$0xff]
    %v1151 = vld [vmem:[#allocation4 + $0x3a8] sm:$0xff]
    %v1152 = vld [vmem:[#allocation4 + $0x3b0] sm:$0xff]
    %v1153 = vld [vmem:[#allocation4 + $0x3b8] sm:$0xff]
    %v1154 = vld [vmem:[#allocation4 + $0x3c0] sm:$0xff]
    %v1155 = vld [vmem:[#allocation4 + $0x3c8] sm:$0xff]
    %v1156 = vld [vmem:[#allocation4 + $0x3d0] sm:$0xff]
    %v1157 = vld [vmem:[#allocation4 + $0x3d8] sm:$0xff]
    %v1158 = vld [vmem:[#allocation4 + $0x3e0] sm:$0xff]
    %v1159 = vld [vmem:[#allocation4 + $0x3e8] sm:$0xff]
    %v1160 = vld [vmem:[#allocation4 + $0x3f0] sm:$0xff]
    %v1161 = vld [vmem:[#allocation4 + $0x3f8] sm:$0xff]
    %v1162 = vld [vmem:[#allocation4 + $0x400] sm:$0xff]
    %v1163 = vld [vmem:[#allocation4 + $0x408] sm:$0xff]
    %v1164 = vld [vmem:[#allocation4 + $0x410] sm:$0xff]
    %v1165 = vld [vmem:[#allocation4 + $0x418] sm:$0xff]
    %v1166 = vld [vmem:[#allocation4 + $0x420] sm:$0xff]
    %v1167 = vld [vmem:[#allocation4 + $0x428] sm:$0xff]
    %v1168 = vld [vmem:[#allocation4 + $0x430] sm:$0xff]
    %v1169 = vld [vmem:[#allocation4 + $0x438] sm:$0xff]
    %v1170 = vld [vmem:[#allocation4 + $0x440] sm:$0xff]
    %v1171 = vld [vmem:[#allocation4 + $0x448] sm:$0xff]
    %v1172 = vld [vmem:[#allocation4 + $0x450] sm:$0xff]
    %v1173 = vld [vmem:[#allocation4 + $0x458] sm:$0xff]
    %v1174 = vld [vmem:[#allocation4 + $0x460] sm:$0xff]
    %v1175 = vld [vmem:[#allocation4 + $0x468] sm:$0xff]
    %v1176 = vld [vmem:[#allocation4 + $0x470] sm:$0xff]
    %v1177 = vld [vmem:[#allocation4 + $0x478] sm:$0xff]
    %v1178 = vld [vmem:[#allocation4 + $0x480] sm:$0xff]
    %v1179 = vld [vmem:[#allocation4 + $0x488] sm:$0xff]
    %v1180 = vld [vmem:[#allocation4 + $0x490] sm:$0xff]
    %v1181 = vld [vmem:[#allocation4 + $0x498] sm:$0xff]
    %v1182 = vld [vmem:[#allocation4 + $0x4a0] sm:$0xff]
    %v1183 = vld [vmem:[#allocation4 + $0x4a8] sm:$0xff]
    %v1184 = vld [vmem:[#allocation4 + $0x4b0] sm:$0xff]
    %v1185 = vld [vmem:[#allocation4 + $0x4b8] sm:$0xff]
    %v1186 = vld [vmem:[#allocation4 + $0x4c0] sm:$0xff]
    %v1187 = vld [vmem:[#allocation4 + $0x4c8] sm:$0xff]
    %v1188 = vld [vmem:[#allocation4 + $0x4d0] sm:$0xff]
    %v1189 = vld [vmem:[#allocation4 + $0x4d8] sm:$0xff]
    %v1190 = vld [vmem:[#allocation4 + $0x4e0] sm:$0xff]
    %v1191 = vld [vmem:[#allocation4 + $0x4e8] sm:$0xff]
    %v1192 = vld [vmem:[#allocation4 + $0x4f0] sm:$0xff]
    %v1193 = vld [vmem:[#allocation4 + $0x4f8] sm:$0xff]
    %v1194 = vld [vmem:[#allocation4 + $0x500] sm:$0xff]
    %v1195 = vld [vmem:[#allocation4 + $0x508] sm:$0xff]
    %v1196 = vld [vmem:[#allocation4 + $0x510] sm:$0xff]
    %v1197 = vld [vmem:[#allocation4 + $0x518] sm:$0xff]
    %v1198 = vld [vmem:[#allocation4 + $0x520] sm:$0xff]
    %v1199 = vld [vmem:[#allocation4 + $0x528] sm:$0xff]
    %v1200 = vld [vmem:[#allocation4 + $0x530] sm:$0xff]
    %v1201 = vld [vmem:[#allocation4 + $0x538] sm:$0xff]
    %v1202 = vld [vmem:[#allocation4 + $0x540] sm:$0xff]
    %v1203 = vld [vmem:[#allocation4 + $0x548] sm:$0xff]
    %v1204 = vld [vmem:[#allocation4 + $0x550] sm:$0xff]
    %v1205 = vld [vmem:[#allocation4 + $0x558] sm:$0xff]
    %v1206 = vld [vmem:[#allocation4 + $0x560] sm:$0xff]
    %v1207 = vld [vmem:[#allocation4 + $0x568] sm:$0xff]
    %v1208 = vld [vmem:[#allocation4 + $0x570] sm:$0xff]
    %v1209 = vld [vmem:[#allocation4 + $0x578] sm:$0xff]
    %v1210 = vld [vmem:[#allocation4 + $0x580] sm:$0xff]
    %v1211 = vld [vmem:[#allocation4 + $0x588] sm:$0xff]
    %v1212 = vld [vmem:[#allocation4 + $0x590] sm:$0xff]
    %v1213 = vld [vmem:[#allocation4 + $0x598] sm:$0xff]
    %v1214 = vld [vmem:[#allocation4 + $0x5a0] sm:$0xff]
    %v1215 = vld [vmem:[#allocation4 + $0x5a8] sm:$0xff]
    %v1216 = vld [vmem:[#allocation4 + $0x5b0] sm:$0xff]
    %v1217 = vld [vmem:[#allocation4 + $0x5b8] sm:$0xff]
    %v1218 = vld [vmem:[#allocation4 + $0x5c0] sm:$0xff]
    %v1219 = vld [vmem:[#allocation4 + $0x5c8] sm:$0xff]
    %v1220 = vld [vmem:[#allocation4 + $0x5d0] sm:$0xff]
    %v1221 = vld [vmem:[#allocation4 + $0x5d8] sm:$0xff]
    %v1222 = vld [vmem:[#allocation4 + $0x5e0] sm:$0xff]
    %v1223 = vld [vmem:[#allocation4 + $0x5e8] sm:$0xff]
    %v1224 = vld [vmem:[#allocation4 + $0x5f0] sm:$0xff]
    %v1225 = vld [vmem:[#allocation4 + $0x5f8] sm:$0xff]
    %v1226 = vld [vmem:[#allocation4 + $0x600] sm:$0xff]
    %v1227 = vld [vmem:[#allocation4 + $0x608] sm:$0xff]
    %v1228 = vld [vmem:[#allocation4 + $0x610] sm:$0xff]
    %v1229 = vld [vmem:[#allocation4 + $0x618] sm:$0xff]
    %v1230 = vld [vmem:[#allocation4 + $0x620] sm:$0xff]
    %v1231 = vld [vmem:[#allocation4 + $0x628] sm:$0xff]
    %v1232 = vld [vmem:[#allocation4 + $0x630] sm:$0xff]
    %v1233 = vld [vmem:[#allocation4 + $0x638] sm:$0xff]
    %v1234 = vld [vmem:[#allocation4 + $0x640] sm:$0xff]
    %v1235 = vld [vmem:[#allocation4 + $0x648] sm:$0xff]
    %v1236 = vld [vmem:[#allocation4 + $0x650] sm:$0xff]
    %v1237 = vld [vmem:[#allocation4 + $0x658] sm:$0xff]
    %v1238 = vld [vmem:[#allocation4 + $0x660] sm:$0xff]
    %v1239 = vld [vmem:[#allocation4 + $0x668] sm:$0xff]
    %v1240 = vld [vmem:[#allocation4 + $0x670] sm:$0xff]
    %v1241 = vld [vmem:[#allocation4 + $0x678] sm:$0xff]
    %v1242 = vld [vmem:[#allocation4 + $0x680] sm:$0xff]
    %v1243 = vld [vmem:[#allocation4 + $0x688] sm:$0xff]
    %v1244 = vld [vmem:[#allocation4 + $0x690] sm:$0xff]
    %v1245 = vld [vmem:[#allocation4 + $0x698] sm:$0xff]
    %v1246 = vld [vmem:[#allocation4 + $0x6a0] sm:$0xff]
    %v1247 = vld [vmem:[#allocation4 + $0x6a8] sm:$0xff]
    %v1248 = vld [vmem:[#allocation4 + $0x6b0] sm:$0xff]
    %v1249 = vld [vmem:[#allocation4 + $0x6b8] sm:$0xff]
    %v1250 = vld [vmem:[#allocation4 + $0x6c0] sm:$0xff]
    %v1251 = vld [vmem:[#allocation4 + $0x6c8] sm:$0xff]
    %v1252 = vld [vmem:[#allocation4 + $0x6d0] sm:$0xff]
    %v1253 = vld [vmem:[#allocation4 + $0x6d8] sm:$0xff]
    %v1254 = vld [vmem:[#allocation4 + $0x6e0] sm:$0xff]
    %v1255 = vld [vmem:[#allocation4 + $0x6e8] sm:$0xff]
    %v1256 = vld [vmem:[#allocation4 + $0x6f0] sm:$0xff]
    %v1257 = vld [vmem:[#allocation4 + $0x6f8] sm:$0xff]
    %v1258 = vld [vmem:[#allocation4 + $0x700] sm:$0xff]
    %v1259 = vld [vmem:[#allocation4 + $0x708] sm:$0xff]
    %v1260 = vld [vmem:[#allocation4 + $0x710] sm:$0xff]
    %v1261 = vld [vmem:[#allocation4 + $0x718] sm:$0xff]
    %v1262 = vld [vmem:[#allocation4 + $0x720] sm:$0xff]
    %v1263 = vld [vmem:[#allocation4 + $0x728] sm:$0xff]
    %v1264 = vld [vmem:[#allocation4 + $0x730] sm:$0xff]
    %v1265 = vld [vmem:[#allocation4 + $0x738] sm:$0xff]
    %v1266 = vld [vmem:[#allocation4 + $0x740] sm:$0xff]
    %v1267 = vld [vmem:[#allocation4 + $0x748] sm:$0xff]
    %v1268 = vld [vmem:[#allocation4 + $0x750] sm:$0xff]
    %v1269 = vld [vmem:[#allocation4 + $0x758] sm:$0xff]
    %v1270 = vld [vmem:[#allocation4 + $0x760] sm:$0xff]
    %v1271 = vld [vmem:[#allocation4 + $0x768] sm:$0xff]
    %v1272 = vld [vmem:[#allocation4 + $0x770] sm:$0xff]
    %v1273 = vld [vmem:[#allocation4 + $0x778] sm:$0xff]
    %v1274 = vld [vmem:[#allocation4 + $0x780] sm:$0xff]
    %v1275 = vld [vmem:[#allocation4 + $0x788] sm:$0xff]
    %v1276 = vld [vmem:[#allocation4 + $0x790] sm:$0xff]
    %v1277 = vld [vmem:[#allocation4 + $0x798] sm:$0xff]
    %v1278 = vld [vmem:[#allocation4 + $0x7a0] sm:$0xff]
    %v1279 = vld [vmem:[#allocation4 + $0x7a8] sm:$0xff]
    %v1280 = vld [vmem:[#allocation4 + $0x7b0] sm:$0xff]
    %v1281 = vld [vmem:[#allocation4 + $0x7b8] sm:$0xff]
    %v1282 = vld [vmem:[#allocation4 + $0x7c0] sm:$0xff]
    %v1283 = vld [vmem:[#allocation4 + $0x7c8] sm:$0xff]
    %v1284 = vld [vmem:[#allocation4 + $0x7d0] sm:$0xff]
    %v1285 = vld [vmem:[#allocation4 + $0x7d8] sm:$0xff]
    %v1286 = vld [vmem:[#allocation4 + $0x7e0] sm:$0xff]
    %v1287 = vld [vmem:[#allocation4 + $0x7e8] sm:$0xff]
    %v1288 = vld [vmem:[#allocation4 + $0x7f0] sm:$0xff]
    %v1289 = vld [vmem:[#allocation4 + $0x7f8] sm:$0xff]
    %v1546 = vunpack.c.l.b16 %v1034
    %v1547 = vunpack.c.h.b16 %v1034
    %v1548 = vunpack.c.l.b16 %v1035
    %v1549 = vunpack.c.h.b16 %v1035
    %v1550 = vunpack.c.l.b16 %v1036
    %v1551 = vunpack.c.h.b16 %v1036
    %v1552 = vunpack.c.l.b16 %v1037
    %v1553 = vunpack.c.h.b16 %v1037
    %v1554 = vunpack.c.l.b16 %v1038
    %v1555 = vunpack.c.h.b16 %v1038
    %v1556 = vunpack.c.l.b16 %v1039
    %v1557 = vunpack.c.h.b16 %v1039
    %v1558 = vunpack.c.l.b16 %v1040
    %v1559 = vunpack.c.h.b16 %v1040
    %v1560 = vunpack.c.l.b16 %v1041
    %v1561 = vunpack.c.h.b16 %v1041
    %v1562 = vunpack.c.l.b16 %v1042
    %v1563 = vunpack.c.h.b16 %v1042
    %v1564 = vunpack.c.l.b16 %v1043
    %v1565 = vunpack.c.h.b16 %v1043
    %v1566 = vunpack.c.l.b16 %v1044
    %v1567 = vunpack.c.h.b16 %v1044
    %v1568 = vunpack.c.l.b16 %v1045
    %v1569 = vunpack.c.h.b16 %v1045
    %v1570 = vunpack.c.l.b16 %v1046
    %v1571 = vunpack.c.h.b16 %v1046
    %v1572 = vunpack.c.l.b16 %v1047
    %v1573 = vunpack.c.h.b16 %v1047
    %v1574 = vunpack.c.l.b16 %v1048
    %v1575 = vunpack.c.h.b16 %v1048
    %v1576 = vunpack.c.l.b16 %v1049
    %v1577 = vunpack.c.h.b16 %v1049
    %v1578 = vunpack.c.l.b16 %v1050
    %v1579 = vunpack.c.h.b16 %v1050
    %v1580 = vunpack.c.l.b16 %v1051
    %v1581 = vunpack.c.h.b16 %v1051
    %v1582 = vunpack.c.l.b16 %v1052
    %v1583 = vunpack.c.h.b16 %v1052
    %v1584 = vunpack.c.l.b16 %v1053
    %v1585 = vunpack.c.h.b16 %v1053
    %v1586 = vunpack.c.l.b16 %v1054
    %v1587 = vunpack.c.h.b16 %v1054
    %v1588 = vunpack.c.l.b16 %v1055
    %v1589 = vunpack.c.h.b16 %v1055
    %v1590 = vunpack.c.l.b16 %v1056
    %v1591 = vunpack.c.h.b16 %v1056
    %v1592 = vunpack.c.l.b16 %v1057
    %v1593 = vunpack.c.h.b16 %v1057
    %v1594 = vunpack.c.l.b16 %v1058
    %v1595 = vunpack.c.h.b16 %v1058
    %v1596 = vunpack.c.l.b16 %v1059
    %v1597 = vunpack.c.h.b16 %v1059
    %v1598 = vunpack.c.l.b16 %v1060
    %v1599 = vunpack.c.h.b16 %v1060
    %v1600 = vunpack.c.l.b16 %v1061
    %v1601 = vunpack.c.h.b16 %v1061
    %v1602 = vunpack.c.l.b16 %v1062
    %v1603 = vunpack.c.h.b16 %v1062
    %v1604 = vunpack.c.l.b16 %v1063
    %v1605 = vunpack.c.h.b16 %v1063
    %v1606 = vunpack.c.l.b16 %v1064
    %v1607 = vunpack.c.h.b16 %v1064
    %v1608 = vunpack.c.l.b16 %v1065
    %v1609 = vunpack.c.h.b16 %v1065
    %v1610 = vunpack.c.l.b16 %v1066
    %v1611 = vunpack.c.h.b16 %v1066
    %v1612 = vunpack.c.l.b16 %v1067
    %v1613 = vunpack.c.h.b16 %v1067
    %v1614 = vunpack.c.l.b16 %v1068
    %v1615 = vunpack.c.h.b16 %v1068
    %v1616 = vunpack.c.l.b16 %v1069
    %v1617 = vunpack.c.h.b16 %v1069
    %v1618 = vunpack.c.l.b16 %v1070
    %v1619 = vunpack.c.h.b16 %v1070
    %v1620 = vunpack.c.l.b16 %v1071
    %v1621 = vunpack.c.h.b16 %v1071
    %v1622 = vunpack.c.l.b16 %v1072
    %v1623 = vunpack.c.h.b16 %v1072
    %v1624 = vunpack.c.l.b16 %v1073
    %v1625 = vunpack.c.h.b16 %v1073
    %v1626 = vunpack.c.l.b16 %v1074
    %v1627 = vunpack.c.h.b16 %v1074
    %v1628 = vunpack.c.l.b16 %v1075
    %v1629 = vunpack.c.h.b16 %v1075
    %v1630 = vunpack.c.l.b16 %v1076
    %v1631 = vunpack.c.h.b16 %v1076
    %v1632 = vunpack.c.l.b16 %v1077
    %v1633 = vunpack.c.h.b16 %v1077
    %v1634 = vunpack.c.l.b16 %v1078
    %v1635 = vunpack.c.h.b16 %v1078
    %v1636 = vunpack.c.l.b16 %v1079
    %v1637 = vunpack.c.h.b16 %v1079
    %v1638 = vunpack.c.l.b16 %v1080
    %v1639 = vunpack.c.h.b16 %v1080
    %v1640 = vunpack.c.l.b16 %v1081
    %v1641 = vunpack.c.h.b16 %v1081
    %v1642 = vunpack.c.l.b16 %v1082
    %v1643 = vunpack.c.h.b16 %v1082
    %v1644 = vunpack.c.l.b16 %v1083
    %v1645 = vunpack.c.h.b16 %v1083
    %v1646 = vunpack.c.l.b16 %v1084
    %v1647 = vunpack.c.h.b16 %v1084
    %v1648 = vunpack.c.l.b16 %v1085
    %v1649 = vunpack.c.h.b16 %v1085
    %v1650 = vunpack.c.l.b16 %v1086
    %v1651 = vunpack.c.h.b16 %v1086
    %v1652 = vunpack.c.l.b16 %v1087
    %v1653 = vunpack.c.h.b16 %v1087
    %v1654 = vunpack.c.l.b16 %v1088
    %v1655 = vunpack.c.h.b16 %v1088
    %v1656 = vunpack.c.l.b16 %v1089
    %v1657 = vunpack.c.h.b16 %v1089
    %v1658 = vunpack.c.l.b16 %v1090
    %v1659 = vunpack.c.h.b16 %v1090
    %v1660 = vunpack.c.l.b16 %v1091
    %v1661 = vunpack.c.h.b16 %v1091
    %v1662 = vunpack.c.l.b16 %v1092
    %v1663 = vunpack.c.h.b16 %v1092
    %v1664 = vunpack.c.l.b16 %v1093
    %v1665 = vunpack.c.h.b16 %v1093
    %v1666 = vunpack.c.l.b16 %v1094
    %v1667 = vunpack.c.h.b16 %v1094
    %v1668 = vunpack.c.l.b16 %v1095
    %v1669 = vunpack.c.h.b16 %v1095
    %v1670 = vunpack.c.l.b16 %v1096
    %v1671 = vunpack.c.h.b16 %v1096
    %v1672 = vunpack.c.l.b16 %v1097
    %v1673 = vunpack.c.h.b16 %v1097
    %v1674 = vunpack.c.l.b16 %v1098
    %v1675 = vunpack.c.h.b16 %v1098
    %v1676 = vunpack.c.l.b16 %v1099
    %v1677 = vunpack.c.h.b16 %v1099
    %v1678 = vunpack.c.l.b16 %v1100
    %v1679 = vunpack.c.h.b16 %v1100
    %v1680 = vunpack.c.l.b16 %v1101
    %v1681 = vunpack.c.h.b16 %v1101
    %v1682 = vunpack.c.l.b16 %v1102
    %v1683 = vunpack.c.h.b16 %v1102
    %v1684 = vunpack.c.l.b16 %v1103
    %v1685 = vunpack.c.h.b16 %v1103
    %v1686 = vunpack.c.l.b16 %v1104
    %v1687 = vunpack.c.h.b16 %v1104
    %v1688 = vunpack.c.l.b16 %v1105
    %v1689 = vunpack.c.h.b16 %v1105
    %v1690 = vunpack.c.l.b16 %v1106
    %v1691 = vunpack.c.h.b16 %v1106
    %v1692 = vunpack.c.l.b16 %v1107
    %v1693 = vunpack.c.h.b16 %v1107
    %v1694 = vunpack.c.l.b16 %v1108
    %v1695 = vunpack.c.h.b16 %v1108
    %v1696 = vunpack.c.l.b16 %v1109
    %v1697 = vunpack.c.h.b16 %v1109
    %v1698 = vunpack.c.l.b16 %v1110
    %v1699 = vunpack.c.h.b16 %v1110
    %v1700 = vunpack.c.l.b16 %v1111
    %v1701 = vunpack.c.h.b16 %v1111
    %v1702 = vunpack.c.l.b16 %v1112
    %v1703 = vunpack.c.h.b16 %v1112
    %v1704 = vunpack.c.l.b16 %v1113
    %v1705 = vunpack.c.h.b16 %v1113
    %v1706 = vunpack.c.l.b16 %v1114
    %v1707 = vunpack.c.h.b16 %v1114
    %v1708 = vunpack.c.l.b16 %v1115
    %v1709 = vunpack.c.h.b16 %v1115
    %v1710 = vunpack.c.l.b16 %v1116
    %v1711 = vunpack.c.h.b16 %v1116
    %v1712 = vunpack.c.l.b16 %v1117
    %v1713 = vunpack.c.h.b16 %v1117
    %v1714 = vunpack.c.l.b16 %v1118
    %v1715 = vunpack.c.h.b16 %v1118
    %v1716 = vunpack.c.l.b16 %v1119
    %v1717 = vunpack.c.h.b16 %v1119
    %v1718 = vunpack.c.l.b16 %v1120
    %v1719 = vunpack.c.h.b16 %v1120
    %v1720 = vunpack.c.l.b16 %v1121
    %v1721 = vunpack.c.h.b16 %v1121
    %v1722 = vunpack.c.l.b16 %v1122
    %v1723 = vunpack.c.h.b16 %v1122
    %v1724 = vunpack.c.l.b16 %v1123
    %v1725 = vunpack.c.h.b16 %v1123
    %v1726 = vunpack.c.l.b16 %v1124
    %v1727 = vunpack.c.h.b16 %v1124
    %v1728 = vunpack.c.l.b16 %v1125
    %v1729 = vunpack.c.h.b16 %v1125
    %v1730 = vunpack.c.l.b16 %v1126
    %v1731 = vunpack.c.h.b16 %v1126
    %v1732 = vunpack.c.l.b16 %v1127
    %v1733 = vunpack.c.h.b16 %v1127
    %v1734 = vunpack.c.l.b16 %v1128
    %v1735 = vunpack.c.h.b16 %v1128
    %v1736 = vunpack.c.l.b16 %v1129
    %v1737 = vunpack.c.h.b16 %v1129
    %v1738 = vunpack.c.l.b16 %v1130
    %v1739 = vunpack.c.h.b16 %v1130
    %v1740 = vunpack.c.l.b16 %v1131
    %v1741 = vunpack.c.h.b16 %v1131
    %v1742 = vunpack.c.l.b16 %v1132
    %v1743 = vunpack.c.h.b16 %v1132
    %v1744 = vunpack.c.l.b16 %v1133
    %v1745 = vunpack.c.h.b16 %v1133
    %v1746 = vunpack.c.l.b16 %v1134
    %v1747 = vunpack.c.h.b16 %v1134
    %v1748 = vunpack.c.l.b16 %v1135
    %v1749 = vunpack.c.h.b16 %v1135
    %v1750 = vunpack.c.l.b16 %v1136
    %v1751 = vunpack.c.h.b16 %v1136
    %v1752 = vunpack.c.l.b16 %v1137
    %v1753 = vunpack.c.h.b16 %v1137
    %v1754 = vunpack.c.l.b16 %v1138
    %v1755 = vunpack.c.h.b16 %v1138
    %v1756 = vunpack.c.l.b16 %v1139
    %v1757 = vunpack.c.h.b16 %v1139
    %v1758 = vunpack.c.l.b16 %v1140
    %v1759 = vunpack.c.h.b16 %v1140
    %v1760 = vunpack.c.l.b16 %v1141
    %v1761 = vunpack.c.h.b16 %v1141
    %v1762 = vunpack.c.l.b16 %v1142
    %v1763 = vunpack.c.h.b16 %v1142
    %v1764 = vunpack.c.l.b16 %v1143
    %v1765 = vunpack.c.h.b16 %v1143
    %v1766 = vunpack.c.l.b16 %v1144
    %v1767 = vunpack.c.h.b16 %v1144
    %v1768 = vunpack.c.l.b16 %v1145
    %v1769 = vunpack.c.h.b16 %v1145
    %v1770 = vunpack.c.l.b16 %v1146
    %v1771 = vunpack.c.h.b16 %v1146
    %v1772 = vunpack.c.l.b16 %v1147
    %v1773 = vunpack.c.h.b16 %v1147
    %v1774 = vunpack.c.l.b16 %v1148
    %v1775 = vunpack.c.h.b16 %v1148
    %v1776 = vunpack.c.l.b16 %v1149
    %v1777 = vunpack.c.h.b16 %v1149
    %v1778 = vunpack.c.l.b16 %v1150
    %v1779 = vunpack.c.h.b16 %v1150
    %v1780 = vunpack.c.l.b16 %v1151
    %v1781 = vunpack.c.h.b16 %v1151
    %v1782 = vunpack.c.l.b16 %v1152
    %v1783 = vunpack.c.h.b16 %v1152
    %v1784 = vunpack.c.l.b16 %v1153
    %v1785 = vunpack.c.h.b16 %v1153
    %v1786 = vunpack.c.l.b16 %v1154
    %v1787 = vunpack.c.h.b16 %v1154
    %v1788 = vunpack.c.l.b16 %v1155
    %v1789 = vunpack.c.h.b16 %v1155
    %v1790 = vunpack.c.l.b16 %v1156
    %v1791 = vunpack.c.h.b16 %v1156
    %v1792 = vunpack.c.l.b16 %v1157
    %v1793 = vunpack.c.h.b16 %v1157
    %v1794 = vunpack.c.l.b16 %v1158
    %v1795 = vunpack.c.h.b16 %v1158
    %v1796 = vunpack.c.l.b16 %v1159
    %v1797 = vunpack.c.h.b16 %v1159
    %v1798 = vunpack.c.l.b16 %v1160
    %v1799 = vunpack.c.h.b16 %v1160
    %v1800 = vunpack.c.l.b16 %v1161
    %v1801 = vunpack.c.h.b16 %v1161
    %v1802 = vunpack.c.l.b16 %v1162
    %v1803 = vunpack.c.h.b16 %v1162
    %v1804 = vunpack.c.l.b16 %v1163
    %v1805 = vunpack.c.h.b16 %v1163
    %v1806 = vunpack.c.l.b16 %v1164
    %v1807 = vunpack.c.h.b16 %v1164
    %v1808 = vunpack.c.l.b16 %v1165
    %v1809 = vunpack.c.h.b16 %v1165
    %v1810 = vunpack.c.l.b16 %v1166
    %v1811 = vunpack.c.h.b16 %v1166
    %v1812 = vunpack.c.l.b16 %v1167
    %v1813 = vunpack.c.h.b16 %v1167
    %v1814 = vunpack.c.l.b16 %v1168
    %v1815 = vunpack.c.h.b16 %v1168
    %v1816 = vunpack.c.l.b16 %v1169
    %v1817 = vunpack.c.h.b16 %v1169
    %v1818 = vunpack.c.l.b16 %v1170
    %v1819 = vunpack.c.h.b16 %v1170
    %v1820 = vunpack.c.l.b16 %v1171
    %v1821 = vunpack.c.h.b16 %v1171
    %v1822 = vunpack.c.l.b16 %v1172
    %v1823 = vunpack.c.h.b16 %v1172
    %v1824 = vunpack.c.l.b16 %v1173
    %v1825 = vunpack.c.h.b16 %v1173
    %v1826 = vunpack.c.l.b16 %v1174
    %v1827 = vunpack.c.h.b16 %v1174
    %v1828 = vunpack.c.l.b16 %v1175
    %v1829 = vunpack.c.h.b16 %v1175
    %v1830 = vunpack.c.l.b16 %v1176
    %v1831 = vunpack.c.h.b16 %v1176
    %v1832 = vunpack.c.l.b16 %v1177
    %v1833 = vunpack.c.h.b16 %v1177
    %v1834 = vunpack.c.l.b16 %v1178
    %v1835 = vunpack.c.h.b16 %v1178
    %v1836 = vunpack.c.l.b16 %v1179
    %v1837 = vunpack.c.h.b16 %v1179
    %v1838 = vunpack.c.l.b16 %v1180
    %v1839 = vunpack.c.h.b16 %v1180
    %v1840 = vunpack.c.l.b16 %v1181
    %v1841 = vunpack.c.h.b16 %v1181
    %v1842 = vunpack.c.l.b16 %v1182
    %v1843 = vunpack.c.h.b16 %v1182
    %v1844 = vunpack.c.l.b16 %v1183
    %v1845 = vunpack.c.h.b16 %v1183
    %v1846 = vunpack.c.l.b16 %v1184
    %v1847 = vunpack.c.h.b16 %v1184
    %v1848 = vunpack.c.l.b16 %v1185
    %v1849 = vunpack.c.h.b16 %v1185
    %v1850 = vunpack.c.l.b16 %v1186
    %v1851 = vunpack.c.h.b16 %v1186
    %v1852 = vunpack.c.l.b16 %v1187
    %v1853 = vunpack.c.h.b16 %v1187
    %v1854 = vunpack.c.l.b16 %v1188
    %v1855 = vunpack.c.h.b16 %v1188
    %v1856 = vunpack.c.l.b16 %v1189
    %v1857 = vunpack.c.h.b16 %v1189
    %v1858 = vunpack.c.l.b16 %v1190
    %v1859 = vunpack.c.h.b16 %v1190
    %v1860 = vunpack.c.l.b16 %v1191
    %v1861 = vunpack.c.h.b16 %v1191
    %v1862 = vunpack.c.l.b16 %v1192
    %v1863 = vunpack.c.h.b16 %v1192
    %v1864 = vunpack.c.l.b16 %v1193
    %v1865 = vunpack.c.h.b16 %v1193
    %v1866 = vunpack.c.l.b16 %v1194
    %v1867 = vunpack.c.h.b16 %v1194
    %v1868 = vunpack.c.l.b16 %v1195
    %v1869 = vunpack.c.h.b16 %v1195
    %v1870 = vunpack.c.l.b16 %v1196
    %v1871 = vunpack.c.h.b16 %v1196
    %v1872 = vunpack.c.l.b16 %v1197
    %v1873 = vunpack.c.h.b16 %v1197
    %v1874 = vunpack.c.l.b16 %v1198
    %v1875 = vunpack.c.h.b16 %v1198
    %v1876 = vunpack.c.l.b16 %v1199
    %v1877 = vunpack.c.h.b16 %v1199
    %v1878 = vunpack.c.l.b16 %v1200
    %v1879 = vunpack.c.h.b16 %v1200
    %v1880 = vunpack.c.l.b16 %v1201
    %v1881 = vunpack.c.h.b16 %v1201
    %v1882 = vunpack.c.l.b16 %v1202
    %v1883 = vunpack.c.h.b16 %v1202
    %v1884 = vunpack.c.l.b16 %v1203
    %v1885 = vunpack.c.h.b16 %v1203
    %v1886 = vunpack.c.l.b16 %v1204
    %v1887 = vunpack.c.h.b16 %v1204
    %v1888 = vunpack.c.l.b16 %v1205
    %v1889 = vunpack.c.h.b16 %v1205
    %v1890 = vunpack.c.l.b16 %v1206
    %v1891 = vunpack.c.h.b16 %v1206
    %v1892 = vunpack.c.l.b16 %v1207
    %v1893 = vunpack.c.h.b16 %v1207
    %v1894 = vunpack.c.l.b16 %v1208
    %v1895 = vunpack.c.h.b16 %v1208
    %v1896 = vunpack.c.l.b16 %v1209
    %v1897 = vunpack.c.h.b16 %v1209
    %v1898 = vunpack.c.l.b16 %v1210
    %v1899 = vunpack.c.h.b16 %v1210
    %v1900 = vunpack.c.l.b16 %v1211
    %v1901 = vunpack.c.h.b16 %v1211
    %v1902 = vunpack.c.l.b16 %v1212
    %v1903 = vunpack.c.h.b16 %v1212
    %v1904 = vunpack.c.l.b16 %v1213
    %v1905 = vunpack.c.h.b16 %v1213
    %v1906 = vunpack.c.l.b16 %v1214
    %v1907 = vunpack.c.h.b16 %v1214
    %v1908 = vunpack.c.l.b16 %v1215
    %v1909 = vunpack.c.h.b16 %v1215
    %v1910 = vunpack.c.l.b16 %v1216
    %v1911 = vunpack.c.h.b16 %v1216
    %v1912 = vunpack.c.l.b16 %v1217
    %v1913 = vunpack.c.h.b16 %v1217
    %v1914 = vunpack.c.l.b16 %v1218
    %v1915 = vunpack.c.h.b16 %v1218
    %v1916 = vunpack.c.l.b16 %v1219
    %v1917 = vunpack.c.h.b16 %v1219
    %v1918 = vunpack.c.l.b16 %v1220
    %v1919 = vunpack.c.h.b16 %v1220
    %v1920 = vunpack.c.l.b16 %v1221
    %v1921 = vunpack.c.h.b16 %v1221
    %v1922 = vunpack.c.l.b16 %v1222
    %v1923 = vunpack.c.h.b16 %v1222
    %v1924 = vunpack.c.l.b16 %v1223
    %v1925 = vunpack.c.h.b16 %v1223
    %v1926 = vunpack.c.l.b16 %v1224
    %v1927 = vunpack.c.h.b16 %v1224
    %v1928 = vunpack.c.l.b16 %v1225
    %v1929 = vunpack.c.h.b16 %v1225
    %v1930 = vunpack.c.l.b16 %v1226
    %v1931 = vunpack.c.h.b16 %v1226
    %v1932 = vunpack.c.l.b16 %v1227
    %v1933 = vunpack.c.h.b16 %v1227
    %v1934 = vunpack.c.l.b16 %v1228
    %v1935 = vunpack.c.h.b16 %v1228
    %v1936 = vunpack.c.l.b16 %v1229
    %v1937 = vunpack.c.h.b16 %v1229
    %v1938 = vunpack.c.l.b16 %v1230
    %v1939 = vunpack.c.h.b16 %v1230
    %v1940 = vunpack.c.l.b16 %v1231
    %v1941 = vunpack.c.h.b16 %v1231
    %v1942 = vunpack.c.l.b16 %v1232
    %v1943 = vunpack.c.h.b16 %v1232
    %v1944 = vunpack.c.l.b16 %v1233
    %v1945 = vunpack.c.h.b16 %v1233
    %v1946 = vunpack.c.l.b16 %v1234
    %v1947 = vunpack.c.h.b16 %v1234
    %v1948 = vunpack.c.l.b16 %v1235
    %v1949 = vunpack.c.h.b16 %v1235
    %v1950 = vunpack.c.l.b16 %v1236
    %v1951 = vunpack.c.h.b16 %v1236
    %v1952 = vunpack.c.l.b16 %v1237
    %v1953 = vunpack.c.h.b16 %v1237
    %v1954 = vunpack.c.l.b16 %v1238
    %v1955 = vunpack.c.h.b16 %v1238
    %v1956 = vunpack.c.l.b16 %v1239
    %v1957 = vunpack.c.h.b16 %v1239
    %v1958 = vunpack.c.l.b16 %v1240
    %v1959 = vunpack.c.h.b16 %v1240
    %v1960 = vunpack.c.l.b16 %v1241
    %v1961 = vunpack.c.h.b16 %v1241
    %v1962 = vunpack.c.l.b16 %v1242
    %v1963 = vunpack.c.h.b16 %v1242
    %v1964 = vunpack.c.l.b16 %v1243
    %v1965 = vunpack.c.h.b16 %v1243
    %v1966 = vunpack.c.l.b16 %v1244
    %v1967 = vunpack.c.h.b16 %v1244
    %v1968 = vunpack.c.l.b16 %v1245
    %v1969 = vunpack.c.h.b16 %v1245
    %v1970 = vunpack.c.l.b16 %v1246
    %v1971 = vunpack.c.h.b16 %v1246
    %v1972 = vunpack.c.l.b16 %v1247
    %v1973 = vunpack.c.h.b16 %v1247
    %v1974 = vunpack.c.l.b16 %v1248
    %v1975 = vunpack.c.h.b16 %v1248
    %v1976 = vunpack.c.l.b16 %v1249
    %v1977 = vunpack.c.h.b16 %v1249
    %v1978 = vunpack.c.l.b16 %v1250
    %v1979 = vunpack.c.h.b16 %v1250
    %v1980 = vunpack.c.l.b16 %v1251
    %v1981 = vunpack.c.h.b16 %v1251
    %v1982 = vunpack.c.l.b16 %v1252
    %v1983 = vunpack.c.h.b16 %v1252
    %v1984 = vunpack.c.l.b16 %v1253
    %v1985 = vunpack.c.h.b16 %v1253
    %v1986 = vunpack.c.l.b16 %v1254
    %v1987 = vunpack.c.h.b16 %v1254
    %v1988 = vunpack.c.l.b16 %v1255
    %v1989 = vunpack.c.h.b16 %v1255
    %v1990 = vunpack.c.l.b16 %v1256
    %v1991 = vunpack.c.h.b16 %v1256
    %v1992 = vunpack.c.l.b16 %v1257
    %v1993 = vunpack.c.h.b16 %v1257
    %v1994 = vunpack.c.l.b16 %v1258
    %v1995 = vunpack.c.h.b16 %v1258
    %v1996 = vunpack.c.l.b16 %v1259
    %v1997 = vunpack.c.h.b16 %v1259
    %v1998 = vunpack.c.l.b16 %v1260
    %v1999 = vunpack.c.h.b16 %v1260
    %v2000 = vunpack.c.l.b16 %v1261
    %v2001 = vunpack.c.h.b16 %v1261
    %v2002 = vunpack.c.l.b16 %v1262
    %v2003 = vunpack.c.h.b16 %v1262
    %v2004 = vunpack.c.l.b16 %v1263
    %v2005 = vunpack.c.h.b16 %v1263
    %v2006 = vunpack.c.l.b16 %v1264
    %v2007 = vunpack.c.h.b16 %v1264
    %v2008 = vunpack.c.l.b16 %v1265
    %v2009 = vunpack.c.h.b16 %v1265
    %v2010 = vunpack.c.l.b16 %v1266
    %v2011 = vunpack.c.h.b16 %v1266
    %v2012 = vunpack.c.l.b16 %v1267
    %v2013 = vunpack.c.h.b16 %v1267
    %v2014 = vunpack.c.l.b16 %v1268
    %v2015 = vunpack.c.h.b16 %v1268
    %v2016 = vunpack.c.l.b16 %v1269
    %v2017 = vunpack.c.h.b16 %v1269
    %v2018 = vunpack.c.l.b16 %v1270
    %v2019 = vunpack.c.h.b16 %v1270
    %v2020 = vunpack.c.l.b16 %v1271
    %v2021 = vunpack.c.h.b16 %v1271
    %v2022 = vunpack.c.l.b16 %v1272
    %v2023 = vunpack.c.h.b16 %v1272
    %v2024 = vunpack.c.l.b16 %v1273
    %v2025 = vunpack.c.h.b16 %v1273
    %v2026 = vunpack.c.l.b16 %v1274
    %v2027 = vunpack.c.h.b16 %v1274
    %v2028 = vunpack.c.l.b16 %v1275
    %v2029 = vunpack.c.h.b16 %v1275
    %v2030 = vunpack.c.l.b16 %v1276
    %v2031 = vunpack.c.h.b16 %v1276
    %v2032 = vunpack.c.l.b16 %v1277
    %v2033 = vunpack.c.h.b16 %v1277
    %v2034 = vunpack.c.l.b16 %v1278
    %v2035 = vunpack.c.h.b16 %v1278
    %v2036 = vunpack.c.l.b16 %v1279
    %v2037 = vunpack.c.h.b16 %v1279
    %v2038 = vunpack.c.l.b16 %v1280
    %v2039 = vunpack.c.h.b16 %v1280
    %v2040 = vunpack.c.l.b16 %v1281
    %v2041 = vunpack.c.h.b16 %v1281
    %v2042 = vunpack.c.l.b16 %v1282
    %v2043 = vunpack.c.h.b16 %v1282
    %v2044 = vunpack.c.l.b16 %v1283
    %v2045 = vunpack.c.h.b16 %v1283
    %v2046 = vunpack.c.l.b16 %v1284
    %v2047 = vunpack.c.h.b16 %v1284
    %v2048 = vunpack.c.l.b16 %v1285
    %v2049 = vunpack.c.h.b16 %v1285
    %v2050 = vunpack.c.l.b16 %v1286
    %v2051 = vunpack.c.h.b16 %v1286
    %v2052 = vunpack.c.l.b16 %v1287
    %v2053 = vunpack.c.h.b16 %v1287
    %v2054 = vunpack.c.l.b16 %v1288
    %v2055 = vunpack.c.h.b16 %v1288
    %v2056 = vunpack.c.l.b16 %v1289
    %v2057 = vunpack.c.h.b16 %v1289
    %v2058 = vpack.c.b16 %v1550, %v1546
    %v2059 = vpack.c.b16 %v1551, %v1547
    %v2060 = vpack.c.b16 %v1552, %v1548
    %v2061 = vpack.c.b16 %v1553, %v1549
    %v2062 = vpack.c.b16 %v1558, %v1554
    %v2063 = vpack.c.b16 %v1559, %v1555
    %v2064 = vpack.c.b16 %v1560, %v1556
    %v2065 = vpack.c.b16 %v1561, %v1557
    %v2066 = vpack.c.b16 %v1566, %v1562
    %v2067 = vpack.c.b16 %v1567, %v1563
    %v2068 = vpack.c.b16 %v1568, %v1564
    %v2069 = vpack.c.b16 %v1569, %v1565
    %v2070 = vpack.c.b16 %v1574, %v1570
    %v2071 = vpack.c.b16 %v1575, %v1571
    %v2072 = vpack.c.b16 %v1576, %v1572
    %v2073 = vpack.c.b16 %v1577, %v1573
    %v2074 = vpack.c.b16 %v1582, %v1578
    %v2075 = vpack.c.b16 %v1583, %v1579
    %v2076 = vpack.c.b16 %v1584, %v1580
    %v2077 = vpack.c.b16 %v1585, %v1581
    %v2078 = vpack.c.b16 %v1590, %v1586
    %v2079 = vpack.c.b16 %v1591, %v1587
    %v2080 = vpack.c.b16 %v1592, %v1588
    %v2081 = vpack.c.b16 %v1593, %v1589
    %v2082 = vpack.c.b16 %v1598, %v1594
    %v2083 = vpack.c.b16 %v1599, %v1595
    %v2084 = vpack.c.b16 %v1600, %v1596
    %v2085 = vpack.c.b16 %v1601, %v1597
    %v2086 = vpack.c.b16 %v1606, %v1602
    %v2087 = vpack.c.b16 %v1607, %v1603
    %v2088 = vpack.c.b16 %v1608, %v1604
    %v2089 = vpack.c.b16 %v1609, %v1605
    %v2090 = vpack.c.b16 %v1614, %v1610
    %v2091 = vpack.c.b16 %v1615, %v1611
    %v2092 = vpack.c.b16 %v1616, %v1612
    %v2093 = vpack.c.b16 %v1617, %v1613
    %v2094 = vpack.c.b16 %v1622, %v1618
    %v2095 = vpack.c.b16 %v1623, %v1619
    %v2096 = vpack.c.b16 %v1624, %v1620
    %v2097 = vpack.c.b16 %v1625, %v1621
    %v2098 = vpack.c.b16 %v1630, %v1626
    %v2099 = vpack.c.b16 %v1631, %v1627
    %v2100 = vpack.c.b16 %v1632, %v1628
    %v2101 = vpack.c.b16 %v1633, %v1629
    %v2102 = vpack.c.b16 %v1638, %v1634
    %v2103 = vpack.c.b16 %v1639, %v1635
    %v2104 = vpack.c.b16 %v1640, %v1636
    %v2105 = vpack.c.b16 %v1641, %v1637
    %v2106 = vpack.c.b16 %v1646, %v1642
    %v2107 = vpack.c.b16 %v1647, %v1643
    %v2108 = vpack.c.b16 %v1648, %v1644
    %v2109 = vpack.c.b16 %v1649, %v1645
    %v2110 = vpack.c.b16 %v1654, %v1650
    %v2111 = vpack.c.b16 %v1655, %v1651
    %v2112 = vpack.c.b16 %v1656, %v1652
    %v2113 = vpack.c.b16 %v1657, %v1653
    %v2114 = vpack.c.b16 %v1662, %v1658
    %v2115 = vpack.c.b16 %v1663, %v1659
    %v2116 = vpack.c.b16 %v1664, %v1660
    %v2117 = vpack.c.b16 %v1665, %v1661
    %v2118 = vpack.c.b16 %v1670, %v1666
    %v2119 = vpack.c.b16 %v1671, %v1667
    %v2120 = vpack.c.b16 %v1672, %v1668
    %v2121 = vpack.c.b16 %v1673, %v1669
    %v2122 = vpack.c.b16 %v1678, %v1674
    %v2123 = vpack.c.b16 %v1679, %v1675
    %v2124 = vpack.c.b16 %v1680, %v1676
    %v2125 = vpack.c.b16 %v1681, %v1677
    %v2126 = vpack.c.b16 %v1686, %v1682
    %v2127 = vpack.c.b16 %v1687, %v1683
    %v2128 = vpack.c.b16 %v1688, %v1684
    %v2129 = vpack.c.b16 %v1689, %v1685
    %v2130 = vpack.c.b16 %v1694, %v1690
    %v2131 = vpack.c.b16 %v1695, %v1691
    %v2132 = vpack.c.b16 %v1696, %v1692
    %v2133 = vpack.c.b16 %v1697, %v1693
    %v2134 = vpack.c.b16 %v1702, %v1698
    %v2135 = vpack.c.b16 %v1703, %v1699
    %v2136 = vpack.c.b16 %v1704, %v1700
    %v2137 = vpack.c.b16 %v1705, %v1701
    %v2138 = vpack.c.b16 %v1710, %v1706
    %v2139 = vpack.c.b16 %v1711, %v1707
    %v2140 = vpack.c.b16 %v1712, %v1708
    %v2141 = vpack.c.b16 %v1713, %v1709
    %v2142 = vpack.c.b16 %v1718, %v1714
    %v2143 = vpack.c.b16 %v1719, %v1715
    %v2144 = vpack.c.b16 %v1720, %v1716
    %v2145 = vpack.c.b16 %v1721, %v1717
    %v2146 = vpack.c.b16 %v1726, %v1722
    %v2147 = vpack.c.b16 %v1727, %v1723
    %v2148 = vpack.c.b16 %v1728, %v1724
    %v2149 = vpack.c.b16 %v1729, %v1725
    %v2150 = vpack.c.b16 %v1734, %v1730
    %v2151 = vpack.c.b16 %v1735, %v1731
    %v2152 = vpack.c.b16 %v1736, %v1732
    %v2153 = vpack.c.b16 %v1737, %v1733
    %v2154 = vpack.c.b16 %v1742, %v1738
    %v2155 = vpack.c.b16 %v1743, %v1739
    %v2156 = vpack.c.b16 %v1744, %v1740
    %v2157 = vpack.c.b16 %v1745, %v1741
    %v2158 = vpack.c.b16 %v1750, %v1746
    %v2159 = vpack.c.b16 %v1751, %v1747
    %v2160 = vpack.c.b16 %v1752, %v1748
    %v2161 = vpack.c.b16 %v1753, %v1749
    %v2162 = vpack.c.b16 %v1758, %v1754
    %v2163 = vpack.c.b16 %v1759, %v1755
    %v2164 = vpack.c.b16 %v1760, %v1756
    %v2165 = vpack.c.b16 %v1761, %v1757
    %v2166 = vpack.c.b16 %v1766, %v1762
    %v2167 = vpack.c.b16 %v1767, %v1763
    %v2168 = vpack.c.b16 %v1768, %v1764
    %v2169 = vpack.c.b16 %v1769, %v1765
    %v2170 = vpack.c.b16 %v1774, %v1770
    %v2171 = vpack.c.b16 %v1775, %v1771
    %v2172 = vpack.c.b16 %v1776, %v1772
    %v2173 = vpack.c.b16 %v1777, %v1773
    %v2174 = vpack.c.b16 %v1782, %v1778
    %v2175 = vpack.c.b16 %v1783, %v1779
    %v2176 = vpack.c.b16 %v1784, %v1780
    %v2177 = vpack.c.b16 %v1785, %v1781
    %v2178 = vpack.c.b16 %v1790, %v1786
    %v2179 = vpack.c.b16 %v1791, %v1787
    %v2180 = vpack.c.b16 %v1792, %v1788
    %v2181 = vpack.c.b16 %v1793, %v1789
    %v2182 = vpack.c.b16 %v1798, %v1794
    %v2183 = vpack.c.b16 %v1799, %v1795
    %v2184 = vpack.c.b16 %v1800, %v1796
    %v2185 = vpack.c.b16 %v1801, %v1797
    %v2186 = vpack.c.b16 %v1806, %v1802
    %v2187 = vpack.c.b16 %v1807, %v1803
    %v2188 = vpack.c.b16 %v1808, %v1804
    %v2189 = vpack.c.b16 %v1809, %v1805
    %v2190 = vpack.c.b16 %v1814, %v1810
    %v2191 = vpack.c.b16 %v1815, %v1811
    %v2192 = vpack.c.b16 %v1816, %v1812
    %v2193 = vpack.c.b16 %v1817, %v1813
    %v2194 = vpack.c.b16 %v1822, %v1818
    %v2195 = vpack.c.b16 %v1823, %v1819
    %v2196 = vpack.c.b16 %v1824, %v1820
    %v2197 = vpack.c.b16 %v1825, %v1821
    %v2198 = vpack.c.b16 %v1830, %v1826
    %v2199 = vpack.c.b16 %v1831, %v1827
    %v2200 = vpack.c.b16 %v1832, %v1828
    %v2201 = vpack.c.b16 %v1833, %v1829
    %v2202 = vpack.c.b16 %v1838, %v1834
    %v2203 = vpack.c.b16 %v1839, %v1835
    %v2204 = vpack.c.b16 %v1840, %v1836
    %v2205 = vpack.c.b16 %v1841, %v1837
    %v2206 = vpack.c.b16 %v1846, %v1842
    %v2207 = vpack.c.b16 %v1847, %v1843
    %v2208 = vpack.c.b16 %v1848, %v1844
    %v2209 = vpack.c.b16 %v1849, %v1845
    %v2210 = vpack.c.b16 %v1854, %v1850
    %v2211 = vpack.c.b16 %v1855, %v1851
    %v2212 = vpack.c.b16 %v1856, %v1852
    %v2213 = vpack.c.b16 %v1857, %v1853
    %v2214 = vpack.c.b16 %v1862, %v1858
    %v2215 = vpack.c.b16 %v1863, %v1859
    %v2216 = vpack.c.b16 %v1864, %v1860
    %v2217 = vpack.c.b16 %v1865, %v1861
    %v2218 = vpack.c.b16 %v1870, %v1866
    %v2219 = vpack.c.b16 %v1871, %v1867
    %v2220 = vpack.c.b16 %v1872, %v1868
    %v2221 = vpack.c.b16 %v1873, %v1869
    %v2222 = vpack.c.b16 %v1878, %v1874
    %v2223 = vpack.c.b16 %v1879, %v1875
    %v2224 = vpack.c.b16 %v1880, %v1876
    %v2225 = vpack.c.b16 %v1881, %v1877
    %v2226 = vpack.c.b16 %v1886, %v1882
    %v2227 = vpack.c.b16 %v1887, %v1883
    %v2228 = vpack.c.b16 %v1888, %v1884
    %v2229 = vpack.c.b16 %v1889, %v1885
    %v2230 = vpack.c.b16 %v1894, %v1890
    %v2231 = vpack.c.b16 %v1895, %v1891
    %v2232 = vpack.c.b16 %v1896, %v1892
    %v2233 = vpack.c.b16 %v1897, %v1893
    %v2234 = vpack.c.b16 %v1902, %v1898
    %v2235 = vpack.c.b16 %v1903, %v1899
    %v2236 = vpack.c.b16 %v1904, %v1900
    %v2237 = vpack.c.b16 %v1905, %v1901
    %v2238 = vpack.c.b16 %v1910, %v1906
    %v2239 = vpack.c.b16 %v1911, %v1907
    %v2240 = vpack.c.b16 %v1912, %v1908
    %v2241 = vpack.c.b16 %v1913, %v1909
    %v2242 = vpack.c.b16 %v1918, %v1914
    %v2243 = vpack.c.b16 %v1919, %v1915
    %v2244 = vpack.c.b16 %v1920, %v1916
    %v2245 = vpack.c.b16 %v1921, %v1917
    %v2246 = vpack.c.b16 %v1926, %v1922
    %v2247 = vpack.c.b16 %v1927, %v1923
    %v2248 = vpack.c.b16 %v1928, %v1924
    %v2249 = vpack.c.b16 %v1929, %v1925
    %v2250 = vpack.c.b16 %v1934, %v1930
    %v2251 = vpack.c.b16 %v1935, %v1931
    %v2252 = vpack.c.b16 %v1936, %v1932
    %v2253 = vpack.c.b16 %v1937, %v1933
    %v2254 = vpack.c.b16 %v1942, %v1938
    %v2255 = vpack.c.b16 %v1943, %v1939
    %v2256 = vpack.c.b16 %v1944, %v1940
    %v2257 = vpack.c.b16 %v1945, %v1941
    %v2258 = vpack.c.b16 %v1950, %v1946
    %v2259 = vpack.c.b16 %v1951, %v1947
    %v2260 = vpack.c.b16 %v1952, %v1948
    %v2261 = vpack.c.b16 %v1953, %v1949
    %v2262 = vpack.c.b16 %v1958, %v1954
    %v2263 = vpack.c.b16 %v1959, %v1955
    %v2264 = vpack.c.b16 %v1960, %v1956
    %v2265 = vpack.c.b16 %v1961, %v1957
    %v2266 = vpack.c.b16 %v1966, %v1962
    %v2267 = vpack.c.b16 %v1967, %v1963
    %v2268 = vpack.c.b16 %v1968, %v1964
    %v2269 = vpack.c.b16 %v1969, %v1965
    %v2270 = vpack.c.b16 %v1974, %v1970
    %v2271 = vpack.c.b16 %v1975, %v1971
    %v2272 = vpack.c.b16 %v1976, %v1972
    %v2273 = vpack.c.b16 %v1977, %v1973
    %v2274 = vpack.c.b16 %v1982, %v1978
    %v2275 = vpack.c.b16 %v1983, %v1979
    %v2276 = vpack.c.b16 %v1984, %v1980
    %v2277 = vpack.c.b16 %v1985, %v1981
    %v2278 = vpack.c.b16 %v1990, %v1986
    %v2279 = vpack.c.b16 %v1991, %v1987
    %v2280 = vpack.c.b16 %v1992, %v1988
    %v2281 = vpack.c.b16 %v1993, %v1989
    %v2282 = vpack.c.b16 %v1998, %v1994
    %v2283 = vpack.c.b16 %v1999, %v1995
    %v2284 = vpack.c.b16 %v2000, %v1996
    %v2285 = vpack.c.b16 %v2001, %v1997
    %v2286 = vpack.c.b16 %v2006, %v2002
    %v2287 = vpack.c.b16 %v2007, %v2003
    %v2288 = vpack.c.b16 %v2008, %v2004
    %v2289 = vpack.c.b16 %v2009, %v2005
    %v2290 = vpack.c.b16 %v2014, %v2010
    %v2291 = vpack.c.b16 %v2015, %v2011
    %v2292 = vpack.c.b16 %v2016, %v2012
    %v2293 = vpack.c.b16 %v2017, %v2013
    %v2294 = vpack.c.b16 %v2022, %v2018
    %v2295 = vpack.c.b16 %v2023, %v2019
    %v2296 = vpack.c.b16 %v2024, %v2020
    %v2297 = vpack.c.b16 %v2025, %v2021
    %v2298 = vpack.c.b16 %v2030, %v2026
    %v2299 = vpack.c.b16 %v2031, %v2027
    %v2300 = vpack.c.b16 %v2032, %v2028
    %v2301 = vpack.c.b16 %v2033, %v2029
    %v2302 = vpack.c.b16 %v2038, %v2034
    %v2303 = vpack.c.b16 %v2039, %v2035
    %v2304 = vpack.c.b16 %v2040, %v2036
    %v2305 = vpack.c.b16 %v2041, %v2037
    %v2306 = vpack.c.b16 %v2046, %v2042
    %v2307 = vpack.c.b16 %v2047, %v2043
    %v2308 = vpack.c.b16 %v2048, %v2044
    %v2309 = vpack.c.b16 %v2049, %v2045
    %v2310 = vpack.c.b16 %v2054, %v2050
    %v2311 = vpack.c.b16 %v2055, %v2051
    %v2312 = vpack.c.b16 %v2056, %v2052
    %v2313 = vpack.c.b16 %v2057, %v2053
    %2570 = vmatprep.subr.bf16.mxu0 %v2059
    %2571 = vmatpush1.bf16.msra.mxu0 %v2058
    %2572 = vmatprep.subr.bf16.mxu0 %v2063
    %2573 = vmatpush1.bf16.msra.mxu0 %v2062
    %2574 = vmatprep.subr.bf16.mxu0 %v2067
    %2575 = vmatpush1.bf16.msra.mxu0 %v2066
    %2576 = vmatprep.subr.bf16.mxu0 %v2071
    %2577 = vmatpush1.bf16.msra.mxu0 %v2070
    %2578 = vmatprep.subr.bf16.mxu0 %v2075
    %2579 = vmatpush1.bf16.msra.mxu0 %v2074
    %2580 = vmatprep.subr.bf16.mxu0 %v2079
    %2581 = vmatpush1.bf16.msra.mxu0 %v2078
    %2582 = vmatprep.subr.bf16.mxu0 %v2083
    %2583 = vmatpush1.bf16.msra.mxu0 %v2082
    %2584 = vmatprep.subr.bf16.mxu0 %v2087
    %2585 = vmatpush1.bf16.msra.mxu0 %v2086
    %2586 = vmatprep.subr.bf16.mxu0 %v2091
    %2587 = vmatpush1.bf16.msra.mxu0 %v2090
    %2588 = vmatprep.subr.bf16.mxu0 %v2095
    %2589 = vmatpush1.bf16.msra.mxu0 %v2094
    %2590 = vmatprep.subr.bf16.mxu0 %v2099
    %2591 = vmatpush1.bf16.msra.mxu0 %v2098
    %2592 = vmatprep.subr.bf16.mxu0 %v2103
    %2593 = vmatpush1.bf16.msra.mxu0 %v2102
    %2594 = vmatprep.subr.bf16.mxu0 %v2107
    %2595 = vmatpush1.bf16.msra.mxu0 %v2106
    %2596 = vmatprep.subr.bf16.mxu0 %v2111
    %2597 = vmatpush1.bf16.msra.mxu0 %v2110
    %2598 = vmatprep.subr.bf16.mxu0 %v2115
    %2599 = vmatpush1.bf16.msra.mxu0 %v2114
    %2600 = vmatprep.subr.bf16.mxu0 %v2119
    %2601 = vmatpush1.bf16.msra.mxu0 %v2118
    %2602 = vmatprep.mubr.bf16.mxu0 %v971
    %2603 = vmatmul.mubr.bf16.gmra.mrb[0].mxu0 %v970
    %v2604 = vpop.f32.mrb[0].mxu0
    %v2605 = vadd.f32 0.0, %v2604
    %v2606 = vpop.f32.mrb[0].mxu0
    %v2607 = vadd.f32 0.0, %v2606
    %v2608 = vpop.f32.mrb[0].mxu0
    %v2609 = vadd.f32 0.0, %v2608
    %v2610 = vpop.f32.mrb[0].mxu0
    %v2611 = vadd.f32 0.0, %v2610
    %2612 = vmatprep.mubr.bf16.mxu0 %v979
    %2613 = vmatmul.mubr.bf16.gmra.mrb[0].mxu0 %v978
    %v2614 = vpop.f32.mrb[0].mxu0
    %v2615 = vadd.f32 0.0, %v2614
    %v2616 = vpop.f32.mrb[0].mxu0
    %v2617 = vadd.f32 0.0, %v2616
    %v2618 = vpop.f32.mrb[0].mxu0
    %v2619 = vadd.f32 0.0, %v2618
    %v2620 = vpop.f32.mrb[0].mxu0
    %v2621 = vadd.f32 0.0, %v2620
    %2622 = vmatprep.mubr.bf16.mxu0 %v987
    %2623 = vmatmul.mubr.bf16.gmra.mrb[0].mxu0 %v986
    %v2624 = vpop.f32.mrb[0].mxu0
    %v2625 = vadd.f32 0.0, %v2624
    %v2626 = vpop.f32.mrb[0].mxu0
    %v2627 = vadd.f32 0.0, %v2626
    %v2628 = vpop.f32.mrb[0].mxu0
    %v2629 = vadd.f32 0.0, %v2628
    %v2630 = vpop.f32.mrb[0].mxu0
    %v2631 = vadd.f32 0.0, %v2630
    %2632 = vmatprep.mubr.bf16.mxu0 %v995
    %2633 = vmatmul.mubr.bf16.gmra.mrb[0].mxu0 %v994
    %v2634 = vpop.f32.mrb[0].mxu0
    %v2635 = vadd.f32 0.0, %v2634
    %v2636 = vpop.f32.mrb[0].mxu0
    %v2637 = vadd.f32 0.0, %v2636
    %v2638 = vpop.f32.mrb[0].mxu0
    %v2639 = vadd.f32 0.0, %v2638
    %v2640 = vpop.f32.mrb[0].mxu0
    %v2641 = vadd.f32 0.0, %v2640
    %2642 = vmatprep.mubr.bf16.mxu0 %v1003
    %2643 = vmatmul.mubr.bf16.gmra.mrb[0].mxu0 %v1002
    %v2644 = vpop.f32.mrb[0].mxu0
    %v2645 = vadd.f32 0.0, %v2644
    %v2646 = vpop.f32.mrb[0].mxu0
    %v2647 = vadd.f32 0.0, %v2646
    %v2648 = vpop.f32.mrb[0].mxu0
    %v2649 = vadd.f32 0.0, %v2648
    %v2650 = vpop.f32.mrb[0].mxu0
    %v2651 = vadd.f32 0.0, %v2650
    %2652 = vmatprep.mubr.bf16.mxu0 %v1011
    %2653 = vmatmul.mubr.bf16.gmra.mrb[0].mxu0 %v1010
    %v2654 = vpop.f32.mrb[0].mxu0
    %v2655 = vadd.f32 0.0, %v2654
    %v2656 = vpop.f32.mrb[0].mxu0
    %v2657 = vadd.f32 0.0, %v2656
    %v2658 = vpop.f32.mrb[0].mxu0
    %v2659 = vadd.f32 0.0, %v2658
    %v2660 = vpop.f32.mrb[0].mxu0
    %v2661 = vadd.f32 0.0, %v2660
    %2662 = vmatprep.mubr.bf16.mxu0 %v1019
    %2663 = vmatmul.mubr.bf16.gmra.mrb[0].mxu0 %v1018
    %v2664 = vpop.f32.mrb[0].mxu0
    %v2665 = vadd.f32 0.0, %v2664
    %v2666 = vpop.f32.mrb[0].mxu0
    %v2667 = vadd.f32 0.0, %v2666
    %v2668 = vpop.f32.mrb[0].mxu0
    %v2669 = vadd.f32 0.0, %v2668
    %v2670 = vpop.f32.mrb[0].mxu0
    %v2671 = vadd.f32 0.0, %v2670
    %2672 = vmatprep.mubr.bf16.mxu0 %v1027
    %2673 = vmatmul.mubr.bf16.gmra.mrb[0].mxu0 %v1026
    %v2674 = vpop.f32.mrb[0].mxu0
    %v2675 = vadd.f32 0.0, %v2674
    %v2676 = vpop.f32.mrb[0].mxu0
    %v2677 = vadd.f32 0.0, %v2676
    %v2678 = vpop.f32.mrb[0].mxu0
    %v2679 = vadd.f32 0.0, %v2678
    %v2680 = vpop.f32.mrb[0].mxu0
    %v2681 = vadd.f32 0.0, %v2680
    %2682 = vdwg.mxu0
    %2683 = vmatprep.subr.bf16.mxu0 %v2123
    %2684 = vmatpush1.bf16.msra.mxu0 %v2122
    %2685 = vmatprep.subr.bf16.mxu0 %v2127
    %2686 = vmatpush1.bf16.msra.mxu0 %v2126
    %2687 = vmatprep.subr.bf16.mxu0 %v2131
    %2688 = vmatpush1.bf16.msra.mxu0 %v2130
    %2689 = vmatprep.subr.bf16.mxu0 %v2135
    %2690 = vmatpush1.bf16.msra.mxu0 %v2134
    %2691 = vmatprep.subr.bf16.mxu0 %v2139
    %2692 = vmatpush1.bf16.msra.mxu0 %v2138
    %2693 = vmatprep.subr.bf16.mxu0 %v2143
    %2694 = vmatpush1.bf16.msra.mxu0 %v2142
    %2695 = vmatprep.subr.bf16.mxu0 %v2147
    %2696 = vmatpush1.bf16.msra.mxu0 %v2146
    %2697 = vmatprep.subr.bf16.mxu0 %v2151
    %2698 = vmatpush1.bf16.msra.mxu0 %v2150
    %2699 = vmatprep.subr.bf16.mxu0 %v2155
    %2700 = vmatpush1.bf16.msra.mxu0 %v2154
    %2701 = vmatprep.subr.bf16.mxu0 %v2159
    %2702 = vmatpush1.bf16.msra.mxu0 %v2158
    %2703 = vmatprep.subr.bf16.mxu0 %v2163
    %2704 = vmatpush1.bf16.msra.mxu0 %v2162
    %2705 = vmatprep.subr.bf16.mxu0 %v2167
    %2706 = vmatpush1.bf16.msra.mxu0 %v2166
    %2707 = vmatprep.subr.bf16.mxu0 %v2171
    %2708 = vmatpush1.bf16.msra.mxu0 %v2170
    %2709 = vmatprep.subr.bf16.mxu0 %v2175
    %2710 = vmatpush1.bf16.msra.mxu0 %v2174
    %2711 = vmatprep.subr.bf16.mxu0 %v2179
    %2712 = vmatpush1.bf16.msra.mxu0 %v2178
    %2713 = vmatprep.subr.bf16.mxu0 %v2183
    %2714 = vmatpush1.bf16.msra.mxu0 %v2182
    %2715 = vmatprep.mubr.bf16.mxu0 %v973
    %2716 = vmatmul.mubr.bf16.gmra.mrb[0].mxu0 %v972
    %v2717 = vpop.f32.mrb[0].mxu0
    %v2718 = vadd.f32 %v2605, %v2717
    %v2719 = vpop.f32.mrb[0].mxu0
    %v2720 = vadd.f32 %v2607, %v2719
    %v2721 = vpop.f32.mrb[0].mxu0
    %v2722 = vadd.f32 %v2609, %v2721
    %v2723 = vpop.f32.mrb[0].mxu0
    %v2724 = vadd.f32 %v2611, %v2723
    %2725 = vmatprep.mubr.bf16.mxu0 %v981
    %2726 = vmatmul.mubr.bf16.gmra.mrb[0].mxu0 %v980
    %v2727 = vpop.f32.mrb[0].mxu0
    %v2728 = vadd.f32 %v2615, %v2727
    %v2729 = vpop.f32.mrb[0].mxu0
    %v2730 = vadd.f32 %v2617, %v2729
    %v2731 = vpop.f32.mrb[0].mxu0
    %v2732 = vadd.f32 %v2619, %v2731
    %v2733 = vpop.f32.mrb[0].mxu0
    %v2734 = vadd.f32 %v2621, %v2733
    %2735 = vmatprep.mubr.bf16.mxu0 %v989
    %2736 = vmatmul.mubr.bf16.gmra.mrb[0].mxu0 %v988
    %v2737 = vpop.f32.mrb[0].mxu0
    %v2738 = vadd.f32 %v2625, %v2737
    %v2739 = vpop.f32.mrb[0].mxu0
    %v2740 = vadd.f32 %v2627, %v2739
    %v2741 = vpop.f32.mrb[0].mxu0
    %v2742 = vadd.f32 %v2629, %v2741
    %v2743 = vpop.f32.mrb[0].mxu0
    %v2744 = vadd.f32 %v2631, %v2743
    %2745 = vmatprep.mubr.bf16.mxu0 %v997
    %2746 = vmatmul.mubr.bf16.gmra.mrb[0].mxu0 %v996
    %v2747 = vpop.f32.mrb[0].mxu0
    %v2748 = vadd.f32 %v2635, %v2747
    %v2749 = vpop.f32.mrb[0].mxu0
    %v2750 = vadd.f32 %v2637, %v2749
    %v2751 = vpop.f32.mrb[0].mxu0
    %v2752 = vadd.f32 %v2639, %v2751
    %v2753 = vpop.f32.mrb[0].mxu0
    %v2754 = vadd.f32 %v2641, %v2753
    %2755 = vmatprep.mubr.bf16.mxu0 %v1005
    %2756 = vmatmul.mubr.bf16.gmra.mrb[0].mxu0 %v1004
    %v2757 = vpop.f32.mrb[0].mxu0
    %v2758 = vadd.f32 %v2645, %v2757
    %v2759 = vpop.f32.mrb[0].mxu0
    %v2760 = vadd.f32 %v2647, %v2759
    %v2761 = vpop.f32.mrb[0].mxu0
    %v2762 = vadd.f32 %v2649, %v2761
    %v2763 = vpop.f32.mrb[0].mxu0
    %v2764 = vadd.f32 %v2651, %v2763
    %2765 = vmatprep.mubr.bf16.mxu0 %v1013
    %2766 = vmatmul.mubr.bf16.gmra.mrb[0].mxu0 %v1012
    %v2767 = vpop.f32.mrb[0].mxu0
    %v2768 = vadd.f32 %v2655, %v2767
    %v2769 = vpop.f32.mrb[0].mxu0
    %v2770 = vadd.f32 %v2657, %v2769
    %v2771 = vpop.f32.mrb[0].mxu0
    %v2772 = vadd.f32 %v2659, %v2771
    %v2773 = vpop.f32.mrb[0].mxu0
    %v2774 = vadd.f32 %v2661, %v2773
    %2775 = vmatprep.mubr.bf16.mxu0 %v1021
    %2776 = vmatmul.mubr.bf16.gmra.mrb[0].mxu0 %v1020
    %v2777 = vpop.f32.mrb[0].mxu0
    %v2778 = vadd.f32 %v2665, %v2777
    %v2779 = vpop.f32.mrb[0].mxu0
    %v2780 = vadd.f32 %v2667, %v2779
    %v2781 = vpop.f32.mrb[0].mxu0
    %v2782 = vadd.f32 %v2669, %v2781
    %v2783 = vpop.f32.mrb[0].mxu0
    %v2784 = vadd.f32 %v2671, %v2783
    %2785 = vmatprep.mubr.bf16.mxu0 %v1029
    %2786 = vmatmul.mubr.bf16.gmra.mrb[0].mxu0 %v1028
    %v2787 = vpop.f32.mrb[0].mxu0
    %v2788 = vadd.f32 %v2675, %v2787
    %v2789 = vpop.f32.mrb[0].mxu0
    %v2790 = vadd.f32 %v2677, %v2789
    %v2791 = vpop.f32.mrb[0].mxu0
    %v2792 = vadd.f32 %v2679, %v2791
    %v2793 = vpop.f32.mrb[0].mxu0
    %v2794 = vadd.f32 %v2681, %v2793
    %2795 = vdwg.mxu0
    %2796 = vmatprep.subr.bf16.mxu0 %v2187
    %2797 = vmatpush1.bf16.msra.mxu0 %v2186
    %2798 = vmatprep.subr.bf16.mxu0 %v2191
    %2799 = vmatpush1.bf16.msra.mxu0 %v2190
    %2800 = vmatprep.subr.bf16.mxu0 %v2195
    %2801 = vmatpush1.bf16.msra.mxu0 %v2194
    %2802 = vmatprep.subr.bf16.mxu0 %v2199
    %2803 = vmatpush1.bf16.msra.mxu0 %v2198
    %2804 = vmatprep.subr.bf16.mxu0 %v2203
    %2805 = vmatpush1.bf16.msra.mxu0 %v2202
    %2806 = vmatprep.subr.bf16.mxu0 %v2207
    %2807 = vmatpush1.bf16.msra.mxu0 %v2206
    %2808 = vmatprep.subr.bf16.mxu0 %v2211
    %2809 = vmatpush1.bf16.msra.mxu0 %v2210
    %2810 = vmatprep.subr.bf16.mxu0 %v2215
    %2811 = vmatpush1.bf16.msra.mxu0 %v2214
    %2812 = vmatprep.subr.bf16.mxu0 %v2219
    %2813 = vmatpush1.bf16.msra.mxu0 %v2218
    %2814 = vmatprep.subr.bf16.mxu0 %v2223
    %2815 = vmatpush1.bf16.msra.mxu0 %v2222
    %2816 = vmatprep.subr.bf16.mxu0 %v2227
    %2817 = vmatpush1.bf16.msra.mxu0 %v2226
    %2818 = vmatprep.subr.bf16.mxu0 %v2231
    %2819 = vmatpush1.bf16.msra.mxu0 %v2230
    %2820 = vmatprep.subr.bf16.mxu0 %v2235
    %2821 = vmatpush1.bf16.msra.mxu0 %v2234
    %2822 = vmatprep.subr.bf16.mxu0 %v2239
    %2823 = vmatpush1.bf16.msra.mxu0 %v2238
    %2824 = vmatprep.subr.bf16.mxu0 %v2243
    %2825 = vmatpush1.bf16.msra.mxu0 %v2242
    %2826 = vmatprep.subr.bf16.mxu0 %v2247
    %2827 = vmatpush1.bf16.msra.mxu0 %v2246
    %2828 = vmatprep.mubr.bf16.mxu0 %v975
    %2829 = vmatmul.mubr.bf16.gmra.mrb[0].mxu0 %v974
    %v2830 = vpop.f32.mrb[0].mxu0
    %v2831 = vadd.f32 %v2718, %v2830
    %v2832 = vpop.f32.mrb[0].mxu0
    %v2833 = vadd.f32 %v2720, %v2832
    %v2834 = vpop.f32.mrb[0].mxu0
    %v2835 = vadd.f32 %v2722, %v2834
    %v2836 = vpop.f32.mrb[0].mxu0
    %v2837 = vadd.f32 %v2724, %v2836
    %2838 = vmatprep.mubr.bf16.mxu0 %v983
    %2839 = vmatmul.mubr.bf16.gmra.mrb[0].mxu0 %v982
    %v2840 = vpop.f32.mrb[0].mxu0
    %v2841 = vadd.f32 %v2728, %v2840
    %v2842 = vpop.f32.mrb[0].mxu0
    %v2843 = vadd.f32 %v2730, %v2842
    %v2844 = vpop.f32.mrb[0].mxu0
    %v2845 = vadd.f32 %v2732, %v2844
    %v2846 = vpop.f32.mrb[0].mxu0
    %v2847 = vadd.f32 %v2734, %v2846
    %2848 = vmatprep.mubr.bf16.mxu0 %v991
    %2849 = vmatmul.mubr.bf16.gmra.mrb[0].mxu0 %v990
    %v2850 = vpop.f32.mrb[0].mxu0
    %v2851 = vadd.f32 %v2738, %v2850
    %v2852 = vpop.f32.mrb[0].mxu0
    %v2853 = vadd.f32 %v2740, %v2852
    %v2854 = vpop.f32.mrb[0].mxu0
    %v2855 = vadd.f32 %v2742, %v2854
    %v2856 = vpop.f32.mrb[0].mxu0
    %v2857 = vadd.f32 %v2744, %v2856
    %2858 = vmatprep.mubr.bf16.mxu0 %v999
    %2859 = vmatmul.mubr.bf16.gmra.mrb[0].mxu0 %v998
    %v2860 = vpop.f32.mrb[0].mxu0
    %v2861 = vadd.f32 %v2748, %v2860
    %v2862 = vpop.f32.mrb[0].mxu0
    %v2863 = vadd.f32 %v2750, %v2862
    %v2864 = vpop.f32.mrb[0].mxu0
    %v2865 = vadd.f32 %v2752, %v2864
    %v2866 = vpop.f32.mrb[0].mxu0
    %v2867 = vadd.f32 %v2754, %v2866
    %2868 = vmatprep.mubr.bf16.mxu0 %v1007
    %2869 = vmatmul.mubr.bf16.gmra.mrb[0].mxu0 %v1006
    %v2870 = vpop.f32.mrb[0].mxu0
    %v2871 = vadd.f32 %v2758, %v2870
    %v2872 = vpop.f32.mrb[0].mxu0
    %v2873 = vadd.f32 %v2760, %v2872
    %v2874 = vpop.f32.mrb[0].mxu0
    %v2875 = vadd.f32 %v2762, %v2874
    %v2876 = vpop.f32.mrb[0].mxu0
    %v2877 = vadd.f32 %v2764, %v2876
    %2878 = vmatprep.mubr.bf16.mxu0 %v1015
    %2879 = vmatmul.mubr.bf16.gmra.mrb[0].mxu0 %v1014
    %v2880 = vpop.f32.mrb[0].mxu0
    %v2881 = vadd.f32 %v2768, %v2880
    %v2882 = vpop.f32.mrb[0].mxu0
    %v2883 = vadd.f32 %v2770, %v2882
    %v2884 = vpop.f32.mrb[0].mxu0
    %v2885 = vadd.f32 %v2772, %v2884
    %v2886 = vpop.f32.mrb[0].mxu0
    %v2887 = vadd.f32 %v2774, %v2886
    %2888 = vmatprep.mubr.bf16.mxu0 %v1023
    %2889 = vmatmul.mubr.bf16.gmra.mrb[0].mxu0 %v1022
    %v2890 = vpop.f32.mrb[0].mxu0
    %v2891 = vadd.f32 %v2778, %v2890
    %v2892 = vpop.f32.mrb[0].mxu0
    %v2893 = vadd.f32 %v2780, %v2892
    %v2894 = vpop.f32.mrb[0].mxu0
    %v2895 = vadd.f32 %v2782, %v2894
    %v2896 = vpop.f32.mrb[0].mxu0
    %v2897 = vadd.f32 %v2784, %v2896
    %2898 = vmatprep.mubr.bf16.mxu0 %v1031
    %2899 = vmatmul.mubr.bf16.gmra.mrb[0].mxu0 %v1030
    %v2900 = vpop.f32.mrb[0].mxu0
    %v2901 = vadd.f32 %v2788, %v2900
    %v2902 = vpop.f32.mrb[0].mxu0
    %v2903 = vadd.f32 %v2790, %v2902
    %v2904 = vpop.f32.mrb[0].mxu0
    %v2905 = vadd.f32 %v2792, %v2904
    %v2906 = vpop.f32.mrb[0].mxu0
    %v2907 = vadd.f32 %v2794, %v2906
    %2908 = vdwg.mxu0
    %2909 = vmatprep.subr.bf16.mxu0 %v2251
    %2910 = vmatpush1.bf16.msra.mxu0 %v2250
    %2911 = vmatprep.subr.bf16.mxu0 %v2255
    %2912 = vmatpush1.bf16.msra.mxu0 %v2254
    %2913 = vmatprep.subr.bf16.mxu0 %v2259
    %2914 = vmatpush1.bf16.msra.mxu0 %v2258
    %2915 = vmatprep.subr.bf16.mxu0 %v2263
    %2916 = vmatpush1.bf16.msra.mxu0 %v2262
    %2917 = vmatprep.subr.bf16.mxu0 %v2267
    %2918 = vmatpush1.bf16.msra.mxu0 %v2266
    %2919 = vmatprep.subr.bf16.mxu0 %v2271
    %2920 = vmatpush1.bf16.msra.mxu0 %v2270
    %2921 = vmatprep.subr.bf16.mxu0 %v2275
    %2922 = vmatpush1.bf16.msra.mxu0 %v2274
    %2923 = vmatprep.subr.bf16.mxu0 %v2279
    %2924 = vmatpush1.bf16.msra.mxu0 %v2278
    %2925 = vmatprep.subr.bf16.mxu0 %v2283
    %2926 = vmatpush1.bf16.msra.mxu0 %v2282
    %2927 = vmatprep.subr.bf16.mxu0 %v2287
    %2928 = vmatpush1.bf16.msra.mxu0 %v2286
    %2929 = vmatprep.subr.bf16.mxu0 %v2291
    %2930 = vmatpush1.bf16.msra.mxu0 %v2290
    %2931 = vmatprep.subr.bf16.mxu0 %v2295
    %2932 = vmatpush1.bf16.msra.mxu0 %v2294
    %2933 = vmatprep.subr.bf16.mxu0 %v2299
    %2934 = vmatpush1.bf16.msra.mxu0 %v2298
    %2935 = vmatprep.subr.bf16.mxu0 %v2303
    %2936 = vmatpush1.bf16.msra.mxu0 %v2302
    %2937 = vmatprep.subr.bf16.mxu0 %v2307
    %2938 = vmatpush1.bf16.msra.mxu0 %v2306
    %2939 = vmatprep.subr.bf16.mxu0 %v2311
    %2940 = vmatpush1.bf16.msra.mxu0 %v2310
    %2941 = vmatprep.mubr.bf16.mxu0 %v977
    %2942 = vmatmul.mubr.bf16.gmra.mrb[0].mxu0 %v976
    %v2943 = vpop.f32.mrb[0].mxu0
    %v2944 = vadd.f32 %v2831, %v2943
    %v2945 = vpop.f32.mrb[0].mxu0
    %v2946 = vadd.f32 %v2833, %v2945
    %v2947 = vpop.f32.mrb[0].mxu0
    %v2948 = vadd.f32 %v2835, %v2947
    %v2949 = vpop.f32.mrb[0].mxu0
    %v2950 = vadd.f32 %v2837, %v2949
    %2951 = vmatprep.mubr.bf16.mxu0 %v985
    %2952 = vmatmul.mubr.bf16.gmra.mrb[0].mxu0 %v984
    %v2953 = vpop.f32.mrb[0].mxu0
    %v2954 = vadd.f32 %v2841, %v2953
    %v2955 = vpop.f32.mrb[0].mxu0
    %v2956 = vadd.f32 %v2843, %v2955
    %v2957 = vpop.f32.mrb[0].mxu0
    %v2958 = vadd.f32 %v2845, %v2957
    %v2959 = vpop.f32.mrb[0].mxu0
    %v2960 = vadd.f32 %v2847, %v2959
    %2961 = vmatprep.mubr.bf16.mxu0 %v993
    %2962 = vmatmul.mubr.bf16.gmra.mrb[0].mxu0 %v992
    %v2963 = vpop.f32.mrb[0].mxu0
    %v2964 = vadd.f32 %v2851, %v2963
    %v2965 = vpop.f32.mrb[0].mxu0
    %v2966 = vadd.f32 %v2853, %v2965
    %v2967 = vpop.f32.mrb[0].mxu0
    %v2968 = vadd.f32 %v2855, %v2967
    %v2969 = vpop.f32.mrb[0].mxu0
    %v2970 = vadd.f32 %v2857, %v2969
    %2971 = vmatprep.mubr.bf16.mxu0 %v1001
    %2972 = vmatmul.mubr.bf16.gmra.mrb[0].mxu0 %v1000
    %v2973 = vpop.f32.mrb[0].mxu0
    %v2974 = vadd.f32 %v2861, %v2973
    %v2975 = vpop.f32.mrb[0].mxu0
    %v2976 = vadd.f32 %v2863, %v2975
    %v2977 = vpop.f32.mrb[0].mxu0
    %v2978 = vadd.f32 %v2865, %v2977
    %v2979 = vpop.f32.mrb[0].mxu0
    %v2980 = vadd.f32 %v2867, %v2979
    %2981 = vmatprep.mubr.bf16.mxu0 %v1009
    %2982 = vmatmul.mubr.bf16.gmra.mrb[0].mxu0 %v1008
    %v2983 = vpop.f32.mrb[0].mxu0
    %v2984 = vadd.f32 %v2871, %v2983
    %v2985 = vpop.f32.mrb[0].mxu0
    %v2986 = vadd.f32 %v2873, %v2985
    %v2987 = vpop.f32.mrb[0].mxu0
    %v2988 = vadd.f32 %v2875, %v2987
    %v2989 = vpop.f32.mrb[0].mxu0
    %v2990 = vadd.f32 %v2877, %v2989
    %2991 = vmatprep.mubr.bf16.mxu0 %v1017
    %2992 = vmatmul.mubr.bf16.gmra.mrb[0].mxu0 %v1016
    %v2993 = vpop.f32.mrb[0].mxu0
    %v2994 = vadd.f32 %v2881, %v2993
    %v2995 = vpop.f32.mrb[0].mxu0
    %v2996 = vadd.f32 %v2883, %v2995
    %v2997 = vpop.f32.mrb[0].mxu0
    %v2998 = vadd.f32 %v2885, %v2997
    %v2999 = vpop.f32.mrb[0].mxu0
    %v3000 = vadd.f32 %v2887, %v2999
    %3001 = vmatprep.mubr.bf16.mxu0 %v1025
    %3002 = vmatmul.mubr.bf16.gmra.mrb[0].mxu0 %v1024
    %v3003 = vpop.f32.mrb[0].mxu0
    %v3004 = vadd.f32 %v2891, %v3003
    %v3005 = vpop.f32.mrb[0].mxu0
    %v3006 = vadd.f32 %v2893, %v3005
    %v3007 = vpop.f32.mrb[0].mxu0
    %v3008 = vadd.f32 %v2895, %v3007
    %v3009 = vpop.f32.mrb[0].mxu0
    %v3010 = vadd.f32 %v2897, %v3009
    %3011 = vmatprep.mubr.bf16.mxu0 %v1033
    %3012 = vmatmul.mubr.bf16.gmra.mrb[0].mxu0 %v1032
    %v3013 = vpop.f32.mrb[0].mxu0
    %v3014 = vadd.f32 %v2901, %v3013
    %v3015 = vpop.f32.mrb[0].mxu0
    %v3016 = vadd.f32 %v2903, %v3015
    %v3017 = vpop.f32.mrb[0].mxu0
    %v3018 = vadd.f32 %v2905, %v3017
    %v3019 = vpop.f32.mrb[0].mxu0
    %v3020 = vadd.f32 %v2907, %v3019
    %3021 = vdwg.mxu0
    %3022 = vmatprep.subr.bf16.mxu0 %v2061
    %3023 = vmatpush1.bf16.msra.mxu0 %v2060
    %3024 = vmatprep.subr.bf16.mxu0 %v2065
    %3025 = vmatpush1.bf16.msra.mxu0 %v2064
    %3026 = vmatprep.subr.bf16.mxu0 %v2069
    %3027 = vmatpush1.bf16.msra.mxu0 %v2068
    %3028 = vmatprep.subr.bf16.mxu0 %v2073
    %3029 = vmatpush1.bf16.msra.mxu0 %v2072
    %3030 = vmatprep.subr.bf16.mxu0 %v2077
    %3031 = vmatpush1.bf16.msra.mxu0 %v2076
    %3032 = vmatprep.subr.bf16.mxu0 %v2081
    %3033 = vmatpush1.bf16.msra.mxu0 %v2080
    %3034 = vmatprep.subr.bf16.mxu0 %v2085
    %3035 = vmatpush1.bf16.msra.mxu0 %v2084
    %3036 = vmatprep.subr.bf16.mxu0 %v2089
    %3037 = vmatpush1.bf16.msra.mxu0 %v2088
    %3038 = vmatprep.subr.bf16.mxu0 %v2093
    %3039 = vmatpush1.bf16.msra.mxu0 %v2092
    %3040 = vmatprep.subr.bf16.mxu0 %v2097
    %3041 = vmatpush1.bf16.msra.mxu0 %v2096
    %3042 = vmatprep.subr.bf16.mxu0 %v2101
    %3043 = vmatpush1.bf16.msra.mxu0 %v2100
    %3044 = vmatprep.subr.bf16.mxu0 %v2105
    %3045 = vmatpush1.bf16.msra.mxu0 %v2104
    %3046 = vmatprep.subr.bf16.mxu0 %v2109
    %3047 = vmatpush1.bf16.msra.mxu0 %v2108
    %3048 = vmatprep.subr.bf16.mxu0 %v2113
    %3049 = vmatpush1.bf16.msra.mxu0 %v2112
    %3050 = vmatprep.subr.bf16.mxu0 %v2117
    %3051 = vmatpush1.bf16.msra.mxu0 %v2116
    %3052 = vmatprep.subr.bf16.mxu0 %v2121
    %3053 = vmatpush1.bf16.msra.mxu0 %v2120
    %3054 = vmatprep.mubr.bf16.mxu0 %v971
    %3055 = vmatmul.mubr.bf16.gmra.mrb[0].mxu0 %v970
    %v3056 = vpop.f32.mrb[0].mxu0
    %v3057 = vadd.f32 0.0, %v3056
    %v3058 = vpop.f32.mrb[0].mxu0
    %v3059 = vadd.f32 0.0, %v3058
    %v3060 = vpop.f32.mrb[0].mxu0
    %v3061 = vadd.f32 0.0, %v3060
    %v3062 = vpop.f32.mrb[0].mxu0
    %v3063 = vadd.f32 0.0, %v3062
    %3064 = vmatprep.mubr.bf16.mxu0 %v979
    %3065 = vmatmul.mubr.bf16.gmra.mrb[0].mxu0 %v978
    %v3066 = vpop.f32.mrb[0].mxu0
    %v3067 = vadd.f32 0.0, %v3066
    %v3068 = vpop.f32.mrb[0].mxu0
    %v3069 = vadd.f32 0.0, %v3068
    %v3070 = vpop.f32.mrb[0].mxu0
    %v3071 = vadd.f32 0.0, %v3070
    %v3072 = vpop.f32.mrb[0].mxu0
    %v3073 = vadd.f32 0.0, %v3072
    %3074 = vmatprep.mubr.bf16.mxu0 %v987
    %3075 = vmatmul.mubr.bf16.gmra.mrb[0].mxu0 %v986
    %v3076 = vpop.f32.mrb[0].mxu0
    %v3077 = vadd.f32 0.0, %v3076
    %v3078 = vpop.f32.mrb[0].mxu0
    %v3079 = vadd.f32 0.0, %v3078
    %v3080 = vpop.f32.mrb[0].mxu0
    %v3081 = vadd.f32 0.0, %v3080
    %v3082 = vpop.f32.mrb[0].mxu0
    %v3083 = vadd.f32 0.0, %v3082
    %3084 = vmatprep.mubr.bf16.mxu0 %v995
    %3085 = vmatmul.mubr.bf16.gmra.mrb[0].mxu0 %v994
    %v3086 = vpop.f32.mrb[0].mxu0
    %v3087 = vadd.f32 0.0, %v3086
    %v3088 = vpop.f32.mrb[0].mxu0
    %v3089 = vadd.f32 0.0, %v3088
    %v3090 = vpop.f32.mrb[0].mxu0
    %v3091 = vadd.f32 0.0, %v3090
    %v3092 = vpop.f32.mrb[0].mxu0
    %v3093 = vadd.f32 0.0, %v3092
    %3094 = vmatprep.mubr.bf16.mxu0 %v1003
    %3095 = vmatmul.mubr.bf16.gmra.mrb[0].mxu0 %v1002
    %v3096 = vpop.f32.mrb[0].mxu0
    %v3097 = vadd.f32 0.0, %v3096
    %v3098 = vpop.f32.mrb[0].mxu0
    %v3099 = vadd.f32 0.0, %v3098
    %v3100 = vpop.f32.mrb[0].mxu0
    %v3101 = vadd.f32 0.0, %v3100
    %v3102 = vpop.f32.mrb[0].mxu0
    %v3103 = vadd.f32 0.0, %v3102
    %3104 = vmatprep.mubr.bf16.mxu0 %v1011
    %3105 = vmatmul.mubr.bf16.gmra.mrb[0].mxu0 %v1010
    %v3106 = vpop.f32.mrb[0].mxu0
    %v3107 = vadd.f32 0.0, %v3106
    %v3108 = vpop.f32.mrb[0].mxu0
    %v3109 = vadd.f32 0.0, %v3108
    %v3110 = vpop.f32.mrb[0].mxu0
    %v3111 = vadd.f32 0.0, %v3110
    %v3112 = vpop.f32.mrb[0].mxu0
    %v3113 = vadd.f32 0.0, %v3112
    %3114 = vmatprep.mubr.bf16.mxu0 %v1019
    %3115 = vmatmul.mubr.bf16.gmra.mrb[0].mxu0 %v1018
    %v3116 = vpop.f32.mrb[0].mxu0
    %v3117 = vadd.f32 0.0, %v3116
    %v3118 = vpop.f32.mrb[0].mxu0
    %v3119 = vadd.f32 0.0, %v3118
    %v3120 = vpop.f32.mrb[0].mxu0
    %v3121 = vadd.f32 0.0, %v3120
    %v3122 = vpop.f32.mrb[0].mxu0
    %v3123 = vadd.f32 0.0, %v3122
    %3124 = vmatprep.mubr.bf16.mxu0 %v1027
    %3125 = vmatmul.mubr.bf16.gmra.mrb[0].mxu0 %v1026
    %v3126 = vpop.f32.mrb[0].mxu0
    %v3127 = vadd.f32 0.0, %v3126
    %v3128 = vpop.f32.mrb[0].mxu0
    %v3129 = vadd.f32 0.0, %v3128
    %v3130 = vpop.f32.mrb[0].mxu0
    %v3131 = vadd.f32 0.0, %v3130
    %v3132 = vpop.f32.mrb[0].mxu0
    %v3133 = vadd.f32 0.0, %v3132
    %3134 = vdwg.mxu0
    %3135 = vmatprep.subr.bf16.mxu0 %v2125
    %3136 = vmatpush1.bf16.msra.mxu0 %v2124
    %3137 = vmatprep.subr.bf16.mxu0 %v2129
    %3138 = vmatpush1.bf16.msra.mxu0 %v2128
    %3139 = vmatprep.subr.bf16.mxu0 %v2133
    %3140 = vmatpush1.bf16.msra.mxu0 %v2132
    %3141 = vmatprep.subr.bf16.mxu0 %v2137
    %3142 = vmatpush1.bf16.msra.mxu0 %v2136
    %3143 = vmatprep.subr.bf16.mxu0 %v2141
    %3144 = vmatpush1.bf16.msra.mxu0 %v2140
    %3145 = vmatprep.subr.bf16.mxu0 %v2145
    %3146 = vmatpush1.bf16.msra.mxu0 %v2144
    %3147 = vmatprep.subr.bf16.mxu0 %v2149
    %3148 = vmatpush1.bf16.msra.mxu0 %v2148
    %3149 = vmatprep.subr.bf16.mxu0 %v2153
    %3150 = vmatpush1.bf16.msra.mxu0 %v2152
    %3151 = vmatprep.subr.bf16.mxu0 %v2157
    %3152 = vmatpush1.bf16.msra.mxu0 %v2156
    %3153 = vmatprep.subr.bf16.mxu0 %v2161
    %3154 = vmatpush1.bf16.msra.mxu0 %v2160
    %3155 = vmatprep.subr.bf16.mxu0 %v2165
    %3156 = vmatpush1.bf16.msra.mxu0 %v2164
    %3157 = vmatprep.subr.bf16.mxu0 %v2169
    %3158 = vmatpush1.bf16.msra.mxu0 %v2168
    %3159 = vmatprep.subr.bf16.mxu0 %v2173
    %3160 = vmatpush1.bf16.msra.mxu0 %v2172
    %3161 = vmatprep.subr.bf16.mxu0 %v2177
    %3162 = vmatpush1.bf16.msra.mxu0 %v2176
    %3163 = vmatprep.subr.bf16.mxu0 %v2181
    %3164 = vmatpush1.bf16.msra.mxu0 %v2180
    %3165 = vmatprep.subr.bf16.mxu0 %v2185
    %3166 = vmatpush1.bf16.msra.mxu0 %v2184
    %3167 = vmatprep.mubr.bf16.mxu0 %v973
    %3168 = vmatmul.mubr.bf16.gmra.mrb[0].mxu0 %v972
    %v3169 = vpop.f32.mrb[0].mxu0
    %v3170 = vadd.f32 %v3057, %v3169
    %v3171 = vpop.f32.mrb[0].mxu0
    %v3172 = vadd.f32 %v3059, %v3171
    %v3173 = vpop.f32.mrb[0].mxu0
    %v3174 = vadd.f32 %v3061, %v3173
    %v3175 = vpop.f32.mrb[0].mxu0
    %v3176 = vadd.f32 %v3063, %v3175
    %3177 = vmatprep.mubr.bf16.mxu0 %v981
    %3178 = vmatmul.mubr.bf16.gmra.mrb[0].mxu0 %v980
    %v3179 = vpop.f32.mrb[0].mxu0
    %v3180 = vadd.f32 %v3067, %v3179
    %v3181 = vpop.f32.mrb[0].mxu0
    %v3182 = vadd.f32 %v3069, %v3181
    %v3183 = vpop.f32.mrb[0].mxu0
    %v3184 = vadd.f32 %v3071, %v3183
    %v3185 = vpop.f32.mrb[0].mxu0
    %v3186 = vadd.f32 %v3073, %v3185
    %3187 = vmatprep.mubr.bf16.mxu0 %v989
    %3188 = vmatmul.mubr.bf16.gmra.mrb[0].mxu0 %v988
    %v3189 = vpop.f32.mrb[0].mxu0
    %v3190 = vadd.f32 %v3077, %v3189
    %v3191 = vpop.f32.mrb[0].mxu0
    %v3192 = vadd.f32 %v3079, %v3191
    %v3193 = vpop.f32.mrb[0].mxu0
    %v3194 = vadd.f32 %v3081, %v3193
    %v3195 = vpop.f32.mrb[0].mxu0
    %v3196 = vadd.f32 %v3083, %v3195
    %3197 = vmatprep.mubr.bf16.mxu0 %v997
    %3198 = vmatmul.mubr.bf16.gmra.mrb[0].mxu0 %v996
    %v3199 = vpop.f32.mrb[0].mxu0
    %v3200 = vadd.f32 %v3087, %v3199
    %v3201 = vpop.f32.mrb[0].mxu0
    %v3202 = vadd.f32 %v3089, %v3201
    %v3203 = vpop.f32.mrb[0].mxu0
    %v3204 = vadd.f32 %v3091, %v3203
    %v3205 = vpop.f32.mrb[0].mxu0
    %v3206 = vadd.f32 %v3093, %v3205
    %3207 = vmatprep.mubr.bf16.mxu0 %v1005
    %3208 = vmatmul.mubr.bf16.gmra.mrb[0].mxu0 %v1004
    %v3209 = vpop.f32.mrb[0].mxu0
    %v3210 = vadd.f32 %v3097, %v3209
    %v3211 = vpop.f32.mrb[0].mxu0
    %v3212 = vadd.f32 %v3099, %v3211
    %v3213 = vpop.f32.mrb[0].mxu0
    %v3214 = vadd.f32 %v3101, %v3213
    %v3215 = vpop.f32.mrb[0].mxu0
    %v3216 = vadd.f32 %v3103, %v3215
    %3217 = vmatprep.mubr.bf16.mxu0 %v1013
    %3218 = vmatmul.mubr.bf16.gmra.mrb[0].mxu0 %v1012
    %v3219 = vpop.f32.mrb[0].mxu0
    %v3220 = vadd.f32 %v3107, %v3219
    %v3221 = vpop.f32.mrb[0].mxu0
    %v3222 = vadd.f32 %v3109, %v3221
    %v3223 = vpop.f32.mrb[0].mxu0
    %v3224 = vadd.f32 %v3111, %v3223
    %v3225 = vpop.f32.mrb[0].mxu0
    %v3226 = vadd.f32 %v3113, %v3225
    %3227 = vmatprep.mubr.bf16.mxu0 %v1021
    %3228 = vmatmul.mubr.bf16.gmra.mrb[0].mxu0 %v1020
    %v3229 = vpop.f32.mrb[0].mxu0
    %v3230 = vadd.f32 %v3117, %v3229
    %v3231 = vpop.f32.mrb[0].mxu0
    %v3232 = vadd.f32 %v3119, %v3231
    %v3233 = vpop.f32.mrb[0].mxu0
    %v3234 = vadd.f32 %v3121, %v3233
    %v3235 = vpop.f32.mrb[0].mxu0
    %v3236 = vadd.f32 %v3123, %v3235
    %3237 = vmatprep.mubr.bf16.mxu0 %v1029
    %3238 = vmatmul.mubr.bf16.gmra.mrb[0].mxu0 %v1028
    %v3239 = vpop.f32.mrb[0].mxu0
    %v3240 = vadd.f32 %v3127, %v3239
    %v3241 = vpop.f32.mrb[0].mxu0
    %v3242 = vadd.f32 %v3129, %v3241
    %v3243 = vpop.f32.mrb[0].mxu0
    %v3244 = vadd.f32 %v3131, %v3243
    %v3245 = vpop.f32.mrb[0].mxu0
    %v3246 = vadd.f32 %v3133, %v3245
    %3247 = vdwg.mxu0
    %3248 = vmatprep.subr.bf16.mxu0 %v2189
    %3249 = vmatpush1.bf16.msra.mxu0 %v2188
    %3250 = vmatprep.subr.bf16.mxu0 %v2193
    %3251 = vmatpush1.bf16.msra.mxu0 %v2192
    %3252 = vmatprep.subr.bf16.mxu0 %v2197
    %3253 = vmatpush1.bf16.msra.mxu0 %v2196
    %3254 = vmatprep.subr.bf16.mxu0 %v2201
    %3255 = vmatpush1.bf16.msra.mxu0 %v2200
    %3256 = vmatprep.subr.bf16.mxu0 %v2205
    %3257 = vmatpush1.bf16.msra.mxu0 %v2204
    %3258 = vmatprep.subr.bf16.mxu0 %v2209
    %3259 = vmatpush1.bf16.msra.mxu0 %v2208
    %3260 = vmatprep.subr.bf16.mxu0 %v2213
    %3261 = vmatpush1.bf16.msra.mxu0 %v2212
    %3262 = vmatprep.subr.bf16.mxu0 %v2217
    %3263 = vmatpush1.bf16.msra.mxu0 %v2216
    %3264 = vmatprep.subr.bf16.mxu0 %v2221
    %3265 = vmatpush1.bf16.msra.mxu0 %v2220
    %3266 = vmatprep.subr.bf16.mxu0 %v2225
    %3267 = vmatpush1.bf16.msra.mxu0 %v2224
    %3268 = vmatprep.subr.bf16.mxu0 %v2229
    %3269 = vmatpush1.bf16.msra.mxu0 %v2228
    %3270 = vmatprep.subr.bf16.mxu0 %v2233
    %3271 = vmatpush1.bf16.msra.mxu0 %v2232
    %3272 = vmatprep.subr.bf16.mxu0 %v2237
    %3273 = vmatpush1.bf16.msra.mxu0 %v2236
    %3274 = vmatprep.subr.bf16.mxu0 %v2241
    %3275 = vmatpush1.bf16.msra.mxu0 %v2240
    %3276 = vmatprep.subr.bf16.mxu0 %v2245
    %3277 = vmatpush1.bf16.msra.mxu0 %v2244
    %3278 = vmatprep.subr.bf16.mxu0 %v2249
    %3279 = vmatpush1.bf16.msra.mxu0 %v2248
    %3280 = vmatprep.mubr.bf16.mxu0 %v975
    %3281 = vmatmul.mubr.bf16.gmra.mrb[0].mxu0 %v974
    %v3282 = vpop.f32.mrb[0].mxu0
    %v3283 = vadd.f32 %v3170, %v3282
    %v3284 = vpop.f32.mrb[0].mxu0
    %v3285 = vadd.f32 %v3172, %v3284
    %v3286 = vpop.f32.mrb[0].mxu0
    %v3287 = vadd.f32 %v3174, %v3286
    %v3288 = vpop.f32.mrb[0].mxu0
    %v3289 = vadd.f32 %v3176, %v3288
    %3290 = vmatprep.mubr.bf16.mxu0 %v983
    %3291 = vmatmul.mubr.bf16.gmra.mrb[0].mxu0 %v982
    %v3292 = vpop.f32.mrb[0].mxu0
    %v3293 = vadd.f32 %v3180, %v3292
    %v3294 = vpop.f32.mrb[0].mxu0
    %v3295 = vadd.f32 %v3182, %v3294
    %v3296 = vpop.f32.mrb[0].mxu0
    %v3297 = vadd.f32 %v3184, %v3296
    %v3298 = vpop.f32.mrb[0].mxu0
    %v3299 = vadd.f32 %v3186, %v3298
    %3300 = vmatprep.mubr.bf16.mxu0 %v991
    %3301 = vmatmul.mubr.bf16.gmra.mrb[0].mxu0 %v990
    %v3302 = vpop.f32.mrb[0].mxu0
    %v3303 = vadd.f32 %v3190, %v3302
    %v3304 = vpop.f32.mrb[0].mxu0
    %v3305 = vadd.f32 %v3192, %v3304
    %v3306 = vpop.f32.mrb[0].mxu0
    %v3307 = vadd.f32 %v3194, %v3306
    %v3308 = vpop.f32.mrb[0].mxu0
    %v3309 = vadd.f32 %v3196, %v3308
    %3310 = vmatprep.mubr.bf16.mxu0 %v999
    %3311 = vmatmul.mubr.bf16.gmra.mrb[0].mxu0 %v998
    %v3312 = vpop.f32.mrb[0].mxu0
    %v3313 = vadd.f32 %v3200, %v3312
    %v3314 = vpop.f32.mrb[0].mxu0
    %v3315 = vadd.f32 %v3202, %v3314
    %v3316 = vpop.f32.mrb[0].mxu0
    %v3317 = vadd.f32 %v3204, %v3316
    %v3318 = vpop.f32.mrb[0].mxu0
    %v3319 = vadd.f32 %v3206, %v3318
    %3320 = vmatprep.mubr.bf16.mxu0 %v1007
    %3321 = vmatmul.mubr.bf16.gmra.mrb[0].mxu0 %v1006
    %v3322 = vpop.f32.mrb[0].mxu0
    %v3323 = vadd.f32 %v3210, %v3322
    %v3324 = vpop.f32.mrb[0].mxu0
    %v3325 = vadd.f32 %v3212, %v3324
    %v3326 = vpop.f32.mrb[0].mxu0
    %v3327 = vadd.f32 %v3214, %v3326
    %v3328 = vpop.f32.mrb[0].mxu0
    %v3329 = vadd.f32 %v3216, %v3328
    %3330 = vmatprep.mubr.bf16.mxu0 %v1015
    %3331 = vmatmul.mubr.bf16.gmra.mrb[0].mxu0 %v1014
    %v3332 = vpop.f32.mrb[0].mxu0
    %v3333 = vadd.f32 %v3220, %v3332
    %v3334 = vpop.f32.mrb[0].mxu0
    %v3335 = vadd.f32 %v3222, %v3334
    %v3336 = vpop.f32.mrb[0].mxu0
    %v3337 = vadd.f32 %v3224, %v3336
    %v3338 = vpop.f32.mrb[0].mxu0
    %v3339 = vadd.f32 %v3226, %v3338
    %3340 = vmatprep.mubr.bf16.mxu0 %v1023
    %3341 = vmatmul.mubr.bf16.gmra.mrb[0].mxu0 %v1022
    %v3342 = vpop.f32.mrb[0].mxu0
    %v3343 = vadd.f32 %v3230, %v3342
    %v3344 = vpop.f32.mrb[0].mxu0
    %v3345 = vadd.f32 %v3232, %v3344
    %v3346 = vpop.f32.mrb[0].mxu0
    %v3347 = vadd.f32 %v3234, %v3346
    %v3348 = vpop.f32.mrb[0].mxu0
    %v3349 = vadd.f32 %v3236, %v3348
    %3350 = vmatprep.mubr.bf16.mxu0 %v1031
    %3351 = vmatmul.mubr.bf16.gmra.mrb[0].mxu0 %v1030
    %v3352 = vpop.f32.mrb[0].mxu0
    %v3353 = vadd.f32 %v3240, %v3352
    %v3354 = vpop.f32.mrb[0].mxu0
    %v3355 = vadd.f32 %v3242, %v3354
    %v3356 = vpop.f32.mrb[0].mxu0
    %v3357 = vadd.f32 %v3244, %v3356
    %v3358 = vpop.f32.mrb[0].mxu0
    %v3359 = vadd.f32 %v3246, %v3358
    %3360 = vdwg.mxu0
    %3361 = vmatprep.subr.bf16.mxu0 %v2253
    %3362 = vmatpush1.bf16.msra.mxu0 %v2252
    %3363 = vmatprep.subr.bf16.mxu0 %v2257
    %3364 = vmatpush1.bf16.msra.mxu0 %v2256
    %3365 = vmatprep.subr.bf16.mxu0 %v2261
    %3366 = vmatpush1.bf16.msra.mxu0 %v2260
    %3367 = vmatprep.subr.bf16.mxu0 %v2265
    %3368 = vmatpush1.bf16.msra.mxu0 %v2264
    %3369 = vmatprep.subr.bf16.mxu0 %v2269
    %3370 = vmatpush1.bf16.msra.mxu0 %v2268
    %3371 = vmatprep.subr.bf16.mxu0 %v2273
    %3372 = vmatpush1.bf16.msra.mxu0 %v2272
    %3373 = vmatprep.subr.bf16.mxu0 %v2277
    %3374 = vmatpush1.bf16.msra.mxu0 %v2276
    %3375 = vmatprep.subr.bf16.mxu0 %v2281
    %3376 = vmatpush1.bf16.msra.mxu0 %v2280
    %3377 = vmatprep.subr.bf16.mxu0 %v2285
    %3378 = vmatpush1.bf16.msra.mxu0 %v2284
    %3379 = vmatprep.subr.bf16.mxu0 %v2289
    %3380 = vmatpush1.bf16.msra.mxu0 %v2288
    %3381 = vmatprep.subr.bf16.mxu0 %v2293
    %3382 = vmatpush1.bf16.msra.mxu0 %v2292
    %3383 = vmatprep.subr.bf16.mxu0 %v2297
    %3384 = vmatpush1.bf16.msra.mxu0 %v2296
    %3385 = vmatprep.subr.bf16.mxu0 %v2301
    %3386 = vmatpush1.bf16.msra.mxu0 %v2300
    %3387 = vmatprep.subr.bf16.mxu0 %v2305
    %3388 = vmatpush1.bf16.msra.mxu0 %v2304
    %3389 = vmatprep.subr.bf16.mxu0 %v2309
    %3390 = vmatpush1.bf16.msra.mxu0 %v2308
    %3391 = vmatprep.subr.bf16.mxu0 %v2313
    %3392 = vmatpush1.bf16.msra.mxu0 %v2312
    %3393 = vmatprep.mubr.bf16.mxu0 %v977
    %3394 = vmatmul.mubr.bf16.gmra.mrb[0].mxu0 %v976
    %v3395 = vpop.f32.mrb[0].mxu0
    %v3396 = vadd.f32 %v3283, %v3395
    %v3397 = vpop.f32.mrb[0].mxu0
    %v3398 = vadd.f32 %v3285, %v3397
    %v3399 = vpop.f32.mrb[0].mxu0
    %v3400 = vadd.f32 %v3287, %v3399
    %v3401 = vpop.f32.mrb[0].mxu0
    %v3402 = vadd.f32 %v3289, %v3401
    %3403 = vmatprep.mubr.bf16.mxu0 %v985
    %3404 = vmatmul.mubr.bf16.gmra.mrb[0].mxu0 %v984
    %v3405 = vpop.f32.mrb[0].mxu0
    %v3406 = vadd.f32 %v3293, %v3405
    %v3407 = vpop.f32.mrb[0].mxu0
    %v3408 = vadd.f32 %v3295, %v3407
    %v3409 = vpop.f32.mrb[0].mxu0
    %v3410 = vadd.f32 %v3297, %v3409
    %v3411 = vpop.f32.mrb[0].mxu0
    %v3412 = vadd.f32 %v3299, %v3411
    %3413 = vmatprep.mubr.bf16.mxu0 %v993
    %3414 = vmatmul.mubr.bf16.gmra.mrb[0].mxu0 %v992
    %v3415 = vpop.f32.mrb[0].mxu0
    %v3416 = vadd.f32 %v3303, %v3415
    %v3417 = vpop.f32.mrb[0].mxu0
    %v3418 = vadd.f32 %v3305, %v3417
    %v3419 = vpop.f32.mrb[0].mxu0
    %v3420 = vadd.f32 %v3307, %v3419
    %v3421 = vpop.f32.mrb[0].mxu0
    %v3422 = vadd.f32 %v3309, %v3421
    %3423 = vmatprep.mubr.bf16.mxu0 %v1001
    %3424 = vmatmul.mubr.bf16.gmra.mrb[0].mxu0 %v1000
    %v3425 = vpop.f32.mrb[0].mxu0
    %v3426 = vadd.f32 %v3313, %v3425
    %v3427 = vpop.f32.mrb[0].mxu0
    %v3428 = vadd.f32 %v3315, %v3427
    %v3429 = vpop.f32.mrb[0].mxu0
    %v3430 = vadd.f32 %v3317, %v3429
    %v3431 = vpop.f32.mrb[0].mxu0
    %v3432 = vadd.f32 %v3319, %v3431
    %3433 = vmatprep.mubr.bf16.mxu0 %v1009
    %3434 = vmatmul.mubr.bf16.gmra.mrb[0].mxu0 %v1008
    %v3435 = vpop.f32.mrb[0].mxu0
    %v3436 = vadd.f32 %v3323, %v3435
    %v3437 = vpop.f32.mrb[0].mxu0
    %v3438 = vadd.f32 %v3325, %v3437
    %v3439 = vpop.f32.mrb[0].mxu0
    %v3440 = vadd.f32 %v3327, %v3439
    %v3441 = vpop.f32.mrb[0].mxu0
    %v3442 = vadd.f32 %v3329, %v3441
    %3443 = vmatprep.mubr.bf16.mxu0 %v1017
    %3444 = vmatmul.mubr.bf16.gmra.mrb[0].mxu0 %v1016
    %v3445 = vpop.f32.mrb[0].mxu0
    %v3446 = vadd.f32 %v3333, %v3445
    %v3447 = vpop.f32.mrb[0].mxu0
    %v3448 = vadd.f32 %v3335, %v3447
    %v3449 = vpop.f32.mrb[0].mxu0
    %v3450 = vadd.f32 %v3337, %v3449
    %v3451 = vpop.f32.mrb[0].mxu0
    %v3452 = vadd.f32 %v3339, %v3451
    %3453 = vmatprep.mubr.bf16.mxu0 %v1025
    %3454 = vmatmul.mubr.bf16.gmra.mrb[0].mxu0 %v1024
    %v3455 = vpop.f32.mrb[0].mxu0
    %v3456 = vadd.f32 %v3343, %v3455
    %v3457 = vpop.f32.mrb[0].mxu0
    %v3458 = vadd.f32 %v3345, %v3457
    %v3459 = vpop.f32.mrb[0].mxu0
    %v3460 = vadd.f32 %v3347, %v3459
    %v3461 = vpop.f32.mrb[0].mxu0
    %v3462 = vadd.f32 %v3349, %v3461
    %3463 = vmatprep.mubr.bf16.mxu0 %v1033
    %3464 = vmatmul.mubr.bf16.gmra.mrb[0].mxu0 %v1032
    %v3465 = vpop.f32.mrb[0].mxu0
    %v3466 = vadd.f32 %v3353, %v3465
    %v3467 = vpop.f32.mrb[0].mxu0
    %v3468 = vadd.f32 %v3355, %v3467
    %v3469 = vpop.f32.mrb[0].mxu0
    %v3470 = vadd.f32 %v3357, %v3469
    %v3471 = vpop.f32.mrb[0].mxu0
    %v3472 = vadd.f32 %v3359, %v3471
    %3473 = vdwg.mxu0
    %v3474 = vpack.c.bf16 %v2948, %v2944
    %v3475 = vpack.c.bf16 %v2950, %v2946
    %v3476 = vpack.c.bf16 %v3400, %v3396
    %v3477 = vpack.c.bf16 %v3402, %v3398
    %v3478 = vpack.c.bf16 %v2958, %v2954
    %v3479 = vpack.c.bf16 %v2960, %v2956
    %v3480 = vpack.c.bf16 %v3410, %v3406
    %v3481 = vpack.c.bf16 %v3412, %v3408
    %v3482 = vpack.c.bf16 %v2968, %v2964
    %v3483 = vpack.c.bf16 %v2970, %v2966
    %v3484 = vpack.c.bf16 %v3420, %v3416
    %v3485 = vpack.c.bf16 %v3422, %v3418
    %v3486 = vpack.c.bf16 %v2978, %v2974
    %v3487 = vpack.c.bf16 %v2980, %v2976
    %v3488 = vpack.c.bf16 %v3430, %v3426
    %v3489 = vpack.c.bf16 %v3432, %v3428
    %v3490 = vpack.c.bf16 %v2988, %v2984
    %v3491 = vpack.c.bf16 %v2990, %v2986
    %v3492 = vpack.c.bf16 %v3440, %v3436
    %v3493 = vpack.c.bf16 %v3442, %v3438
    %v3494 = vpack.c.bf16 %v2998, %v2994
    %v3495 = vpack.c.bf16 %v3000, %v2996
    %v3496 = vpack.c.bf16 %v3450, %v3446
    %v3497 = vpack.c.bf16 %v3452, %v3448
    %v3498 = vpack.c.bf16 %v3008, %v3004
    %v3499 = vpack.c.bf16 %v3010, %v3006
    %v3500 = vpack.c.bf16 %v3460, %v3456
    %v3501 = vpack.c.bf16 %v3462, %v3458
    %v3502 = vpack.c.bf16 %v3018, %v3014
    %v3503 = vpack.c.bf16 %v3020, %v3016
    %v3504 = vpack.c.bf16 %v3470, %v3466
    %v3505 = vpack.c.bf16 %v3472, %v3468
    %v3506 = vmax.bf16 %v3474, 0
    %v3507 = vmax.bf16 %v3475, 0
    %v3508 = vmax.bf16 %v3476, 0
    %v3509 = vmax.bf16 %v3477, 0
    %v3510 = vmax.bf16 %v3478, 0
    %v3511 = vmax.bf16 %v3479, 0
    %v3512 = vmax.bf16 %v3480, 0
    %v3513 = vmax.bf16 %v3481, 0
    %v3514 = vmax.bf16 %v3482, 0
    %v3515 = vmax.bf16 %v3483, 0
    %v3516 = vmax.bf16 %v3484, 0
    %v3517 = vmax.bf16 %v3485, 0
    %v3518 = vmax.bf16 %v3486, 0
    %v3519 = vmax.bf16 %v3487, 0
    %v3520 = vmax.bf16 %v3488, 0
    %v3521 = vmax.bf16 %v3489, 0
    %v3522 = vmax.bf16 %v3490, 0
    %v3523 = vmax.bf16 %v3491, 0
    %v3524 = vmax.bf16 %v3492, 0
    %v3525 = vmax.bf16 %v3493, 0
    %v3526 = vmax.bf16 %v3494, 0
    %v3527 = vmax.bf16 %v3495, 0
    %v3528 = vmax.bf16 %v3496, 0
    %v3529 = vmax.bf16 %v3497, 0
    %v3530 = vmax.bf16 %v3498, 0
    %v3531 = vmax.bf16 %v3499, 0
    %v3532 = vmax.bf16 %v3500, 0
    %v3533 = vmax.bf16 %v3501, 0
    %v3534 = vmax.bf16 %v3502, 0
    %v3535 = vmax.bf16 %v3503, 0
    %v3536 = vmax.bf16 %v3504, 0
    %v3537 = vmax.bf16 %v3505, 0
    %v3538 = vunpack.c.l.bf16 %v3506
    %v3539 = vunpack.c.l.bf16 %v3507
    %v3540 = vunpack.c.l.bf16 %v3508
    %v3541 = vunpack.c.l.bf16 %v3509
    %v3542 = vunpack.c.h.bf16 %v3506
    %v3543 = vunpack.c.h.bf16 %v3507
    %v3544 = vunpack.c.h.bf16 %v3508
    %v3545 = vunpack.c.h.bf16 %v3509
    %v3546 = vunpack.c.l.bf16 %v3510
    %v3547 = vunpack.c.l.bf16 %v3511
    %v3548 = vunpack.c.l.bf16 %v3512
    %v3549 = vunpack.c.l.bf16 %v3513
    %v3550 = vunpack.c.h.bf16 %v3510
    %v3551 = vunpack.c.h.bf16 %v3511
    %v3552 = vunpack.c.h.bf16 %v3512
    %v3553 = vunpack.c.h.bf16 %v3513
    %v3554 = vunpack.c.l.bf16 %v3514
    %v3555 = vunpack.c.l.bf16 %v3515
    %v3556 = vunpack.c.l.bf16 %v3516
    %v3557 = vunpack.c.l.bf16 %v3517
    %v3558 = vunpack.c.h.bf16 %v3514
    %v3559 = vunpack.c.h.bf16 %v3515
    %v3560 = vunpack.c.h.bf16 %v3516
    %v3561 = vunpack.c.h.bf16 %v3517
    %v3562 = vunpack.c.l.bf16 %v3518
    %v3563 = vunpack.c.l.bf16 %v3519
    %v3564 = vunpack.c.l.bf16 %v3520
    %v3565 = vunpack.c.l.bf16 %v3521
    %v3566 = vunpack.c.h.bf16 %v3518
    %v3567 = vunpack.c.h.bf16 %v3519
    %v3568 = vunpack.c.h.bf16 %v3520
    %v3569 = vunpack.c.h.bf16 %v3521
    %v3570 = vunpack.c.l.bf16 %v3522
    %v3571 = vunpack.c.l.bf16 %v3523
    %v3572 = vunpack.c.l.bf16 %v3524
    %v3573 = vunpack.c.l.bf16 %v3525
    %v3574 = vunpack.c.h.bf16 %v3522
    %v3575 = vunpack.c.h.bf16 %v3523
    %v3576 = vunpack.c.h.bf16 %v3524
    %v3577 = vunpack.c.h.bf16 %v3525
    %v3578 = vunpack.c.l.bf16 %v3526
    %v3579 = vunpack.c.l.bf16 %v3527
    %v3580 = vunpack.c.l.bf16 %v3528
    %v3581 = vunpack.c.l.bf16 %v3529
    %v3582 = vunpack.c.h.bf16 %v3526
    %v3583 = vunpack.c.h.bf16 %v3527
    %v3584 = vunpack.c.h.bf16 %v3528
    %v3585 = vunpack.c.h.bf16 %v3529
    %v3586 = vunpack.c.l.bf16 %v3530
    %v3587 = vunpack.c.l.bf16 %v3531
    %v3588 = vunpack.c.l.bf16 %v3532
    %v3589 = vunpack.c.l.bf16 %v3533
    %v3590 = vunpack.c.h.bf16 %v3530
    %v3591 = vunpack.c.h.bf16 %v3531
    %v3592 = vunpack.c.h.bf16 %v3532
    %v3593 = vunpack.c.h.bf16 %v3533
    %v3594 = vunpack.c.l.bf16 %v3534
    %v3595 = vunpack.c.l.bf16 %v3535
    %v3596 = vunpack.c.l.bf16 %v3536
    %v3597 = vunpack.c.l.bf16 %v3537
    %v3598 = vunpack.c.h.bf16 %v3534
    %v3599 = vunpack.c.h.bf16 %v3535
    %v3600 = vunpack.c.h.bf16 %v3536
    %v3601 = vunpack.c.h.bf16 %v3537
    %v3602 = vld [vmem:[%s3] sm:$0xf]
    %v3604 = vlaneseq
    %v3605 = vshrl.u32 %v3604, 7
    %v3606 = vsub.s32 0, %v3605
    %v3607 = vrot.slane %v3602, %v3606
    %v3608 = vlaneseq
    %v3609 = vshrl.u32 %v3608, 7
    %v3610 = vsub.s32 1, %v3609
    %v3611 = vrot.slane %v3602, %v3610
    %v3612 = vlaneseq
    %v3613 = vshrl.u32 %v3612, 7
    %v3614 = vsub.s32 2, %v3613
    %v3615 = vrot.slane %v3602, %v3614
    %v3616 = vlaneseq
    %v3617 = vshrl.u32 %v3616, 7
    %v3618 = vsub.s32 3, %v3617
    %v3619 = vrot.slane %v3602, %v3618
    %v3624 = vmul.f32 %v3538, %v3607
    %v3625 = vmul.f32 %v3539, %v3611
    %v3626 = vmul.f32 %v3540, %v3615
    %v3627 = vmul.f32 %v3541, %v3619
    %v3628 = vmul.f32 %v3542, %v3607
    %v3629 = vmul.f32 %v3543, %v3611
    %v3630 = vmul.f32 %v3544, %v3615
    %v3631 = vmul.f32 %v3545, %v3619
    %v3632 = vmul.f32 %v3546, %v3607
    %v3633 = vmul.f32 %v3547, %v3611
    %v3634 = vmul.f32 %v3548, %v3615
    %v3635 = vmul.f32 %v3549, %v3619
    %v3636 = vmul.f32 %v3550, %v3607
    %v3637 = vmul.f32 %v3551, %v3611
    %v3638 = vmul.f32 %v3552, %v3615
    %v3639 = vmul.f32 %v3553, %v3619
    %v3640 = vmul.f32 %v3554, %v3607
    %v3641 = vmul.f32 %v3555, %v3611
    %v3642 = vmul.f32 %v3556, %v3615
    %v3643 = vmul.f32 %v3557, %v3619
    %v3644 = vmul.f32 %v3558, %v3607
    %v3645 = vmul.f32 %v3559, %v3611
    %v3646 = vmul.f32 %v3560, %v3615
    %v3647 = vmul.f32 %v3561, %v3619
    %v3648 = vmul.f32 %v3562, %v3607
    %v3649 = vmul.f32 %v3563, %v3611
    %v3650 = vmul.f32 %v3564, %v3615
    %v3651 = vmul.f32 %v3565, %v3619
    %v3652 = vmul.f32 %v3566, %v3607
    %v3653 = vmul.f32 %v3567, %v3611
    %v3654 = vmul.f32 %v3568, %v3615
    %v3655 = vmul.f32 %v3569, %v3619
    %v3656 = vmul.f32 %v3570, %v3607
    %v3657 = vmul.f32 %v3571, %v3611
    %v3658 = vmul.f32 %v3572, %v3615
    %v3659 = vmul.f32 %v3573, %v3619
    %v3660 = vmul.f32 %v3574, %v3607
    %v3661 = vmul.f32 %v3575, %v3611
    %v3662 = vmul.f32 %v3576, %v3615
    %v3663 = vmul.f32 %v3577, %v3619
    %v3664 = vmul.f32 %v3578, %v3607
    %v3665 = vmul.f32 %v3579, %v3611
    %v3666 = vmul.f32 %v3580, %v3615
    %v3667 = vmul.f32 %v3581, %v3619
    %v3668 = vmul.f32 %v3582, %v3607
    %v3669 = vmul.f32 %v3583, %v3611
    %v3670 = vmul.f32 %v3584, %v3615
    %v3671 = vmul.f32 %v3585, %v3619
    %v3672 = vmul.f32 %v3586, %v3607
    %v3673 = vmul.f32 %v3587, %v3611
    %v3674 = vmul.f32 %v3588, %v3615
    %v3675 = vmul.f32 %v3589, %v3619
    %v3676 = vmul.f32 %v3590, %v3607
    %v3677 = vmul.f32 %v3591, %v3611
    %v3678 = vmul.f32 %v3592, %v3615
    %v3679 = vmul.f32 %v3593, %v3619
    %v3680 = vmul.f32 %v3594, %v3607
    %v3681 = vmul.f32 %v3595, %v3611
    %v3682 = vmul.f32 %v3596, %v3615
    %v3683 = vmul.f32 %v3597, %v3619
    %v3684 = vmul.f32 %v3598, %v3607
    %v3685 = vmul.f32 %v3599, %v3611
    %v3686 = vmul.f32 %v3600, %v3615
    %v3687 = vmul.f32 %v3601, %v3619
    %v3688 = vadd.f32 %v3624, %v3625
    %v3689 = vadd.f32 %v3688, %v3626
    %v3690 = vadd.f32 %v3689, %v3627
    %3691 = vadd.xlane.f32.xlu0 %v3690
    %v3692 = vpop.xlane.xlu0 %3691
    %v3693 = vadd.f32 %v3628, %v3629
    %v3694 = vadd.f32 %v3693, %v3630
    %v3695 = vadd.f32 %v3694, %v3631
    %3696 = vadd.xlane.f32.xlu0 %v3695
    %v3697 = vpop.xlane.xlu0 %3696
    %v3698 = vadd.f32 %v3632, %v3633
    %v3699 = vadd.f32 %v3698, %v3634
    %v3700 = vadd.f32 %v3699, %v3635
    %3701 = vadd.xlane.f32.xlu0 %v3700
    %v3702 = vpop.xlane.xlu0 %3701
    %v3703 = vadd.f32 %v3636, %v3637
    %v3704 = vadd.f32 %v3703, %v3638
    %v3705 = vadd.f32 %v3704, %v3639
    %3706 = vadd.xlane.f32.xlu0 %v3705
    %v3707 = vpop.xlane.xlu0 %3706
    %v3708 = vadd.f32 %v3640, %v3641
    %v3709 = vadd.f32 %v3708, %v3642
    %v3710 = vadd.f32 %v3709, %v3643
    %3711 = vadd.xlane.f32.xlu0 %v3710
    %v3712 = vpop.xlane.xlu0 %3711
    %v3713 = vadd.f32 %v3644, %v3645
    %v3714 = vadd.f32 %v3713, %v3646
    %v3715 = vadd.f32 %v3714, %v3647
    %3716 = vadd.xlane.f32.xlu0 %v3715
    %v3717 = vpop.xlane.xlu0 %3716
    %v3718 = vadd.f32 %v3648, %v3649
    %v3719 = vadd.f32 %v3718, %v3650
    %v3720 = vadd.f32 %v3719, %v3651
    %3721 = vadd.xlane.f32.xlu0 %v3720
    %v3722 = vpop.xlane.xlu0 %3721
    %v3723 = vadd.f32 %v3652, %v3653
    %v3724 = vadd.f32 %v3723, %v3654
    %v3725 = vadd.f32 %v3724, %v3655
    %3726 = vadd.xlane.f32.xlu0 %v3725
    %v3727 = vpop.xlane.xlu0 %3726
    %v3728 = vadd.f32 %v3656, %v3657
    %v3729 = vadd.f32 %v3728, %v3658
    %v3730 = vadd.f32 %v3729, %v3659
    %3731 = vadd.xlane.f32.xlu0 %v3730
    %v3732 = vpop.xlane.xlu0 %3731
    %v3733 = vadd.f32 %v3660, %v3661
    %v3734 = vadd.f32 %v3733, %v3662
    %v3735 = vadd.f32 %v3734, %v3663
    %3736 = vadd.xlane.f32.xlu0 %v3735
    %v3737 = vpop.xlane.xlu0 %3736
    %v3738 = vadd.f32 %v3664, %v3665
    %v3739 = vadd.f32 %v3738, %v3666
    %v3740 = vadd.f32 %v3739, %v3667
    %3741 = vadd.xlane.f32.xlu0 %v3740
    %v3742 = vpop.xlane.xlu0 %3741
    %v3743 = vadd.f32 %v3668, %v3669
    %v3744 = vadd.f32 %v3743, %v3670
    %v3745 = vadd.f32 %v3744, %v3671
    %3746 = vadd.xlane.f32.xlu0 %v3745
    %v3747 = vpop.xlane.xlu0 %3746
    %v3748 = vadd.f32 %v3672, %v3673
    %v3749 = vadd.f32 %v3748, %v3674
    %v3750 = vadd.f32 %v3749, %v3675
    %3751 = vadd.xlane.f32.xlu0 %v3750
    %v3752 = vpop.xlane.xlu0 %3751
    %v3753 = vadd.f32 %v3676, %v3677
    %v3754 = vadd.f32 %v3753, %v3678
    %v3755 = vadd.f32 %v3754, %v3679
    %3756 = vadd.xlane.f32.xlu0 %v3755
    %v3757 = vpop.xlane.xlu0 %3756
    %v3758 = vadd.f32 %v3680, %v3681
    %v3759 = vadd.f32 %v3758, %v3682
    %v3760 = vadd.f32 %v3759, %v3683
    %3761 = vadd.xlane.f32.xlu0 %v3760
    %v3762 = vpop.xlane.xlu0 %3761
    %v3763 = vadd.f32 %v3684, %v3685
    %v3764 = vadd.f32 %v3763, %v3686
    %v3765 = vadd.f32 %v3764, %v3687
    %3766 = vadd.xlane.f32.xlu0 %v3765
    %v3767 = vpop.xlane.xlu0 %3766
    %v3768 = vxor.u32 %v3692, 2147483648
    %v3769 = vxor.u32 %v3697, 2147483648
    %v3770 = vxor.u32 %v3702, 2147483648
    %v3771 = vxor.u32 %v3707, 2147483648
    %v3772 = vxor.u32 %v3712, 2147483648
    %v3773 = vxor.u32 %v3717, 2147483648
    %v3774 = vxor.u32 %v3722, 2147483648
    %v3775 = vxor.u32 %v3727, 2147483648
    %v3776 = vxor.u32 %v3732, 2147483648
    %v3777 = vxor.u32 %v3737, 2147483648
    %v3778 = vxor.u32 %v3742, 2147483648
    %v3779 = vxor.u32 %v3747, 2147483648
    %v3780 = vxor.u32 %v3752, 2147483648
    %v3781 = vxor.u32 %v3757, 2147483648
    %v3782 = vxor.u32 %v3762, 2147483648
    %v3783 = vxor.u32 %v3767, 2147483648
    %v3784 = vmul.f32 %v3768, 1.442695
    %v3785 = vpow.pop %v3784
    %v3786 = vmul.f32 %v3769, 1.442695
    %v3787 = vpow.pop %v3786
    %v3788 = vmul.f32 %v3770, 1.442695
    %v3789 = vpow.pop %v3788
    %v3790 = vmul.f32 %v3771, 1.442695
    %v3791 = vpow.pop %v3790
    %v3792 = vmul.f32 %v3772, 1.442695
    %v3793 = vpow.pop %v3792
    %v3794 = vmul.f32 %v3773, 1.442695
    %v3795 = vpow.pop %v3794
    %v3796 = vmul.f32 %v3774, 1.442695
    %v3797 = vpow.pop %v3796
    %v3798 = vmul.f32 %v3775, 1.442695
    %v3799 = vpow.pop %v3798
    %v3800 = vmul.f32 %v3776, 1.442695
    %v3801 = vpow.pop %v3800
    %v3802 = vmul.f32 %v3777, 1.442695
    %v3803 = vpow.pop %v3802
    %v3804 = vmul.f32 %v3778, 1.442695
    %v3805 = vpow.pop %v3804
    %v3806 = vmul.f32 %v3779, 1.442695
    %v3807 = vpow.pop %v3806
    %v3808 = vmul.f32 %v3780, 1.442695
    %v3809 = vpow.pop %v3808
    %v3810 = vmul.f32 %v3781, 1.442695
    %v3811 = vpow.pop %v3810
    %v3812 = vmul.f32 %v3782, 1.442695
    %v3813 = vpow.pop %v3812
    %v3814 = vmul.f32 %v3783, 1.442695
    %v3815 = vpow.pop %v3814
    %v3816 = vadd.f32 %v3785, 1.0
    %v3817 = vadd.f32 %v3787, 1.0
    %v3818 = vadd.f32 %v3789, 1.0
    %v3819 = vadd.f32 %v3791, 1.0
    %v3820 = vadd.f32 %v3793, 1.0
    %v3821 = vadd.f32 %v3795, 1.0
    %v3822 = vadd.f32 %v3797, 1.0
    %v3823 = vadd.f32 %v3799, 1.0
    %v3824 = vadd.f32 %v3801, 1.0
    %v3825 = vadd.f32 %v3803, 1.0
    %v3826 = vadd.f32 %v3805, 1.0
    %v3827 = vadd.f32 %v3807, 1.0
    %v3828 = vadd.f32 %v3809, 1.0
    %v3829 = vadd.f32 %v3811, 1.0
    %v3830 = vadd.f32 %v3813, 1.0
    %v3831 = vadd.f32 %v3815, 1.0
    %v3832 = vrcp.pop %v3816
    %v3833 = vmul.f32 1.0, %v3832
    %v3834 = vrcp.pop %v3817
    %v3835 = vmul.f32 1.0, %v3834
    %v3836 = vrcp.pop %v3818
    %v3837 = vmul.f32 1.0, %v3836
    %v3838 = vrcp.pop %v3819
    %v3839 = vmul.f32 1.0, %v3838
    %v3840 = vrcp.pop %v3820
    %v3841 = vmul.f32 1.0, %v3840
    %v3842 = vrcp.pop %v3821
    %v3843 = vmul.f32 1.0, %v3842
    %v3844 = vrcp.pop %v3822
    %v3845 = vmul.f32 1.0, %v3844
    %v3846 = vrcp.pop %v3823
    %v3847 = vmul.f32 1.0, %v3846
    %v3848 = vrcp.pop %v3824
    %v3849 = vmul.f32 1.0, %v3848
    %v3850 = vrcp.pop %v3825
    %v3851 = vmul.f32 1.0, %v3850
    %v3852 = vrcp.pop %v3826
    %v3853 = vmul.f32 1.0, %v3852
    %v3854 = vrcp.pop %v3827
    %v3855 = vmul.f32 1.0, %v3854
    %v3856 = vrcp.pop %v3828
    %v3857 = vmul.f32 1.0, %v3856
    %v3858 = vrcp.pop %v3829
    %v3859 = vmul.f32 1.0, %v3858
    %v3860 = vrcp.pop %v3830
    %v3861 = vmul.f32 1.0, %v3860
    %v3862 = vrcp.pop %v3831
    %v3863 = vmul.f32 1.0, %v3862
    %3864 = vxpose.xlu0.b32.start [1/16] %v3833, 128
    %3865 = vxpose.xlu0.b32.cont [2/16] %v3835, 128
    %3866 = vxpose.xlu0.b32.cont [3/16] %v3837, 128
    %3867 = vxpose.xlu0.b32.cont [4/16] %v3839, 128
    %3868 = vxpose.xlu0.b32.cont [5/16] %v3841, 128
    %3869 = vxpose.xlu0.b32.cont [6/16] %v3843, 128
    %3870 = vxpose.xlu0.b32.cont [7/16] %v3845, 128
    %3871 = vxpose.xlu0.b32.cont [8/16] %v3847, 128
    %3872 = vxpose.xlu0.b32.cont [9/16] %v3849, 128
    %3873 = vxpose.xlu0.b32.cont [10/16] %v3851, 128
    %3874 = vxpose.xlu0.b32.cont [11/16] %v3853, 128
    %3875 = vxpose.xlu0.b32.cont [12/16] %v3855, 128
    %3876 = vxpose.xlu0.b32.cont [13/16] %v3857, 128
    %3877 = vxpose.xlu0.b32.cont [14/16] %v3859, 128
    %3878 = vxpose.xlu0.b32.cont [15/16] %v3861, 128
    %3879 = vxpose.xlu0.b32.end [16/16] %v3863, 128
    %v3880 = vpop.trf.xlu0
    %v3881 = vpop.trf.xlu0
    %v3882 = vpop.trf.xlu0
    %v3883 = vpop.trf.xlu0
    %v3884 = vpop.trf.xlu0
    %v3885 = vpop.trf.xlu0
    %v3886 = vpop.trf.xlu0
    %v3887 = vpop.trf.xlu0
    %v3888 = vpop.trf.xlu0
    %v3889 = vpop.trf.xlu0
    %v3890 = vpop.trf.xlu0
    %v3891 = vpop.trf.xlu0
    %v3892 = vpop.trf.xlu0
    %v3893 = vpop.trf.xlu0
    %v3894 = vpop.trf.xlu0
    %v3895 = vpop.trf.xlu0
    %3896 = vst [vmem:[%s4] sm:$0x1] %v3880
    // Predicated region
    $region26: #{net_forward.1} parent=1 // pred_check
      _
    $region27: #{net_forward.1} parent=1 // pred_check_branch
      %3898 = sbr.rel (0) target = $region29
    $region28: #{net_forward.1} parent=1 // pred_region
      _
    $region29: #{net_forward.1} parent=1 // pred_fallthru
      _
    // Predicated region
    $region30: #{net_forward.1} parent=1 // pred_check
      _
    $region31: #{net_forward.1} parent=1 // pred_check_branch
      %3900 = sbr.rel (0) target = $region33
    $region32: #{net_forward.1} parent=1 // pred_region
      _
    $region33: #{net_forward.1} parent=1 // pred_fallthru
      _
    %3901 = vsyncpa [#allocation3], 1
    %3902 = vsyncpa [#allocation5], 1

</llo_original>
